<compile_context>
chip_gen: v5e
topology: v5e:2x2
jax: 0.10.0
libtpu: 0.0.40
codegen_flags: <defaults>
</compile_context>

<pallas_src>
import math
from functools import partial

import jax
import jax.numpy as jnp
from jax import lax
from jax.experimental import pallas as pl
from jax.experimental.pallas import tpu as pltpu


def _round_up(x, m):
    return ((x + m - 1) // m) * m


# ----------------------------- in-kernel math helpers -----------------------------

def _layernorm(x, g, b, eps=1e-5):
    # x: (M, D) f32, g/b: (1, D) f32
    mu = jnp.mean(x, axis=-1, keepdims=True)
    var = jnp.mean((x - mu) ** 2, axis=-1, keepdims=True)
    return (x - mu) * lax.rsqrt(var + eps) * g + b


def _mha(q, k, v, ow_ref, B, Lq_p, Lk_p, Lk_valid, H, hd):
    """Multi-head attention with the output projection fused per head.

    q: (B*Lq_p, H*hd) f32 (pre-scaled), k/v: (B*Lk_p, H*hd) f32.
    ow_ref: (1, H, hd, D) bf16 per-head output-projection weights.
    Returns (B*Lq_p, D) f32 = concat_h(softmax(q_h k_h^T) v_h) @ W_out  (bias added by caller).
    No head-concat scratch / lane-partial stores: each head's context is consumed immediately
    by a (Lq_p, hd) x (hd, D) matmul accumulated into a lane-dense (Lq_p, D) f32 value.
    Padded key columns (Lk_valid..Lk_p-1) are masked with a -1e30 additive bias.
    """
    bf = jnp.bfloat16
    f32 = jnp.float32
    kbias = None
    if Lk_p > Lk_valid:
        kbias = jnp.where(
            lax.broadcasted_iota(jnp.int32, (1, Lk_p), 1) < Lk_valid,
            0.0, -1e30).astype(f32)
    outs = []
    for b in range(B):                      # static unroll; B is 1 in real DETR
        qb = q[b * Lq_p:(b + 1) * Lq_p]
        kb = k[b * Lk_p:(b + 1) * Lk_p]
        vb = v[b * Lk_p:(b + 1) * Lk_p]
        acc = None
        for h in range(H):                  # static unroll over heads; temporaries die per head
            c0, c1 = h * hd, (h + 1) * hd
            qh = qb[:, c0:c1].astype(bf)
            kh = kb[:, c0:c1].astype(bf)
            vh = vb[:, c0:c1].astype(bf)
            # q @ k^T without materializing a transpose (NT dot_general).
            s = lax.dot_general(qh, kh, (((1,), (1,)), ((), ())),
                                preferred_element_type=f32)              # (Lq_p, Lk_p)
            if kbias is not None:
                s = s + kbias
            s = s - jnp.max(s, axis=-1, keepdims=True)
            p = jnp.exp(s)
            p = p * pl.reciprocal(jnp.sum(p, axis=-1, keepdims=True), approx=True)
            ctx = jnp.dot(p.astype(bf), vh, preferred_element_type=f32)  # (Lq_p, hd)
            t = jnp.dot(ctx.astype(bf), ow_ref[0, h],
                        preferred_element_type=f32)                      # (Lq_p, D)
            acc = t if acc is None else acc + t
        outs.append(acc)
    return outs[0] if B == 1 else jnp.concatenate(outs, axis=0)


# ----------------------------- fused decoder kernel -----------------------------

def decoder_kernel(B, Lq_p, Lq, Lm_p, Lm, H,
                   tgt_ref, qpos_ref, mem_ref, memp_ref,
                   sa_wqk_ref, sa_bqk_ref, sa_wv_ref, sa_bv_ref, sa_ow_ref, sa_ob_ref,
                   ca_wq_ref, ca_bq_ref, ca_wk_ref, ca_bk_ref, ca_wv_ref, ca_bv_ref,
                   ca_ow_ref, ca_ob_ref,
                   l1_w_ref, l1_b_ref, l2_w_ref, l2_b_ref,
                   n1_g_ref, n1_b_ref, n2_g_ref, n2_b_ref, n3_g_ref, n3_b_ref,
                   fn_g_ref, fn_b_ref,
                   out_ref,
                   x_scr):
    D = qpos_ref.shape[-1]
    hd = D // H
    bf = jnp.bfloat16
    f32 = jnp.float32

    # Layer 0: load the initial target into the resident activation scratch.
    @pl.when(pl.program_id(0) == 0)
    def _():
        x_scr[...] = tgt_ref[...]

    x = x_scr[...]              # (B*Lq_p, D) f32, carried across layers in VMEM
    qpos = qpos_ref[...]        # (B*Lq_p, D) f32

    # ---------------- self attention (q = k = x + query_pos, value = x) ----------------
    qk_in = (x + qpos).astype(bf)
    qk = jnp.dot(qk_in, sa_wqk_ref[0], preferred_element_type=f32) + sa_bqk_ref[0]   # (M, 2D)
    v_sa = jnp.dot(x.astype(bf), sa_wv_ref[0], preferred_element_type=f32) + sa_bv_ref[0]
    sa = _mha(qk[:, :D], qk[:, D:], v_sa, sa_ow_ref, B, Lq_p, Lq_p, Lq, H, hd) + sa_ob_ref[0]
    # TODO(synk): dropout1 omitted (identity in eval mode)
    x = _layernorm(x + sa, n1_g_ref[0], n1_b_ref[0])

    # ------------- cross attention (q = x + query_pos, k = memory + pos, v = memory) -------------
    q_ca = jnp.dot((x + qpos).astype(bf), ca_wq_ref[0],
                   preferred_element_type=f32) + ca_bq_ref[0]
    k_ca = jnp.dot(memp_ref[...], ca_wk_ref[0], preferred_element_type=f32) + ca_bk_ref[0]
    v_ca = jnp.dot(mem_ref[...], ca_wv_ref[0], preferred_element_type=f32) + ca_bv_ref[0]
    ca = _mha(q_ca, k_ca, v_ca, ca_ow_ref, B, Lq_p, Lm_p, Lm, H, hd) + ca_ob_ref[0]
    x = _layernorm(x + ca, n2_g_ref[0], n2_b_ref[0])

    # ---------------- feed-forward (relu), chunked over dff ----------------
    dff = l1_w_ref.shape[-1]
    ck = 512 if (dff > 512 and dff % 512 == 0) else dff
    x_bf = x.astype(bf)
    acc = None
    for c0 in range(0, dff, ck):
        h1c = jnp.maximum(
            jnp.dot(x_bf, l1_w_ref[0, :, c0:c0 + ck], preferred_element_type=f32)
            + l1_b_ref[0, :, c0:c0 + ck], 0.0).astype(bf)        # cast immediately: bf16 live temp
        t = jnp.dot(h1c, l2_w_ref[0, c0:c0 + ck, :], preferred_element_type=f32)
        acc = t if acc is None else acc + t
    ffn = acc + l2_b_ref[0]
    x = _layernorm(x + ffn, n3_g_ref[0], n3_b_ref[0])

    # Carry the activation to the next layer and emit the per-layer intermediate
    # (final decoder LayerNorm fused here -- matches return_intermediate semantics).
    x_scr[...] = x
    out_ref[0] = _layernorm(x, fn_g_ref[...], fn_b_ref[...]).astype(out_ref.dtype)


# ----------------------------- host-side param prep & wrapper -----------------------------

def prepare_params(params, nheads):
    """Convert per-layer f32 params into stacked, kernel-friendly bf16 weights.

    - Q/K of self-attention merged into one (D, 2D) weight (q_in == k_in).
    - 1/sqrt(head_dim) folded into the Q weights/bias.
    - Output-projection weights reshaped to (H, hd, D) so the kernel accumulates the out-proj
      per head without lane-slicing.
    - Weights bf16 (half the HBM->VMEM stream); biases / norm params stay f32.
    """
    D = params["layers"][0]["sa_w"].shape[0]
    hd = D // nheads
    scale = 1.0 / math.sqrt(hd)
    bf = jnp.bfloat16

    def stack(fn):
        return jnp.stack([fn(lp) for lp in params["layers"]], axis=0)

    return dict(
        sa_wqk=stack(lambda p: jnp.concatenate(
            [p["sa_w"][:, :D] * scale, p["sa_w"][:, D:2 * D]], axis=1)).astype(bf),
        sa_bqk=stack(lambda p: jnp.concatenate(
            [p["sa_b"][:, :D] * scale, p["sa_b"][:, D:2 * D]], axis=1)),
        sa_wv=stack(lambda p: p["sa_w"][:, 2 * D:]).astype(bf),
        sa_bv=stack(lambda p: p["sa_b"][:, 2 * D:]),
        sa_ow=stack(lambda p: p["sa_ow"].reshape(nheads, hd, D)).astype(bf),
        sa_ob=stack(lambda p: p["sa_ob"]),
        ca_wq=stack(lambda p: p["ca_w"][:, :D] * scale).astype(bf),
        ca_bq=stack(lambda p: p["ca_b"][:, :D] * scale),
        ca_wk=stack(lambda p: p["ca_w"][:, D:2 * D]).astype(bf),
        ca_bk=stack(lambda p: p["ca_b"][:, D:2 * D]),
        ca_wv=stack(lambda p: p["ca_w"][:, 2 * D:]).astype(bf),
        ca_bv=stack(lambda p: p["ca_b"][:, 2 * D:]),
        ca_ow=stack(lambda p: p["ca_ow"].reshape(nheads, hd, D)).astype(bf),
        ca_ob=stack(lambda p: p["ca_ob"]),
        l1_w=stack(lambda p: p["l1_w"]).astype(bf),
        l1_b=stack(lambda p: p["l1_b"]),
        l2_w=stack(lambda p: p["l2_w"]).astype(bf),
        l2_b=stack(lambda p: p["l2_b"]),
        n1_g=stack(lambda p: p["n1_g"]), n1_b=stack(lambda p: p["n1_b"]),
        n2_g=stack(lambda p: p["n2_g"]), n2_b=stack(lambda p: p["n2_b"]),
        n3_g=stack(lambda p: p["n3_g"]), n3_b=stack(lambda p: p["n3_b"]),
        fn_g=params["norm_g"], fn_b=params["norm_b"],
    )


def transformer_decoder_forward(tgt, memory, query_pos, pos, params, nheads):
    """TransformerDecoder.forward (return_intermediate=True, post-norm).

    Returns (num_layers, B, Lq, D): intermediate[i] = norm(output after layer i).
    TODO(synk): attn_mask / key_padding_mask not supported (None in the DETR code path).
    """
    B, Lq, D = tgt.shape
    Lm = memory.shape[1]
    NL = len(params["layers"])
    dff = params["layers"][0]["l1_w"].shape[1]
    H = nheads
    hd = D // H

    # Pad sequence lengths (per batch, before flattening) to sublane multiples; padded key
    # positions are masked inside the kernel, padded query rows are sliced off below.
    Lq_p = _round_up(Lq, 8)
    Lm_p = _round_up(Lm, 8)
    M, Mk = B * Lq_p, B * Lm_p

    pp = prepare_params(params, nheads)

    def pad_rows(a, n):
        if a.shape[1] == n:
            return a
        return jnp.pad(a, ((0, 0), (0, n - a.shape[1]), (0, 0)))

    tgt_f = pad_rows(tgt, Lq_p).reshape(M, D)
    qpos_f = pad_rows(query_pos, Lq_p).reshape(M, D)
    # memory tensors only feed matmuls -> ship them to the kernel as bf16.
    mem_f = pad_rows(memory, Lm_p).reshape(Mk, D).astype(jnp.bfloat16)
    memp_f = pad_rows(memory + pos, Lm_p).reshape(Mk, D).astype(jnp.bfloat16)

    def resident(shape):
        n = len(shape)
        return pl.BlockSpec(shape, lambda l, n=n: (0,) * n)

    def per_layer(tail):
        n = len(tail)
        return pl.BlockSpec((1,) + tail, lambda l, n=n: (l,) + (0,) * n)

    in_specs = [
        resident((M, D)),                 # tgt
        resident((M, D)),                 # query_pos
        resident((Mk, D)),                # memory (bf16)
        resident((Mk, D)),                # memory + pos (bf16)
        per_layer((D, 2 * D)), per_layer((1, 2 * D)),   # self-attn merged Q/K proj
        per_layer((D, D)), per_layer((1, D)),           # self-attn V proj
        per_layer((H, hd, D)), per_layer((1, D)),       # self-attn out proj (per-head blocks)
        per_layer((D, D)), per_layer((1, D)),           # cross-attn Q proj
        per_layer((D, D)), per_layer((1, D)),           # cross-attn K proj
        per_layer((D, D)), per_layer((1, D)),           # cross-attn V proj
        per_layer((H, hd, D)), per_layer((1, D)),       # cross-attn out proj (per-head blocks)
        per_layer((D, dff)), per_layer((1, dff)),       # linear1
        per_layer((dff, D)), per_layer((1, D)),         # linear2
        per_layer((1, D)), per_layer((1, D)),           # norm1
        per_layer((1, D)), per_layer((1, D)),           # norm2
        per_layer((1, D)), per_layer((1, D)),           # norm3
        resident((1, D)), resident((1, D)),             # final norm
    ]

    out = pl.pallas_call(
        partial(decoder_kernel, B, Lq_p, Lq, Lm_p, Lm, H),
        out_shape=jax.ShapeDtypeStruct((NL, M, D), jnp.bfloat16),   # bf16 intermediate writeback
        grid=(NL,),
        in_specs=in_specs,
        out_specs=pl.BlockSpec((1, M, D), lambda l: (l, 0, 0)),
        scratch_shapes=[pltpu.VMEM((M, D), jnp.float32)],           # resident activation
        compiler_params=pltpu.CompilerParams(
            dimension_semantics=("arbitrary",),
            vmem_limit_bytes=48 * 1024 * 1024),
    )(tgt_f, qpos_f, mem_f, memp_f,
      pp["sa_wqk"], pp["sa_bqk"], pp["sa_wv"], pp["sa_bv"], pp["sa_ow"], pp["sa_ob"],
      pp["ca_wq"], pp["ca_bq"], pp["ca_wk"], pp["ca_bk"], pp["ca_wv"], pp["ca_bv"],
      pp["ca_ow"], pp["ca_ob"],
      pp["l1_w"], pp["l1_b"], pp["l2_w"], pp["l2_b"],
      pp["n1_g"], pp["n1_b"], pp["n2_g"], pp["n2_b"], pp["n3_g"], pp["n3_b"],
      pp["fn_g"], pp["fn_b"])

    out = out.reshape(NL, B, Lq_p, D)[:, :, :Lq, :].astype(jnp.float32)
    return out


# ----------------------------- deterministic params & pure-JAX reference -----------------------------

def init_params(key, num_layers, D, dff):
    layers = []
    for _ in range(num_layers):
        key, *ks = jax.random.split(key, 13)
        nrm = lambda k, s, sc=0.02: jax.random.normal(k, s, jnp.float32) * sc
        layers.append(dict(
            sa_w=nrm(ks[0], (D, 3 * D)), sa_b=nrm(ks[1], (1, 3 * D)),
            sa_ow=nrm(ks[2], (D, D)),    sa_ob=nrm(ks[3], (1, D)),
            ca_w=nrm(ks[4], (D, 3 * D)), ca_b=nrm(ks[5], (1, 3 * D)),
            ca_ow=nrm(ks[6], (D, D)),    ca_ob=nrm(ks[7], (1, D)),
            l1_w=nrm(ks[8], (D, dff)),   l1_b=nrm(ks[9], (1, dff)),
            l2_w=nrm(ks[10], (dff, D)),  l2_b=nrm(ks[11], (1, D)),
            n1_g=jnp.ones((1, D), jnp.float32), n1_b=jnp.zeros((1, D), jnp.float32),
            n2_g=jnp.ones((1, D), jnp.float32), n2_b=jnp.zeros((1, D), jnp.float32),
            n3_g=jnp.ones((1, D), jnp.float32), n3_b=jnp.zeros((1, D), jnp.float32),
        ))
    return dict(layers=layers,
                norm_g=jnp.ones((1, D), jnp.float32),
                norm_b=jnp.zeros((1, D), jnp.float32)), key


def _round_weights_bf16(params):
    """bf16-round the matmul weights (kernel stores them bf16) for an apples-to-apples reference."""
    def r(w):
        return w.astype(jnp.bfloat16).astype(jnp.float32)
    layers = []
    for p in params["layers"]:
        q = dict(p)
        for name in ("sa_w", "sa_ow", "ca_w", "ca_ow", "l1_w", "l2_w"):
            q[name] = r(p[name])
        layers.append(q)
    return dict(params, layers=layers)


def _ref_mha(q_in, k_in, v_in, w_in, b_in, w_out, b_out, nheads):
    D = q_in.shape[-1]
    hd = D // nheads
    q = q_in @ w_in[:, :D] + b_in[0, :D]
    k = k_in @ w_in[:, D:2 * D] + b_in[0, D:2 * D]
    v = v_in @ w_in[:, 2 * D:] + b_in[0, 2 * D:]
    q = q.reshape(-1, nheads, hd).transpose(1, 0, 2) / math.sqrt(hd)
    k = k.reshape(-1, nheads, hd).transpose(1, 0, 2)
    v = v.reshape(-1, nheads, hd).transpose(1, 0, 2)
    p = jax.nn.softmax(jnp.einsum("hqd,hkd->hqk", q, k), axis=-1)
    o = jnp.einsum("hqk,hkd->hqd", p, v).transpose(1, 0, 2).reshape(-1, D)
    return o @ w_out + b_out[0]


def reference_forward(tgt, memory, query_pos, pos, params, nheads):
    def ln(x, g, b):
        mu = x.mean(-1, keepdims=True)
        var = ((x - mu) ** 2).mean(-1, keepdims=True)
        return (x - mu) / jnp.sqrt(var + 1e-5) * g[0] + b[0]

    outs = []
    x = tgt
    for p in params["layers"]:
        new = []
        for b in range(x.shape[0]):
            xb, mb, qb, pb = x[b], memory[b], query_pos[b], pos[b]
            q = xb + qb
            sa = _ref_mha(q, q, xb, p["sa_w"], p["sa_b"], p["sa_ow"], p["sa_ob"], nheads)
            y = ln(xb + sa, p["n1_g"], p["n1_b"])
            ca = _ref_mha(y + qb, mb + pb, mb, p["ca_w"], p["ca_b"], p["ca_ow"], p["ca_ob"], nheads)
            y = ln(y + ca, p["n2_g"], p["n2_b"])
            ffn = jnp.maximum(y @ p["l1_w"] + p["l1_b"][0], 0.0) @ p["l2_w"] + p["l2_b"][0]
            y = ln(y + ffn, p["n3_g"], p["n3_b"])
            new.append(y)
        x = jnp.stack(new, axis=0)
        outs.append(ln(x, params["norm_g"], params["norm_b"]))
    return jnp.stack(outs, axis=0)


# ----------------------------- main -----------------------------

if __name__ == "__main__":
    # Small but deliberately non-8-aligned sequence lengths to exercise the padding + key-mask path.
    B, Lq, Lm, D, DFF, NHEADS, NLAYERS = 2, 10, 23, 32, 64, 4, 2
    assert D % NHEADS == 0

    key = jax.random.PRNGKey(0)
    params, key = init_params(key, NLAYERS, D, DFF)
    key, k_mem, k_pos, k_qp = jax.random.split(key, 4)

    tgt = jnp.zeros((B, Lq, D), jnp.float32)                    # DETR: tgt = zeros_like(query_embed)
    memory = jax.random.normal(k_mem, (B, Lm, D), jnp.float32)
    pos = jax.random.normal(k_pos, (B, Lm, D), jnp.float32)
    query_pos = jax.random.normal(k_qp, (B, Lq, D), jnp.float32)

    out = transformer_decoder_forward(tgt, memory, query_pos, pos, params, NHEADS)
    out = jax.block_until_ready(out)
    assert out.shape == (NLAYERS, B, Lq, D)

    # Reference uses bf16-rounded weights (kernel stores weights bf16); remaining error comes from
    # bf16 activation casts, approx reciprocal and bf16 output writeback.
    ref = reference_forward(tgt, memory, query_pos, pos, _round_weights_bf16(params), NHEADS)
    err = float(jnp.max(jnp.abs(out - ref)))
    assert err < 5e-2, err

    print("KERNEL_OK")
</pallas_src>

<mosaic_0001>
module attributes {stable_mosaic.version = 11 : i64} {
  func.func @decoder_kernel(%arg0: i32, %arg1: memref<32x32xf32, #tpu.memory_space<vmem>>, %arg2: memref<32x32xf32, #tpu.memory_space<vmem>>, %arg3: memref<48x32xbf16, #tpu.memory_space<vmem>>, %arg4: memref<48x32xbf16, #tpu.memory_space<vmem>>, %arg5: memref<1x32x64xbf16, #tpu.memory_space<vmem>>, %arg6: memref<1x1x64xf32, #tpu.memory_space<vmem>>, %arg7: memref<1x32x32xbf16, #tpu.memory_space<vmem>>, %arg8: memref<1x1x32xf32, #tpu.memory_space<vmem>>, %arg9: memref<1x4x8x32xbf16, #tpu.memory_space<vmem>>, %arg10: memref<1x1x32xf32, #tpu.memory_space<vmem>>, %arg11: memref<1x32x32xbf16, #tpu.memory_space<vmem>>, %arg12: memref<1x1x32xf32, #tpu.memory_space<vmem>>, %arg13: memref<1x32x32xbf16, #tpu.memory_space<vmem>>, %arg14: memref<1x1x32xf32, #tpu.memory_space<vmem>>, %arg15: memref<1x32x32xbf16, #tpu.memory_space<vmem>>, %arg16: memref<1x1x32xf32, #tpu.memory_space<vmem>>, %arg17: memref<1x4x8x32xbf16, #tpu.memory_space<vmem>>, %arg18: memref<1x1x32xf32, #tpu.memory_space<vmem>>, %arg19: memref<1x32x64xbf16, #tpu.memory_space<vmem>>, %arg20: memref<1x1x64xf32, #tpu.memory_space<vmem>>, %arg21: memref<1x64x32xbf16, #tpu.memory_space<vmem>>, %arg22: memref<1x1x32xf32, #tpu.memory_space<vmem>>, %arg23: memref<1x1x32xf32, #tpu.memory_space<vmem>>, %arg24: memref<1x1x32xf32, #tpu.memory_space<vmem>>, %arg25: memref<1x1x32xf32, #tpu.memory_space<vmem>>, %arg26: memref<1x1x32xf32, #tpu.memory_space<vmem>>, %arg27: memref<1x1x32xf32, #tpu.memory_space<vmem>>, %arg28: memref<1x1x32xf32, #tpu.memory_space<vmem>>, %arg29: memref<1x32xf32, #tpu.memory_space<vmem>>, %arg30: memref<1x32xf32, #tpu.memory_space<vmem>>, %arg31: memref<1x32x32xbf16, #tpu.memory_space<vmem>>, %arg32: memref<32x32xf32, #tpu.memory_space<vmem>>) attributes {dimension_semantics = [#tpu.dimension_semantics<arbitrary>], iteration_bounds = array<i64: 2>, scalar_prefetch = 0 : i64, scratch_operands = 1 : i64, tpu.core_type = #tpu.core_type<tc>, window_params = [{pipeline_mode = #tpu.pipeline_mode<synchronous>, transform_indices = @transform_0, window_bounds = array<i64: 32, 32>}, {pipeline_mode = #tpu.pipeline_mode<synchronous>, transform_indices = @transform_1, window_bounds = array<i64: 32, 32>}, {pipeline_mode = #tpu.pipeline_mode<synchronous>, transform_indices = @transform_2, window_bounds = array<i64: 48, 32>}, {pipeline_mode = #tpu.pipeline_mode<synchronous>, transform_indices = @transform_3, window_bounds = array<i64: 48, 32>}, {transform_indices = @transform_4, window_bounds = array<i64: 1, 32, 64>}, {transform_indices = @transform_5, window_bounds = array<i64: 1, 1, 64>}, {transform_indices = @transform_6, window_bounds = array<i64: 1, 32, 32>}, {transform_indices = @transform_7, window_bounds = array<i64: 1, 1, 32>}, {transform_indices = @transform_8, window_bounds = array<i64: 1, 4, 8, 32>}, {transform_indices = @transform_9, window_bounds = array<i64: 1, 1, 32>}, {transform_indices = @transform_10, window_bounds = array<i64: 1, 32, 32>}, {transform_indices = @transform_11, window_bounds = array<i64: 1, 1, 32>}, {transform_indices = @transform_12, window_bounds = array<i64: 1, 32, 32>}, {transform_indices = @transform_13, window_bounds = array<i64: 1, 1, 32>}, {transform_indices = @transform_14, window_bounds = array<i64: 1, 32, 32>}, {transform_indices = @transform_15, window_bounds = array<i64: 1, 1, 32>}, {transform_indices = @transform_16, window_bounds = array<i64: 1, 4, 8, 32>}, {transform_indices = @transform_17, window_bounds = array<i64: 1, 1, 32>}, {transform_indices = @transform_18, window_bounds = array<i64: 1, 32, 64>}, {transform_indices = @transform_19, window_bounds = array<i64: 1, 1, 64>}, {transform_indices = @transform_20, window_bounds = array<i64: 1, 64, 32>}, {transform_indices = @transform_21, window_bounds = array<i64: 1, 1, 32>}, {transform_indices = @transform_22, window_bounds = array<i64: 1, 1, 32>}, {transform_indices = @transform_23, window_bounds = array<i64: 1, 1, 32>}, {transform_indices = @transform_24, window_bounds = array<i64: 1, 1, 32>}, {transform_indices = @transform_25, window_bounds = array<i64: 1, 1, 32>}, {transform_indices = @transform_26, window_bounds = array<i64: 1, 1, 32>}, {transform_indices = @transform_27, window_bounds = array<i64: 1, 1, 32>}, {pipeline_mode = #tpu.pipeline_mode<synchronous>, transform_indices = @transform_28, window_bounds = array<i64: 1, 32>}, {pipeline_mode = #tpu.pipeline_mode<synchronous>, transform_indices = @transform_29, window_bounds = array<i64: 1, 32>}, {transform_indices = @transform_30, window_bounds = array<i64: 1, 32, 32>}]} {
    %c0_i32 = arith.constant 0 : i32
    %0 = arith.cmpi eq, %arg0, %c0_i32 : i32
    %1 = arith.extui %0 : i1 to i32
    %c0_i32_0 = arith.constant 0 : i32
    %2 = arith.cmpi ne, %1, %c0_i32_0 : i32
    scf.if %2 {
      %c0_255 = arith.constant 0 : index
      %c0_256 = arith.constant 0 : index
      %623 = vector.load %arg1[%c0_255, %c0_256] : memref<32x32xf32, #tpu.memory_space<vmem>>, vector<32x32xf32>
      %c0_257 = arith.constant 0 : index
      %c0_258 = arith.constant 0 : index
      %624 = vector.load %arg32[%c0_257, %c0_258] : memref<32x32xf32, #tpu.memory_space<vmem>>, vector<32x32xf32>
      tpu.vector_store %arg32[%c0_257, %c0_258], %623 {strides = array<i32>} : memref<32x32xf32, #tpu.memory_space<vmem>>, vector<32x32xf32>,
    } else {
    }
    %c0 = arith.constant 0 : index
    %c0_1 = arith.constant 0 : index
    %3 = vector.load %arg32[%c0, %c0_1] : memref<32x32xf32, #tpu.memory_space<vmem>>, vector<32x32xf32>
    %c0_2 = arith.constant 0 : index
    %c0_3 = arith.constant 0 : index
    %4 = vector.load %arg2[%c0_2, %c0_3] : memref<32x32xf32, #tpu.memory_space<vmem>>, vector<32x32xf32>
    %5 = arith.addf %3, %4 : vector<32x32xf32>
    %6 = arith.truncf %5 : vector<32x32xf32> to vector<32x32xbf16>
    %c0_4 = arith.constant 0 : index
    %c0_5 = arith.constant 0 : index
    %c0_6 = arith.constant 0 : index
    %7 = vector.load %arg5[%c0_4, %c0_5, %c0_6] : memref<1x32x64xbf16, #tpu.memory_space<vmem>>, vector<1x32x64xbf16>
    %8 = vector.shape_cast %7 : vector<1x32x64xbf16> to vector<32x64xbf16>
    %cst = arith.constant dense<0.000000e+00> : vector<32x64xf32>
    %9 = tpu.matmul %6, %8, %cst {dimension_numbers = #tpu.dot_dimension_numbers<[1], [0], [0], [1], [0, 0, 1, 1], [], []>} : vector<32x32xbf16>, vector<32x64xbf16>, vector<32x64xf32> -> vector<32x64xf32>
    %c0_7 = arith.constant 0 : index
    %c0_8 = arith.constant 0 : index
    %c0_9 = arith.constant 0 : index
    %10 = vector.load %arg6[%c0_7, %c0_8, %c0_9] : memref<1x1x64xf32, #tpu.memory_space<vmem>>, vector<1x1x64xf32>
    %11 = vector.shape_cast %10 : vector<1x1x64xf32> to vector<1x64xf32>
    %12 = vector.broadcast %11 : vector<1x64xf32> to vector<32x64xf32>
    %13 = arith.addf %9, %12 : vector<32x64xf32>
    %14 = arith.truncf %3 : vector<32x32xf32> to vector<32x32xbf16>
    %c0_10 = arith.constant 0 : index
    %c0_11 = arith.constant 0 : index
    %c0_12 = arith.constant 0 : index
    %15 = vector.load %arg7[%c0_10, %c0_11, %c0_12] : memref<1x32x32xbf16, #tpu.memory_space<vmem>>, vector<1x32x32xbf16>
    %16 = vector.shape_cast %15 : vector<1x32x32xbf16> to vector<32x32xbf16>
    %cst_13 = arith.constant dense<0.000000e+00> : vector<32x32xf32>
    %17 = tpu.matmul %14, %16, %cst_13 {dimension_numbers = #tpu.dot_dimension_numbers<[1], [0], [0], [1], [0, 0, 1, 1], [], []>} : vector<32x32xbf16>, vector<32x32xbf16>, vector<32x32xf32> -> vector<32x32xf32>
    %c0_14 = arith.constant 0 : index
    %c0_15 = arith.constant 0 : index
    %c0_16 = arith.constant 0 : index
    %18 = vector.load %arg8[%c0_14, %c0_15, %c0_16] : memref<1x1x32xf32, #tpu.memory_space<vmem>>, vector<1x1x32xf32>
    %19 = vector.shape_cast %18 : vector<1x1x32xf32> to vector<1x32xf32>
    %20 = vector.broadcast %19 : vector<1x32xf32> to vector<32x32xf32>
    %21 = arith.addf %17, %20 : vector<32x32xf32>
    %22 = vector.extract_strided_slice %13 {offsets = [0, 0], sizes = [32, 32], strides = [1, 1]} : vector<32x64xf32> to vector<32x32xf32>
    %23 = vector.extract_strided_slice %13 {offsets = [0, 32], sizes = [32, 32], strides = [1, 1]} : vector<32x64xf32> to vector<32x32xf32>
    %24 = tpu.iota {dimensions = array<i32: 1>} : vector<1x16xi32>
    %c10_i32 = arith.constant 10 : i32
    %25 = vector.broadcast %c10_i32 : i32 to vector<1x16xi32>
    %26 = arith.cmpi slt, %24, %25 : vector<1x16xi32>
    %cst_17 = arith.constant 0.000000e+00 : f32
    %cst_18 = arith.constant -1.000000e+30 : f32
    %27 = vector.broadcast %cst_17 : f32 to vector<1x16xf32>
    %28 = vector.broadcast %cst_18 : f32 to vector<1x16xf32>
    %29 = arith.select %26, %27, %28 : vector<1x16xi1>, vector<1x16xf32>
    %30 = vector.extract_strided_slice %22 {offsets = [0, 0], sizes = [16, 32], strides = [1, 1]} : vector<32x32xf32> to vector<16x32xf32>
    %31 = vector.extract_strided_slice %23 {offsets = [0, 0], sizes = [16, 32], strides = [1, 1]} : vector<32x32xf32> to vector<16x32xf32>
    %32 = vector.extract_strided_slice %21 {offsets = [0, 0], sizes = [16, 32], strides = [1, 1]} : vector<32x32xf32> to vector<16x32xf32>
    %33 = vector.extract_strided_slice %30 {offsets = [0, 0], sizes = [16, 8], strides = [1, 1]} : vector<16x32xf32> to vector<16x8xf32>
    %34 = arith.truncf %33 : vector<16x8xf32> to vector<16x8xbf16>
    %35 = vector.extract_strided_slice %31 {offsets = [0, 0], sizes = [16, 8], strides = [1, 1]} : vector<16x32xf32> to vector<16x8xf32>
    %36 = arith.truncf %35 : vector<16x8xf32> to vector<16x8xbf16>
    %37 = vector.extract_strided_slice %32 {offsets = [0, 0], sizes = [16, 8], strides = [1, 1]} : vector<16x32xf32> to vector<16x8xf32>
    %38 = arith.truncf %37 : vector<16x8xf32> to vector<16x8xbf16>
    %cst_19 = arith.constant dense<0.000000e+00> : vector<16x16xf32>
    %39 = tpu.matmul %34, %36, %cst_19 {dimension_numbers = #tpu.dot_dimension_numbers<[1], [1], [0], [0], [0, 0, 1, 0], [], []>} : vector<16x8xbf16>, vector<16x8xbf16>, vector<16x16xf32> -> vector<16x16xf32>
    %40 = vector.broadcast %29 : vector<1x16xf32> to vector<16x16xf32>
    %41 = arith.addf %39, %40 : vector<16x16xf32>
    %cst_20 = arith.constant dense<0xFF800000> : vector<16xf32>
    %42 = vector.multi_reduction <maximumf>, %41, %cst_20 [1] : vector<16x16xf32> to vector<16xf32>
    %43 = vector.shape_cast %42 : vector<16xf32> to vector<16x1xf32>
    %44 = vector.broadcast %43 : vector<16x1xf32> to vector<16x16xf32>
    %45 = arith.subf %41, %44 : vector<16x16xf32>
    %46 = math.exp %45 : vector<16x16xf32>
    %cst_21 = arith.constant dense<0.000000e+00> : vector<16xf32>
    %47 = vector.multi_reduction <add>, %46, %cst_21 [1] : vector<16x16xf32> to vector<16xf32>
    %48 = vector.shape_cast %47 : vector<16xf32> to vector<16x1xf32>
    %49 = tpu.reciprocal %48 {approx = true} : vector<16x1xf32> -> vector<16x1xf32>
    %50 = vector.broadcast %49 : vector<16x1xf32> to vector<16x16xf32>
    %51 = arith.mulf %46, %50 : vector<16x16xf32>
    %52 = arith.truncf %51 : vector<16x16xf32> to vector<16x16xbf16>
    %cst_22 = arith.constant dense<0.000000e+00> : vector<16x8xf32>
    %53 = tpu.matmul %52, %38, %cst_22 {dimension_numbers = #tpu.dot_dimension_numbers<[1], [0], [0], [1], [0, 0, 1, 1], [], []>} : vector<16x16xbf16>, vector<16x8xbf16>, vector<16x8xf32> -> vector<16x8xf32>
    %54 = arith.truncf %53 : vector<16x8xf32> to vector<16x8xbf16>
    %c0_23 = arith.constant 0 : index
    %c0_24 = arith.constant 0 : index
    %c0_25 = arith.constant 0 : index
    %c0_26 = arith.constant 0 : index
    %55 = vector.load %arg9[%c0_23, %c0_24, %c0_25, %c0_26] : memref<1x4x8x32xbf16, #tpu.memory_space<vmem>>, vector<1x1x8x32xbf16>
    %56 = vector.shape_cast %55 : vector<1x1x8x32xbf16> to vector<8x32xbf16>
    %cst_27 = arith.constant dense<0.000000e+00> : vector<16x32xf32>
    %57 = tpu.matmul %54, %56, %cst_27 {dimension_numbers = #tpu.dot_dimension_numbers<[1], [0], [0], [1], [0, 0, 1, 1], [], []>} : vector<16x8xbf16>, vector<8x32xbf16>, vector<16x32xf32> -> vector<16x32xf32>
    %58 = vector.extract_strided_slice %30 {offsets = [0, 8], sizes = [16, 8], strides = [1, 1]} : vector<16x32xf32> to vector<16x8xf32>
    %59 = arith.truncf %58 : vector<16x8xf32> to vector<16x8xbf16>
    %60 = vector.extract_strided_slice %31 {offsets = [0, 8], sizes = [16, 8], strides = [1, 1]} : vector<16x32xf32> to vector<16x8xf32>
    %61 = arith.truncf %60 : vector<16x8xf32> to vector<16x8xbf16>
    %62 = vector.extract_strided_slice %32 {offsets = [0, 8], sizes = [16, 8], strides = [1, 1]} : vector<16x32xf32> to vector<16x8xf32>
    %63 = arith.truncf %62 : vector<16x8xf32> to vector<16x8xbf16>
    %cst_28 = arith.constant dense<0.000000e+00> : vector<16x16xf32>
    %64 = tpu.matmul %59, %61, %cst_28 {dimension_numbers = #tpu.dot_dimension_numbers<[1], [1], [0], [0], [0, 0, 1, 0], [], []>} : vector<16x8xbf16>, vector<16x8xbf16>, vector<16x16xf32> -> vector<16x16xf32>
    %65 = vector.broadcast %29 : vector<1x16xf32> to vector<16x16xf32>
    %66 = arith.addf %64, %65 : vector<16x16xf32>
    %cst_29 = arith.constant dense<0xFF800000> : vector<16xf32>
    %67 = vector.multi_reduction <maximumf>, %66, %cst_29 [1] : vector<16x16xf32> to vector<16xf32>
    %68 = vector.shape_cast %67 : vector<16xf32> to vector<16x1xf32>
    %69 = vector.broadcast %68 : vector<16x1xf32> to vector<16x16xf32>
    %70 = arith.subf %66, %69 : vector<16x16xf32>
    %71 = math.exp %70 : vector<16x16xf32>
    %cst_30 = arith.constant dense<0.000000e+00> : vector<16xf32>
    %72 = vector.multi_reduction <add>, %71, %cst_30 [1] : vector<16x16xf32> to vector<16xf32>
    %73 = vector.shape_cast %72 : vector<16xf32> to vector<16x1xf32>
    %74 = tpu.reciprocal %73 {approx = true} : vector<16x1xf32> -> vector<16x1xf32>
    %75 = vector.broadcast %74 : vector<16x1xf32> to vector<16x16xf32>
    %76 = arith.mulf %71, %75 : vector<16x16xf32>
    %77 = arith.truncf %76 : vector<16x16xf32> to vector<16x16xbf16>
    %cst_31 = arith.constant dense<0.000000e+00> : vector<16x8xf32>
    %78 = tpu.matmul %77, %63, %cst_31 {dimension_numbers = #tpu.dot_dimension_numbers<[1], [0], [0], [1], [0, 0, 1, 1], [], []>} : vector<16x16xbf16>, vector<16x8xbf16>, vector<16x8xf32> -> vector<16x8xf32>
    %79 = arith.truncf %78 : vector<16x8xf32> to vector<16x8xbf16>
    %c0_32 = arith.constant 0 : index
    %c1 = arith.constant 1 : index
    %c0_33 = arith.constant 0 : index
    %c0_34 = arith.constant 0 : index
    %80 = vector.load %arg9[%c0_32, %c1, %c0_33, %c0_34] : memref<1x4x8x32xbf16, #tpu.memory_space<vmem>>, vector<1x1x8x32xbf16>
    %81 = vector.shape_cast %80 : vector<1x1x8x32xbf16> to vector<8x32xbf16>
    %cst_35 = arith.constant dense<0.000000e+00> : vector<16x32xf32>
    %82 = tpu.matmul %79, %81, %cst_35 {dimension_numbers = #tpu.dot_dimension_numbers<[1], [0], [0], [1], [0, 0, 1, 1], [], []>} : vector<16x8xbf16>, vector<8x32xbf16>, vector<16x32xf32> -> vector<16x32xf32>
    %83 = arith.addf %57, %82 : vector<16x32xf32>
    %84 = vector.extract_strided_slice %30 {offsets = [0, 16], sizes = [16, 8], strides = [1, 1]} : vector<16x32xf32> to vector<16x8xf32>
    %85 = arith.truncf %84 : vector<16x8xf32> to vector<16x8xbf16>
    %86 = vector.extract_strided_slice %31 {offsets = [0, 16], sizes = [16, 8], strides = [1, 1]} : vector<16x32xf32> to vector<16x8xf32>
    %87 = arith.truncf %86 : vector<16x8xf32> to vector<16x8xbf16>
    %88 = vector.extract_strided_slice %32 {offsets = [0, 16], sizes = [16, 8], strides = [1, 1]} : vector<16x32xf32> to vector<16x8xf32>
    %89 = arith.truncf %88 : vector<16x8xf32> to vector<16x8xbf16>
    %cst_36 = arith.constant dense<0.000000e+00> : vector<16x16xf32>
    %90 = tpu.matmul %85, %87, %cst_36 {dimension_numbers = #tpu.dot_dimension_numbers<[1], [1], [0], [0], [0, 0, 1, 0], [], []>} : vector<16x8xbf16>, vector<16x8xbf16>, vector<16x16xf32> -> vector<16x16xf32>
    %91 = vector.broadcast %29 : vector<1x16xf32> to vector<16x16xf32>
    %92 = arith.addf %90, %91 : vector<16x16xf32>
    %cst_37 = arith.constant dense<0xFF800000> : vector<16xf32>
    %93 = vector.multi_reduction <maximumf>, %92, %cst_37 [1] : vector<16x16xf32> to vector<16xf32>
    %94 = vector.shape_cast %93 : vector<16xf32> to vector<16x1xf32>
    %95 = vector.broadcast %94 : vector<16x1xf32> to vector<16x16xf32>
    %96 = arith.subf %92, %95 : vector<16x16xf32>
    %97 = math.exp %96 : vector<16x16xf32>
    %cst_38 = arith.constant dense<0.000000e+00> : vector<16xf32>
    %98 = vector.multi_reduction <add>, %97, %cst_38 [1] : vector<16x16xf32> to vector<16xf32>
    %99 = vector.shape_cast %98 : vector<16xf32> to vector<16x1xf32>
    %100 = tpu.reciprocal %99 {approx = true} : vector<16x1xf32> -> vector<16x1xf32>
    %101 = vector.broadcast %100 : vector<16x1xf32> to vector<16x16xf32>
    %102 = arith.mulf %97, %101 : vector<16x16xf32>
    %103 = arith.truncf %102 : vector<16x16xf32> to vector<16x16xbf16>
    %cst_39 = arith.constant dense<0.000000e+00> : vector<16x8xf32>
    %104 = tpu.matmul %103, %89, %cst_39 {dimension_numbers = #tpu.dot_dimension_numbers<[1], [0], [0], [1], [0, 0, 1, 1], [], []>} : vector<16x16xbf16>, vector<16x8xbf16>, vector<16x8xf32> -> vector<16x8xf32>
    %105 = arith.truncf %104 : vector<16x8xf32> to vector<16x8xbf16>
    %c0_40 = arith.constant 0 : index
    %c2 = arith.constant 2 : index
    %c0_41 = arith.constant 0 : index
    %c0_42 = arith.constant 0 : index
    %106 = vector.load %arg9[%c0_40, %c2, %c0_41, %c0_42] : memref<1x4x8x32xbf16, #tpu.memory_space<vmem>>, vector<1x1x8x32xbf16>
    %107 = vector.shape_cast %106 : vector<1x1x8x32xbf16> to vector<8x32xbf16>
    %cst_43 = arith.constant dense<0.000000e+00> : vector<16x32xf32>
    %108 = tpu.matmul %105, %107, %cst_43 {dimension_numbers = #tpu.dot_dimension_numbers<[1], [0], [0], [1], [0, 0, 1, 1], [], []>} : vector<16x8xbf16>, vector<8x32xbf16>, vector<16x32xf32> -> vector<16x32xf32>
    %109 = arith.addf %83, %108 : vector<16x32xf32>
    %110 = vector.extract_strided_slice %30 {offsets = [0, 24], sizes = [16, 8], strides = [1, 1]} : vector<16x32xf32> to vector<16x8xf32>
    %111 = arith.truncf %110 : vector<16x8xf32> to vector<16x8xbf16>
    %112 = vector.extract_strided_slice %31 {offsets = [0, 24], sizes = [16, 8], strides = [1, 1]} : vector<16x32xf32> to vector<16x8xf32>
    %113 = arith.truncf %112 : vector<16x8xf32> to vector<16x8xbf16>
    %114 = vector.extract_strided_slice %32 {offsets = [0, 24], sizes = [16, 8], strides = [1, 1]} : vector<16x32xf32> to vector<16x8xf32>
    %115 = arith.truncf %114 : vector<16x8xf32> to vector<16x8xbf16>
    %cst_44 = arith.constant dense<0.000000e+00> : vector<16x16xf32>
    %116 = tpu.matmul %111, %113, %cst_44 {dimension_numbers = #tpu.dot_dimension_numbers<[1], [1], [0], [0], [0, 0, 1, 0], [], []>} : vector<16x8xbf16>, vector<16x8xbf16>, vector<16x16xf32> -> vector<16x16xf32>
    %117 = vector.broadcast %29 : vector<1x16xf32> to vector<16x16xf32>
    %118 = arith.addf %116, %117 : vector<16x16xf32>
    %cst_45 = arith.constant dense<0xFF800000> : vector<16xf32>
    %119 = vector.multi_reduction <maximumf>, %118, %cst_45 [1] : vector<16x16xf32> to vector<16xf32>
    %120 = vector.shape_cast %119 : vector<16xf32> to vector<16x1xf32>
    %121 = vector.broadcast %120 : vector<16x1xf32> to vector<16x16xf32>
    %122 = arith.subf %118, %121 : vector<16x16xf32>
    %123 = math.exp %122 : vector<16x16xf32>
    %cst_46 = arith.constant dense<0.000000e+00> : vector<16xf32>
    %124 = vector.multi_reduction <add>, %123, %cst_46 [1] : vector<16x16xf32> to vector<16xf32>
    %125 = vector.shape_cast %124 : vector<16xf32> to vector<16x1xf32>
    %126 = tpu.reciprocal %125 {approx = true} : vector<16x1xf32> -> vector<16x1xf32>
    %127 = vector.broadcast %126 : vector<16x1xf32> to vector<16x16xf32>
    %128 = arith.mulf %123, %127 : vector<16x16xf32>
    %129 = arith.truncf %128 : vector<16x16xf32> to vector<16x16xbf16>
    %cst_47 = arith.constant dense<0.000000e+00> : vector<16x8xf32>
    %130 = tpu.matmul %129, %115, %cst_47 {dimension_numbers = #tpu.dot_dimension_numbers<[1], [0], [0], [1], [0, 0, 1, 1], [], []>} : vector<16x16xbf16>, vector<16x8xbf16>, vector<16x8xf32> -> vector<16x8xf32>
    %131 = arith.truncf %130 : vector<16x8xf32> to vector<16x8xbf16>
    %c0_48 = arith.constant 0 : index
    %c3 = arith.constant 3 : index
    %c0_49 = arith.constant 0 : index
    %c0_50 = arith.constant 0 : index
    %132 = vector.load %arg9[%c0_48, %c3, %c0_49, %c0_50] : memref<1x4x8x32xbf16, #tpu.memory_space<vmem>>, vector<1x1x8x32xbf16>
    %133 = vector.shape_cast %132 : vector<1x1x8x32xbf16> to vector<8x32xbf16>
    %cst_51 = arith.constant dense<0.000000e+00> : vector<16x32xf32>
    %134 = tpu.matmul %131, %133, %cst_51 {dimension_numbers = #tpu.dot_dimension_numbers<[1], [0], [0], [1], [0, 0, 1, 1], [], []>} : vector<16x8xbf16>, vector<8x32xbf16>, vector<16x32xf32> -> vector<16x32xf32>
    %135 = arith.addf %109, %134 : vector<16x32xf32>
    %136 = vector.extract_strided_slice %22 {offsets = [16, 0], sizes = [16, 32], strides = [1, 1]} : vector<32x32xf32> to vector<16x32xf32>
    %137 = vector.extract_strided_slice %23 {offsets = [16, 0], sizes = [16, 32], strides = [1, 1]} : vector<32x32xf32> to vector<16x32xf32>
    %138 = vector.extract_strided_slice %21 {offsets = [16, 0], sizes = [16, 32], strides = [1, 1]} : vector<32x32xf32> to vector<16x32xf32>
    %139 = vector.extract_strided_slice %136 {offsets = [0, 0], sizes = [16, 8], strides = [1, 1]} : vector<16x32xf32> to vector<16x8xf32>
    %140 = arith.truncf %139 : vector<16x8xf32> to vector<16x8xbf16>
    %141 = vector.extract_strided_slice %137 {offsets = [0, 0], sizes = [16, 8], strides = [1, 1]} : vector<16x32xf32> to vector<16x8xf32>
    %142 = arith.truncf %141 : vector<16x8xf32> to vector<16x8xbf16>
    %143 = vector.extract_strided_slice %138 {offsets = [0, 0], sizes = [16, 8], strides = [1, 1]} : vector<16x32xf32> to vector<16x8xf32>
    %144 = arith.truncf %143 : vector<16x8xf32> to vector<16x8xbf16>
    %cst_52 = arith.constant dense<0.000000e+00> : vector<16x16xf32>
    %145 = tpu.matmul %140, %142, %cst_52 {dimension_numbers = #tpu.dot_dimension_numbers<[1], [1], [0], [0], [0, 0, 1, 0], [], []>} : vector<16x8xbf16>, vector<16x8xbf16>, vector<16x16xf32> -> vector<16x16xf32>
    %146 = vector.broadcast %29 : vector<1x16xf32> to vector<16x16xf32>
    %147 = arith.addf %145, %146 : vector<16x16xf32>
    %cst_53 = arith.constant dense<0xFF800000> : vector<16xf32>
    %148 = vector.multi_reduction <maximumf>, %147, %cst_53 [1] : vector<16x16xf32> to vector<16xf32>
    %149 = vector.shape_cast %148 : vector<16xf32> to vector<16x1xf32>
    %150 = vector.broadcast %149 : vector<16x1xf32> to vector<16x16xf32>
    %151 = arith.subf %147, %150 : vector<16x16xf32>
    %152 = math.exp %151 : vector<16x16xf32>
    %cst_54 = arith.constant dense<0.000000e+00> : vector<16xf32>
    %153 = vector.multi_reduction <add>, %152, %cst_54 [1] : vector<16x16xf32> to vector<16xf32>
    %154 = vector.shape_cast %153 : vector<16xf32> to vector<16x1xf32>
    %155 = tpu.reciprocal %154 {approx = true} : vector<16x1xf32> -> vector<16x1xf32>
    %156 = vector.broadcast %155 : vector<16x1xf32> to vector<16x16xf32>
    %157 = arith.mulf %152, %156 : vector<16x16xf32>
    %158 = arith.truncf %157 : vector<16x16xf32> to vector<16x16xbf16>
    %cst_55 = arith.constant dense<0.000000e+00> : vector<16x8xf32>
    %159 = tpu.matmul %158, %144, %cst_55 {dimension_numbers = #tpu.dot_dimension_numbers<[1], [0], [0], [1], [0, 0, 1, 1], [], []>} : vector<16x16xbf16>, vector<16x8xbf16>, vector<16x8xf32> -> vector<16x8xf32>
    %160 = arith.truncf %159 : vector<16x8xf32> to vector<16x8xbf16>
    %c0_56 = arith.constant 0 : index
    %c0_57 = arith.constant 0 : index
    %c0_58 = arith.constant 0 : index
    %c0_59 = arith.constant 0 : index
    %161 = vector.load %arg9[%c0_56, %c0_57, %c0_58, %c0_59] : memref<1x4x8x32xbf16, #tpu.memory_space<vmem>>, vector<1x1x8x32xbf16>
    %162 = vector.shape_cast %161 : vector<1x1x8x32xbf16> to vector<8x32xbf16>
    %cst_60 = arith.constant dense<0.000000e+00> : vector<16x32xf32>
    %163 = tpu.matmul %160, %162, %cst_60 {dimension_numbers = #tpu.dot_dimension_numbers<[1], [0], [0], [1], [0, 0, 1, 1], [], []>} : vector<16x8xbf16>, vector<8x32xbf16>, vector<16x32xf32> -> vector<16x32xf32>
    %164 = vector.extract_strided_slice %136 {offsets = [0, 8], sizes = [16, 8], strides = [1, 1]} : vector<16x32xf32> to vector<16x8xf32>
    %165 = arith.truncf %164 : vector<16x8xf32> to vector<16x8xbf16>
    %166 = vector.extract_strided_slice %137 {offsets = [0, 8], sizes = [16, 8], strides = [1, 1]} : vector<16x32xf32> to vector<16x8xf32>
    %167 = arith.truncf %166 : vector<16x8xf32> to vector<16x8xbf16>
    %168 = vector.extract_strided_slice %138 {offsets = [0, 8], sizes = [16, 8], strides = [1, 1]} : vector<16x32xf32> to vector<16x8xf32>
    %169 = arith.truncf %168 : vector<16x8xf32> to vector<16x8xbf16>
    %cst_61 = arith.constant dense<0.000000e+00> : vector<16x16xf32>
    %170 = tpu.matmul %165, %167, %cst_61 {dimension_numbers = #tpu.dot_dimension_numbers<[1], [1], [0], [0], [0, 0, 1, 0], [], []>} : vector<16x8xbf16>, vector<16x8xbf16>, vector<16x16xf32> -> vector<16x16xf32>
    %171 = vector.broadcast %29 : vector<1x16xf32> to vector<16x16xf32>
    %172 = arith.addf %170, %171 : vector<16x16xf32>
    %cst_62 = arith.constant dense<0xFF800000> : vector<16xf32>
    %173 = vector.multi_reduction <maximumf>, %172, %cst_62 [1] : vector<16x16xf32> to vector<16xf32>
    %174 = vector.shape_cast %173 : vector<16xf32> to vector<16x1xf32>
    %175 = vector.broadcast %174 : vector<16x1xf32> to vector<16x16xf32>
    %176 = arith.subf %172, %175 : vector<16x16xf32>
    %177 = math.exp %176 : vector<16x16xf32>
    %cst_63 = arith.constant dense<0.000000e+00> : vector<16xf32>
    %178 = vector.multi_reduction <add>, %177, %cst_63 [1] : vector<16x16xf32> to vector<16xf32>
    %179 = vector.shape_cast %178 : vector<16xf32> to vector<16x1xf32>
    %180 = tpu.reciprocal %179 {approx = true} : vector<16x1xf32> -> vector<16x1xf32>
    %181 = vector.broadcast %180 : vector<16x1xf32> to vector<16x16xf32>
    %182 = arith.mulf %177, %181 : vector<16x16xf32>
    %183 = arith.truncf %182 : vector<16x16xf32> to vector<16x16xbf16>
    %cst_64 = arith.constant dense<0.000000e+00> : vector<16x8xf32>
    %184 = tpu.matmul %183, %169, %cst_64 {dimension_numbers = #tpu.dot_dimension_numbers<[1], [0], [0], [1], [0, 0, 1, 1], [], []>} : vector<16x16xbf16>, vector<16x8xbf16>, vector<16x8xf32> -> vector<16x8xf32>
    %185 = arith.truncf %184 : vector<16x8xf32> to vector<16x8xbf16>
    %c0_65 = arith.constant 0 : index
    %c1_66 = arith.constant 1 : index
    %c0_67 = arith.constant 0 : index
    %c0_68 = arith.constant 0 : index
    %186 = vector.load %arg9[%c0_65, %c1_66, %c0_67, %c0_68] : memref<1x4x8x32xbf16, #tpu.memory_space<vmem>>, vector<1x1x8x32xbf16>
    %187 = vector.shape_cast %186 : vector<1x1x8x32xbf16> to vector<8x32xbf16>
    %cst_69 = arith.constant dense<0.000000e+00> : vector<16x32xf32>
    %188 = tpu.matmul %185, %187, %cst_69 {dimension_numbers = #tpu.dot_dimension_numbers<[1], [0], [0], [1], [0, 0, 1, 1], [], []>} : vector<16x8xbf16>, vector<8x32xbf16>, vector<16x32xf32> -> vector<16x32xf32>
    %189 = arith.addf %163, %188 : vector<16x32xf32>
    %190 = vector.extract_strided_slice %136 {offsets = [0, 16], sizes = [16, 8], strides = [1, 1]} : vector<16x32xf32> to vector<16x8xf32>
    %191 = arith.truncf %190 : vector<16x8xf32> to vector<16x8xbf16>
    %192 = vector.extract_strided_slice %137 {offsets = [0, 16], sizes = [16, 8], strides = [1, 1]} : vector<16x32xf32> to vector<16x8xf32>
    %193 = arith.truncf %192 : vector<16x8xf32> to vector<16x8xbf16>
    %194 = vector.extract_strided_slice %138 {offsets = [0, 16], sizes = [16, 8], strides = [1, 1]} : vector<16x32xf32> to vector<16x8xf32>
    %195 = arith.truncf %194 : vector<16x8xf32> to vector<16x8xbf16>
    %cst_70 = arith.constant dense<0.000000e+00> : vector<16x16xf32>
    %196 = tpu.matmul %191, %193, %cst_70 {dimension_numbers = #tpu.dot_dimension_numbers<[1], [1], [0], [0], [0, 0, 1, 0], [], []>} : vector<16x8xbf16>, vector<16x8xbf16>, vector<16x16xf32> -> vector<16x16xf32>
    %197 = vector.broadcast %29 : vector<1x16xf32> to vector<16x16xf32>
    %198 = arith.addf %196, %197 : vector<16x16xf32>
    %cst_71 = arith.constant dense<0xFF800000> : vector<16xf32>
    %199 = vector.multi_reduction <maximumf>, %198, %cst_71 [1] : vector<16x16xf32> to vector<16xf32>
    %200 = vector.shape_cast %199 : vector<16xf32> to vector<16x1xf32>
    %201 = vector.broadcast %200 : vector<16x1xf32> to vector<16x16xf32>
    %202 = arith.subf %198, %201 : vector<16x16xf32>
    %203 = math.exp %202 : vector<16x16xf32>
    %cst_72 = arith.constant dense<0.000000e+00> : vector<16xf32>
    %204 = vector.multi_reduction <add>, %203, %cst_72 [1] : vector<16x16xf32> to vector<16xf32>
    %205 = vector.shape_cast %204 : vector<16xf32> to vector<16x1xf32>
    %206 = tpu.reciprocal %205 {approx = true} : vector<16x1xf32> -> vector<16x1xf32>
    %207 = vector.broadcast %206 : vector<16x1xf32> to vector<16x16xf32>
    %208 = arith.mulf %203, %207 : vector<16x16xf32>
    %209 = arith.truncf %208 : vector<16x16xf32> to vector<16x16xbf16>
    %cst_73 = arith.constant dense<0.000000e+00> : vector<16x8xf32>
    %210 = tpu.matmul %209, %195, %cst_73 {dimension_numbers = #tpu.dot_dimension_numbers<[1], [0], [0], [1], [0, 0, 1, 1], [], []>} : vector<16x16xbf16>, vector<16x8xbf16>, vector<16x8xf32> -> vector<16x8xf32>
    %211 = arith.truncf %210 : vector<16x8xf32> to vector<16x8xbf16>
    %c0_74 = arith.constant 0 : index
    %c2_75 = arith.constant 2 : index
    %c0_76 = arith.constant 0 : index
    %c0_77 = arith.constant 0 : index
    %212 = vector.load %arg9[%c0_74, %c2_75, %c0_76, %c0_77] : memref<1x4x8x32xbf16, #tpu.memory_space<vmem>>, vector<1x1x8x32xbf16>
    %213 = vector.shape_cast %212 : vector<1x1x8x32xbf16> to vector<8x32xbf16>
    %cst_78 = arith.constant dense<0.000000e+00> : vector<16x32xf32>
    %214 = tpu.matmul %211, %213, %cst_78 {dimension_numbers = #tpu.dot_dimension_numbers<[1], [0], [0], [1], [0, 0, 1, 1], [], []>} : vector<16x8xbf16>, vector<8x32xbf16>, vector<16x32xf32> -> vector<16x32xf32>
    %215 = arith.addf %189, %214 : vector<16x32xf32>
    %216 = vector.extract_strided_slice %136 {offsets = [0, 24], sizes = [16, 8], strides = [1, 1]} : vector<16x32xf32> to vector<16x8xf32>
    %217 = arith.truncf %216 : vector<16x8xf32> to vector<16x8xbf16>
    %218 = vector.extract_strided_slice %137 {offsets = [0, 24], sizes = [16, 8], strides = [1, 1]} : vector<16x32xf32> to vector<16x8xf32>
    %219 = arith.truncf %218 : vector<16x8xf32> to vector<16x8xbf16>
    %220 = vector.extract_strided_slice %138 {offsets = [0, 24], sizes = [16, 8], strides = [1, 1]} : vector<16x32xf32> to vector<16x8xf32>
    %221 = arith.truncf %220 : vector<16x8xf32> to vector<16x8xbf16>
    %cst_79 = arith.constant dense<0.000000e+00> : vector<16x16xf32>
    %222 = tpu.matmul %217, %219, %cst_79 {dimension_numbers = #tpu.dot_dimension_numbers<[1], [1], [0], [0], [0, 0, 1, 0], [], []>} : vector<16x8xbf16>, vector<16x8xbf16>, vector<16x16xf32> -> vector<16x16xf32>
    %223 = vector.broadcast %29 : vector<1x16xf32> to vector<16x16xf32>
    %224 = arith.addf %222, %223 : vector<16x16xf32>
    %cst_80 = arith.constant dense<0xFF800000> : vector<16xf32>
    %225 = vector.multi_reduction <maximumf>, %224, %cst_80 [1] : vector<16x16xf32> to vector<16xf32>
    %226 = vector.shape_cast %225 : vector<16xf32> to vector<16x1xf32>
    %227 = vector.broadcast %226 : vector<16x1xf32> to vector<16x16xf32>
    %228 = arith.subf %224, %227 : vector<16x16xf32>
    %229 = math.exp %228 : vector<16x16xf32>
    %cst_81 = arith.constant dense<0.000000e+00> : vector<16xf32>
    %230 = vector.multi_reduction <add>, %229, %cst_81 [1] : vector<16x16xf32> to vector<16xf32>
    %231 = vector.shape_cast %230 : vector<16xf32> to vector<16x1xf32>
    %232 = tpu.reciprocal %231 {approx = true} : vector<16x1xf32> -> vector<16x1xf32>
    %233 = vector.broadcast %232 : vector<16x1xf32> to vector<16x16xf32>
    %234 = arith.mulf %229, %233 : vector<16x16xf32>
    %235 = arith.truncf %234 : vector<16x16xf32> to vector<16x16xbf16>
    %cst_82 = arith.constant dense<0.000000e+00> : vector<16x8xf32>
    %236 = tpu.matmul %235, %221, %cst_82 {dimension_numbers = #tpu.dot_dimension_numbers<[1], [0], [0], [1], [0, 0, 1, 1], [], []>} : vector<16x16xbf16>, vector<16x8xbf16>, vector<16x8xf32> -> vector<16x8xf32>
    %237 = arith.truncf %236 : vector<16x8xf32> to vector<16x8xbf16>
    %c0_83 = arith.constant 0 : index
    %c3_84 = arith.constant 3 : index
    %c0_85 = arith.constant 0 : index
    %c0_86 = arith.constant 0 : index
    %238 = vector.load %arg9[%c0_83, %c3_84, %c0_85, %c0_86] : memref<1x4x8x32xbf16, #tpu.memory_space<vmem>>, vector<1x1x8x32xbf16>
    %239 = vector.shape_cast %238 : vector<1x1x8x32xbf16> to vector<8x32xbf16>
    %cst_87 = arith.constant dense<0.000000e+00> : vector<16x32xf32>
    %240 = tpu.matmul %237, %239, %cst_87 {dimension_numbers = #tpu.dot_dimension_numbers<[1], [0], [0], [1], [0, 0, 1, 1], [], []>} : vector<16x8xbf16>, vector<8x32xbf16>, vector<16x32xf32> -> vector<16x32xf32>
    %241 = arith.addf %215, %240 : vector<16x32xf32>
    %242 = tpu.concatenate %135, %241 in 0 : vector<16x32xf32>, vector<16x32xf32> -> vector<32x32xf32>
    %c0_88 = arith.constant 0 : index
    %c0_89 = arith.constant 0 : index
    %c0_90 = arith.constant 0 : index
    %243 = vector.load %arg10[%c0_88, %c0_89, %c0_90] : memref<1x1x32xf32, #tpu.memory_space<vmem>>, vector<1x1x32xf32>
    %244 = vector.shape_cast %243 : vector<1x1x32xf32> to vector<1x32xf32>
    %245 = vector.broadcast %244 : vector<1x32xf32> to vector<32x32xf32>
    %246 = arith.addf %242, %245 : vector<32x32xf32>
    %247 = arith.addf %3, %246 : vector<32x32xf32>
    %c0_91 = arith.constant 0 : index
    %c0_92 = arith.constant 0 : index
    %c0_93 = arith.constant 0 : index
    %248 = vector.load %arg23[%c0_91, %c0_92, %c0_93] : memref<1x1x32xf32, #tpu.memory_space<vmem>>, vector<1x1x32xf32>
    %249 = vector.shape_cast %248 : vector<1x1x32xf32> to vector<1x32xf32>
    %c0_94 = arith.constant 0 : index
    %c0_95 = arith.constant 0 : index
    %c0_96 = arith.constant 0 : index
    %250 = vector.load %arg24[%c0_94, %c0_95, %c0_96] : memref<1x1x32xf32, #tpu.memory_space<vmem>>, vector<1x1x32xf32>
    %251 = vector.shape_cast %250 : vector<1x1x32xf32> to vector<1x32xf32>
    %cst_97 = arith.constant dense<0.000000e+00> : vector<32xf32>
    %252 = vector.multi_reduction <add>, %247, %cst_97 [1] : vector<32x32xf32> to vector<32xf32>
    %253 = vector.shape_cast %252 : vector<32xf32> to vector<32x1xf32>
    %cst_98 = arith.constant 3.200000e+01 : f32
    %254 = vector.broadcast %cst_98 : f32 to vector<32x1xf32>
    %255 = arith.divf %253, %254 : vector<32x1xf32>
    %256 = vector.broadcast %255 : vector<32x1xf32> to vector<32x32xf32>
    %257 = arith.subf %247, %256 : vector<32x32xf32>
    %258 = arith.mulf %257, %257 : vector<32x32xf32>
    %cst_99 = arith.constant dense<0.000000e+00> : vector<32xf32>
    %259 = vector.multi_reduction <add>, %258, %cst_99 [1] : vector<32x32xf32> to vector<32xf32>
    %260 = vector.shape_cast %259 : vector<32xf32> to vector<32x1xf32>
    %cst_100 = arith.constant 3.200000e+01 : f32
    %261 = vector.broadcast %cst_100 : f32 to vector<32x1xf32>
    %262 = arith.divf %260, %261 : vector<32x1xf32>
    %263 = vector.broadcast %255 : vector<32x1xf32> to vector<32x32xf32>
    %264 = arith.subf %247, %263 : vector<32x32xf32>
    %cst_101 = arith.constant 9.99999974E-6 : f32
    %265 = vector.broadcast %cst_101 : f32 to vector<32x1xf32>
    %266 = arith.addf %262, %265 : vector<32x1xf32>
    %267 = math.rsqrt %266 : vector<32x1xf32>
    %268 = vector.broadcast %267 : vector<32x1xf32> to vector<32x32xf32>
    %269 = arith.mulf %264, %268 : vector<32x32xf32>
    %270 = vector.broadcast %249 : vector<1x32xf32> to vector<32x32xf32>
    %271 = arith.mulf %269, %270 : vector<32x32xf32>
    %272 = vector.broadcast %251 : vector<1x32xf32> to vector<32x32xf32>
    %273 = arith.addf %271, %272 : vector<32x32xf32>
    %274 = arith.addf %273, %4 : vector<32x32xf32>
    %275 = arith.truncf %274 : vector<32x32xf32> to vector<32x32xbf16>
    %c0_102 = arith.constant 0 : index
    %c0_103 = arith.constant 0 : index
    %c0_104 = arith.constant 0 : index
    %276 = vector.load %arg11[%c0_102, %c0_103, %c0_104] : memref<1x32x32xbf16, #tpu.memory_space<vmem>>, vector<1x32x32xbf16>
    %277 = vector.shape_cast %276 : vector<1x32x32xbf16> to vector<32x32xbf16>
    %cst_105 = arith.constant dense<0.000000e+00> : vector<32x32xf32>
    %278 = tpu.matmul %275, %277, %cst_105 {dimension_numbers = #tpu.dot_dimension_numbers<[1], [0], [0], [1], [0, 0, 1, 1], [], []>} : vector<32x32xbf16>, vector<32x32xbf16>, vector<32x32xf32> -> vector<32x32xf32>
    %c0_106 = arith.constant 0 : index
    %c0_107 = arith.constant 0 : index
    %c0_108 = arith.constant 0 : index
    %279 = vector.load %arg12[%c0_106, %c0_107, %c0_108] : memref<1x1x32xf32, #tpu.memory_space<vmem>>, vector<1x1x32xf32>
    %280 = vector.shape_cast %279 : vector<1x1x32xf32> to vector<1x32xf32>
    %281 = vector.broadcast %280 : vector<1x32xf32> to vector<32x32xf32>
    %282 = arith.addf %278, %281 : vector<32x32xf32>
    %c0_109 = arith.constant 0 : index
    %c0_110 = arith.constant 0 : index
    %283 = vector.load %arg4[%c0_109, %c0_110] : memref<48x32xbf16, #tpu.memory_space<vmem>>, vector<48x32xbf16>
    %c0_111 = arith.constant 0 : index
    %c0_112 = arith.constant 0 : index
    %c0_113 = arith.constant 0 : index
    %284 = vector.load %arg13[%c0_111, %c0_112, %c0_113] : memref<1x32x32xbf16, #tpu.memory_space<vmem>>, vector<1x32x32xbf16>
    %285 = vector.shape_cast %284 : vector<1x32x32xbf16> to vector<32x32xbf16>
    %cst_114 = arith.constant dense<0.000000e+00> : vector<48x32xf32>
    %286 = tpu.matmul %283, %285, %cst_114 {dimension_numbers = #tpu.dot_dimension_numbers<[1], [0], [0], [1], [0, 0, 1, 1], [], []>} : vector<48x32xbf16>, vector<32x32xbf16>, vector<48x32xf32> -> vector<48x32xf32>
    %c0_115 = arith.constant 0 : index
    %c0_116 = arith.constant 0 : index
    %c0_117 = arith.constant 0 : index
    %287 = vector.load %arg14[%c0_115, %c0_116, %c0_117] : memref<1x1x32xf32, #tpu.memory_space<vmem>>, vector<1x1x32xf32>
    %288 = vector.shape_cast %287 : vector<1x1x32xf32> to vector<1x32xf32>
    %289 = vector.broadcast %288 : vector<1x32xf32> to vector<48x32xf32>
    %290 = arith.addf %286, %289 : vector<48x32xf32>
    %c0_118 = arith.constant 0 : index
    %c0_119 = arith.constant 0 : index
    %291 = vector.load %arg3[%c0_118, %c0_119] : memref<48x32xbf16, #tpu.memory_space<vmem>>, vector<48x32xbf16>
    %c0_120 = arith.constant 0 : index
    %c0_121 = arith.constant 0 : index
    %c0_122 = arith.constant 0 : index
    %292 = vector.load %arg15[%c0_120, %c0_121, %c0_122] : memref<1x32x32xbf16, #tpu.memory_space<vmem>>, vector<1x32x32xbf16>
    %293 = vector.shape_cast %292 : vector<1x32x32xbf16> to vector<32x32xbf16>
    %cst_123 = arith.constant dense<0.000000e+00> : vector<48x32xf32>
    %294 = tpu.matmul %291, %293, %cst_123 {dimension_numbers = #tpu.dot_dimension_numbers<[1], [0], [0], [1], [0, 0, 1, 1], [], []>} : vector<48x32xbf16>, vector<32x32xbf16>, vector<48x32xf32> -> vector<48x32xf32>
    %c0_124 = arith.constant 0 : index
    %c0_125 = arith.constant 0 : index
    %c0_126 = arith.constant 0 : index
    %295 = vector.load %arg16[%c0_124, %c0_125, %c0_126] : memref<1x1x32xf32, #tpu.memory_space<vmem>>, vector<1x1x32xf32>
    %296 = vector.shape_cast %295 : vector<1x1x32xf32> to vector<1x32xf32>
    %297 = vector.broadcast %296 : vector<1x32xf32> to vector<48x32xf32>
    %298 = arith.addf %294, %297 : vector<48x32xf32>
    %299 = tpu.iota {dimensions = array<i32: 1>} : vector<1x24xi32>
    %c23_i32 = arith.constant 23 : i32
    %300 = vector.broadcast %c23_i32 : i32 to vector<1x24xi32>
    %301 = arith.cmpi slt, %299, %300 : vector<1x24xi32>
    %cst_127 = arith.constant 0.000000e+00 : f32
    %cst_128 = arith.constant -1.000000e+30 : f32
    %302 = vector.broadcast %cst_127 : f32 to vector<1x24xf32>
    %303 = vector.broadcast %cst_128 : f32 to vector<1x24xf32>
    %304 = arith.select %301, %302, %303 : vector<1x24xi1>, vector<1x24xf32>
    %305 = vector.extract_strided_slice %282 {offsets = [0, 0], sizes = [16, 32], strides = [1, 1]} : vector<32x32xf32> to vector<16x32xf32>
    %306 = vector.extract_strided_slice %290 {offsets = [0, 0], sizes = [24, 32], strides = [1, 1]} : vector<48x32xf32> to vector<24x32xf32>
    %307 = vector.extract_strided_slice %298 {offsets = [0, 0], sizes = [24, 32], strides = [1, 1]} : vector<48x32xf32> to vector<24x32xf32>
    %308 = vector.extract_strided_slice %305 {offsets = [0, 0], sizes = [16, 8], strides = [1, 1]} : vector<16x32xf32> to vector<16x8xf32>
    %309 = arith.truncf %308 : vector<16x8xf32> to vector<16x8xbf16>
    %310 = vector.extract_strided_slice %306 {offsets = [0, 0], sizes = [24, 8], strides = [1, 1]} : vector<24x32xf32> to vector<24x8xf32>
    %311 = arith.truncf %310 : vector<24x8xf32> to vector<24x8xbf16>
    %312 = vector.extract_strided_slice %307 {offsets = [0, 0], sizes = [24, 8], strides = [1, 1]} : vector<24x32xf32> to vector<24x8xf32>
    %313 = arith.truncf %312 : vector<24x8xf32> to vector<24x8xbf16>
    %cst_129 = arith.constant dense<0.000000e+00> : vector<16x24xf32>
    %314 = tpu.matmul %309, %311, %cst_129 {dimension_numbers = #tpu.dot_dimension_numbers<[1], [1], [0], [0], [0, 0, 1, 0], [], []>} : vector<16x8xbf16>, vector<24x8xbf16>, vector<16x24xf32> -> vector<16x24xf32>
    %315 = vector.broadcast %304 : vector<1x24xf32> to vector<16x24xf32>
    %316 = arith.addf %314, %315 : vector<16x24xf32>
    %cst_130 = arith.constant dense<0xFF800000> : vector<16xf32>
    %317 = vector.multi_reduction <maximumf>, %316, %cst_130 [1] : vector<16x24xf32> to vector<16xf32>
    %318 = vector.shape_cast %317 : vector<16xf32> to vector<16x1xf32>
    %319 = vector.broadcast %318 : vector<16x1xf32> to vector<16x24xf32>
    %320 = arith.subf %316, %319 : vector<16x24xf32>
    %321 = math.exp %320 : vector<16x24xf32>
    %cst_131 = arith.constant dense<0.000000e+00> : vector<16xf32>
    %322 = vector.multi_reduction <add>, %321, %cst_131 [1] : vector<16x24xf32> to vector<16xf32>
    %323 = vector.shape_cast %322 : vector<16xf32> to vector<16x1xf32>
    %324 = tpu.reciprocal %323 {approx = true} : vector<16x1xf32> -> vector<16x1xf32>
    %325 = vector.broadcast %324 : vector<16x1xf32> to vector<16x24xf32>
    %326 = arith.mulf %321, %325 : vector<16x24xf32>
    %327 = arith.truncf %326 : vector<16x24xf32> to vector<16x24xbf16>
    %cst_132 = arith.constant dense<0.000000e+00> : vector<16x8xf32>
    %328 = tpu.matmul %327, %313, %cst_132 {dimension_numbers = #tpu.dot_dimension_numbers<[1], [0], [0], [1], [0, 0, 1, 1], [], []>} : vector<16x24xbf16>, vector<24x8xbf16>, vector<16x8xf32> -> vector<16x8xf32>
    %329 = arith.truncf %328 : vector<16x8xf32> to vector<16x8xbf16>
    %c0_133 = arith.constant 0 : index
    %c0_134 = arith.constant 0 : index
    %c0_135 = arith.constant 0 : index
    %c0_136 = arith.constant 0 : index
    %330 = vector.load %arg17[%c0_133, %c0_134, %c0_135, %c0_136] : memref<1x4x8x32xbf16, #tpu.memory_space<vmem>>, vector<1x1x8x32xbf16>
    %331 = vector.shape_cast %330 : vector<1x1x8x32xbf16> to vector<8x32xbf16>
    %cst_137 = arith.constant dense<0.000000e+00> : vector<16x32xf32>
    %332 = tpu.matmul %329, %331, %cst_137 {dimension_numbers = #tpu.dot_dimension_numbers<[1], [0], [0], [1], [0, 0, 1, 1], [], []>} : vector<16x8xbf16>, vector<8x32xbf16>, vector<16x32xf32> -> vector<16x32xf32>
    %333 = vector.extract_strided_slice %305 {offsets = [0, 8], sizes = [16, 8], strides = [1, 1]} : vector<16x32xf32> to vector<16x8xf32>
    %334 = arith.truncf %333 : vector<16x8xf32> to vector<16x8xbf16>
    %335 = vector.extract_strided_slice %306 {offsets = [0, 8], sizes = [24, 8], strides = [1, 1]} : vector<24x32xf32> to vector<24x8xf32>
    %336 = arith.truncf %335 : vector<24x8xf32> to vector<24x8xbf16>
    %337 = vector.extract_strided_slice %307 {offsets = [0, 8], sizes = [24, 8], strides = [1, 1]} : vector<24x32xf32> to vector<24x8xf32>
    %338 = arith.truncf %337 : vector<24x8xf32> to vector<24x8xbf16>
    %cst_138 = arith.constant dense<0.000000e+00> : vector<16x24xf32>
    %339 = tpu.matmul %334, %336, %cst_138 {dimension_numbers = #tpu.dot_dimension_numbers<[1], [1], [0], [0], [0, 0, 1, 0], [], []>} : vector<16x8xbf16>, vector<24x8xbf16>, vector<16x24xf32> -> vector<16x24xf32>
    %340 = vector.broadcast %304 : vector<1x24xf32> to vector<16x24xf32>
    %341 = arith.addf %339, %340 : vector<16x24xf32>
    %cst_139 = arith.constant dense<0xFF800000> : vector<16xf32>
    %342 = vector.multi_reduction <maximumf>, %341, %cst_139 [1] : vector<16x24xf32> to vector<16xf32>
    %343 = vector.shape_cast %342 : vector<16xf32> to vector<16x1xf32>
    %344 = vector.broadcast %343 : vector<16x1xf32> to vector<16x24xf32>
    %345 = arith.subf %341, %344 : vector<16x24xf32>
    %346 = math.exp %345 : vector<16x24xf32>
    %cst_140 = arith.constant dense<0.000000e+00> : vector<16xf32>
    %347 = vector.multi_reduction <add>, %346, %cst_140 [1] : vector<16x24xf32> to vector<16xf32>
    %348 = vector.shape_cast %347 : vector<16xf32> to vector<16x1xf32>
    %349 = tpu.reciprocal %348 {approx = true} : vector<16x1xf32> -> vector<16x1xf32>
    %350 = vector.broadcast %349 : vector<16x1xf32> to vector<16x24xf32>
    %351 = arith.mulf %346, %350 : vector<16x24xf32>
    %352 = arith.truncf %351 : vector<16x24xf32> to vector<16x24xbf16>
    %cst_141 = arith.constant dense<0.000000e+00> : vector<16x8xf32>
    %353 = tpu.matmul %352, %338, %cst_141 {dimension_numbers = #tpu.dot_dimension_numbers<[1], [0], [0], [1], [0, 0, 1, 1], [], []>} : vector<16x24xbf16>, vector<24x8xbf16>, vector<16x8xf32> -> vector<16x8xf32>
    %354 = arith.truncf %353 : vector<16x8xf32> to vector<16x8xbf16>
    %c0_142 = arith.constant 0 : index
    %c1_143 = arith.constant 1 : index
    %c0_144 = arith.constant 0 : index
    %c0_145 = arith.constant 0 : index
    %355 = vector.load %arg17[%c0_142, %c1_143, %c0_144, %c0_145] : memref<1x4x8x32xbf16, #tpu.memory_space<vmem>>, vector<1x1x8x32xbf16>
    %356 = vector.shape_cast %355 : vector<1x1x8x32xbf16> to vector<8x32xbf16>
    %cst_146 = arith.constant dense<0.000000e+00> : vector<16x32xf32>
    %357 = tpu.matmul %354, %356, %cst_146 {dimension_numbers = #tpu.dot_dimension_numbers<[1], [0], [0], [1], [0, 0, 1, 1], [], []>} : vector<16x8xbf16>, vector<8x32xbf16>, vector<16x32xf32> -> vector<16x32xf32>
    %358 = arith.addf %332, %357 : vector<16x32xf32>
    %359 = vector.extract_strided_slice %305 {offsets = [0, 16], sizes = [16, 8], strides = [1, 1]} : vector<16x32xf32> to vector<16x8xf32>
    %360 = arith.truncf %359 : vector<16x8xf32> to vector<16x8xbf16>
    %361 = vector.extract_strided_slice %306 {offsets = [0, 16], sizes = [24, 8], strides = [1, 1]} : vector<24x32xf32> to vector<24x8xf32>
    %362 = arith.truncf %361 : vector<24x8xf32> to vector<24x8xbf16>
    %363 = vector.extract_strided_slice %307 {offsets = [0, 16], sizes = [24, 8], strides = [1, 1]} : vector<24x32xf32> to vector<24x8xf32>
    %364 = arith.truncf %363 : vector<24x8xf32> to vector<24x8xbf16>
    %cst_147 = arith.constant dense<0.000000e+00> : vector<16x24xf32>
    %365 = tpu.matmul %360, %362, %cst_147 {dimension_numbers = #tpu.dot_dimension_numbers<[1], [1], [0], [0], [0, 0, 1, 0], [], []>} : vector<16x8xbf16>, vector<24x8xbf16>, vector<16x24xf32> -> vector<16x24xf32>
    %366 = vector.broadcast %304 : vector<1x24xf32> to vector<16x24xf32>
    %367 = arith.addf %365, %366 : vector<16x24xf32>
    %cst_148 = arith.constant dense<0xFF800000> : vector<16xf32>
    %368 = vector.multi_reduction <maximumf>, %367, %cst_148 [1] : vector<16x24xf32> to vector<16xf32>
    %369 = vector.shape_cast %368 : vector<16xf32> to vector<16x1xf32>
    %370 = vector.broadcast %369 : vector<16x1xf32> to vector<16x24xf32>
    %371 = arith.subf %367, %370 : vector<16x24xf32>
    %372 = math.exp %371 : vector<16x24xf32>
    %cst_149 = arith.constant dense<0.000000e+00> : vector<16xf32>
    %373 = vector.multi_reduction <add>, %372, %cst_149 [1] : vector<16x24xf32> to vector<16xf32>
    %374 = vector.shape_cast %373 : vector<16xf32> to vector<16x1xf32>
    %375 = tpu.reciprocal %374 {approx = true} : vector<16x1xf32> -> vector<16x1xf32>
    %376 = vector.broadcast %375 : vector<16x1xf32> to vector<16x24xf32>
    %377 = arith.mulf %372, %376 : vector<16x24xf32>
    %378 = arith.truncf %377 : vector<16x24xf32> to vector<16x24xbf16>
    %cst_150 = arith.constant dense<0.000000e+00> : vector<16x8xf32>
    %379 = tpu.matmul %378, %364, %cst_150 {dimension_numbers = #tpu.dot_dimension_numbers<[1], [0], [0], [1], [0, 0, 1, 1], [], []>} : vector<16x24xbf16>, vector<24x8xbf16>, vector<16x8xf32> -> vector<16x8xf32>
    %380 = arith.truncf %379 : vector<16x8xf32> to vector<16x8xbf16>
    %c0_151 = arith.constant 0 : index
    %c2_152 = arith.constant 2 : index
    %c0_153 = arith.constant 0 : index
    %c0_154 = arith.constant 0 : index
    %381 = vector.load %arg17[%c0_151, %c2_152, %c0_153, %c0_154] : memref<1x4x8x32xbf16, #tpu.memory_space<vmem>>, vector<1x1x8x32xbf16>
    %382 = vector.shape_cast %381 : vector<1x1x8x32xbf16> to vector<8x32xbf16>
    %cst_155 = arith.constant dense<0.000000e+00> : vector<16x32xf32>
    %383 = tpu.matmul %380, %382, %cst_155 {dimension_numbers = #tpu.dot_dimension_numbers<[1], [0], [0], [1], [0, 0, 1, 1], [], []>} : vector<16x8xbf16>, vector<8x32xbf16>, vector<16x32xf32> -> vector<16x32xf32>
    %384 = arith.addf %358, %383 : vector<16x32xf32>
    %385 = vector.extract_strided_slice %305 {offsets = [0, 24], sizes = [16, 8], strides = [1, 1]} : vector<16x32xf32> to vector<16x8xf32>
    %386 = arith.truncf %385 : vector<16x8xf32> to vector<16x8xbf16>
    %387 = vector.extract_strided_slice %306 {offsets = [0, 24], sizes = [24, 8], strides = [1, 1]} : vector<24x32xf32> to vector<24x8xf32>
    %388 = arith.truncf %387 : vector<24x8xf32> to vector<24x8xbf16>
    %389 = vector.extract_strided_slice %307 {offsets = [0, 24], sizes = [24, 8], strides = [1, 1]} : vector<24x32xf32> to vector<24x8xf32>
    %390 = arith.truncf %389 : vector<24x8xf32> to vector<24x8xbf16>
    %cst_156 = arith.constant dense<0.000000e+00> : vector<16x24xf32>
    %391 = tpu.matmul %386, %388, %cst_156 {dimension_numbers = #tpu.dot_dimension_numbers<[1], [1], [0], [0], [0, 0, 1, 0], [], []>} : vector<16x8xbf16>, vector<24x8xbf16>, vector<16x24xf32> -> vector<16x24xf32>
    %392 = vector.broadcast %304 : vector<1x24xf32> to vector<16x24xf32>
    %393 = arith.addf %391, %392 : vector<16x24xf32>
    %cst_157 = arith.constant dense<0xFF800000> : vector<16xf32>
    %394 = vector.multi_reduction <maximumf>, %393, %cst_157 [1] : vector<16x24xf32> to vector<16xf32>
    %395 = vector.shape_cast %394 : vector<16xf32> to vector<16x1xf32>
    %396 = vector.broadcast %395 : vector<16x1xf32> to vector<16x24xf32>
    %397 = arith.subf %393, %396 : vector<16x24xf32>
    %398 = math.exp %397 : vector<16x24xf32>
    %cst_158 = arith.constant dense<0.000000e+00> : vector<16xf32>
    %399 = vector.multi_reduction <add>, %398, %cst_158 [1] : vector<16x24xf32> to vector<16xf32>
    %400 = vector.shape_cast %399 : vector<16xf32> to vector<16x1xf32>
    %401 = tpu.reciprocal %400 {approx = true} : vector<16x1xf32> -> vector<16x1xf32>
    %402 = vector.broadcast %401 : vector<16x1xf32> to vector<16x24xf32>
    %403 = arith.mulf %398, %402 : vector<16x24xf32>
    %404 = arith.truncf %403 : vector<16x24xf32> to vector<16x24xbf16>
    %cst_159 = arith.constant dense<0.000000e+00> : vector<16x8xf32>
    %405 = tpu.matmul %404, %390, %cst_159 {dimension_numbers = #tpu.dot_dimension_numbers<[1], [0], [0], [1], [0, 0, 1, 1], [], []>} : vector<16x24xbf16>, vector<24x8xbf16>, vector<16x8xf32> -> vector<16x8xf32>
    %406 = arith.truncf %405 : vector<16x8xf32> to vector<16x8xbf16>
    %c0_160 = arith.constant 0 : index
    %c3_161 = arith.constant 3 : index
    %c0_162 = arith.constant 0 : index
    %c0_163 = arith.constant 0 : index
    %407 = vector.load %arg17[%c0_160, %c3_161, %c0_162, %c0_163] : memref<1x4x8x32xbf16, #tpu.memory_space<vmem>>, vector<1x1x8x32xbf16>
    %408 = vector.shape_cast %407 : vector<1x1x8x32xbf16> to vector<8x32xbf16>
    %cst_164 = arith.constant dense<0.000000e+00> : vector<16x32xf32>
    %409 = tpu.matmul %406, %408, %cst_164 {dimension_numbers = #tpu.dot_dimension_numbers<[1], [0], [0], [1], [0, 0, 1, 1], [], []>} : vector<16x8xbf16>, vector<8x32xbf16>, vector<16x32xf32> -> vector<16x32xf32>
    %410 = arith.addf %384, %409 : vector<16x32xf32>
    %411 = vector.extract_strided_slice %282 {offsets = [16, 0], sizes = [16, 32], strides = [1, 1]} : vector<32x32xf32> to vector<16x32xf32>
    %412 = vector.extract_strided_slice %290 {offsets = [24, 0], sizes = [24, 32], strides = [1, 1]} : vector<48x32xf32> to vector<24x32xf32>
    %413 = vector.extract_strided_slice %298 {offsets = [24, 0], sizes = [24, 32], strides = [1, 1]} : vector<48x32xf32> to vector<24x32xf32>
    %414 = vector.extract_strided_slice %411 {offsets = [0, 0], sizes = [16, 8], strides = [1, 1]} : vector<16x32xf32> to vector<16x8xf32>
    %415 = arith.truncf %414 : vector<16x8xf32> to vector<16x8xbf16>
    %416 = vector.extract_strided_slice %412 {offsets = [0, 0], sizes = [24, 8], strides = [1, 1]} : vector<24x32xf32> to vector<24x8xf32>
    %417 = arith.truncf %416 : vector<24x8xf32> to vector<24x8xbf16>
    %418 = vector.extract_strided_slice %413 {offsets = [0, 0], sizes = [24, 8], strides = [1, 1]} : vector<24x32xf32> to vector<24x8xf32>
    %419 = arith.truncf %418 : vector<24x8xf32> to vector<24x8xbf16>
    %cst_165 = arith.constant dense<0.000000e+00> : vector<16x24xf32>
    %420 = tpu.matmul %415, %417, %cst_165 {dimension_numbers = #tpu.dot_dimension_numbers<[1], [1], [0], [0], [0, 0, 1, 0], [], []>} : vector<16x8xbf16>, vector<24x8xbf16>, vector<16x24xf32> -> vector<16x24xf32>
    %421 = vector.broadcast %304 : vector<1x24xf32> to vector<16x24xf32>
    %422 = arith.addf %420, %421 : vector<16x24xf32>
    %cst_166 = arith.constant dense<0xFF800000> : vector<16xf32>
    %423 = vector.multi_reduction <maximumf>, %422, %cst_166 [1] : vector<16x24xf32> to vector<16xf32>
    %424 = vector.shape_cast %423 : vector<16xf32> to vector<16x1xf32>
    %425 = vector.broadcast %424 : vector<16x1xf32> to vector<16x24xf32>
    %426 = arith.subf %422, %425 : vector<16x24xf32>
    %427 = math.exp %426 : vector<16x24xf32>
    %cst_167 = arith.constant dense<0.000000e+00> : vector<16xf32>
    %428 = vector.multi_reduction <add>, %427, %cst_167 [1] : vector<16x24xf32> to vector<16xf32>
    %429 = vector.shape_cast %428 : vector<16xf32> to vector<16x1xf32>
    %430 = tpu.reciprocal %429 {approx = true} : vector<16x1xf32> -> vector<16x1xf32>
    %431 = vector.broadcast %430 : vector<16x1xf32> to vector<16x24xf32>
    %432 = arith.mulf %427, %431 : vector<16x24xf32>
    %433 = arith.truncf %432 : vector<16x24xf32> to vector<16x24xbf16>
    %cst_168 = arith.constant dense<0.000000e+00> : vector<16x8xf32>
    %434 = tpu.matmul %433, %419, %cst_168 {dimension_numbers = #tpu.dot_dimension_numbers<[1], [0], [0], [1], [0, 0, 1, 1], [], []>} : vector<16x24xbf16>, vector<24x8xbf16>, vector<16x8xf32> -> vector<16x8xf32>
    %435 = arith.truncf %434 : vector<16x8xf32> to vector<16x8xbf16>
    %c0_169 = arith.constant 0 : index
    %c0_170 = arith.constant 0 : index
    %c0_171 = arith.constant 0 : index
    %c0_172 = arith.constant 0 : index
    %436 = vector.load %arg17[%c0_169, %c0_170, %c0_171, %c0_172] : memref<1x4x8x32xbf16, #tpu.memory_space<vmem>>, vector<1x1x8x32xbf16>
    %437 = vector.shape_cast %436 : vector<1x1x8x32xbf16> to vector<8x32xbf16>
    %cst_173 = arith.constant dense<0.000000e+00> : vector<16x32xf32>
    %438 = tpu.matmul %435, %437, %cst_173 {dimension_numbers = #tpu.dot_dimension_numbers<[1], [0], [0], [1], [0, 0, 1, 1], [], []>} : vector<16x8xbf16>, vector<8x32xbf16>, vector<16x32xf32> -> vector<16x32xf32>
    %439 = vector.extract_strided_slice %411 {offsets = [0, 8], sizes = [16, 8], strides = [1, 1]} : vector<16x32xf32> to vector<16x8xf32>
    %440 = arith.truncf %439 : vector<16x8xf32> to vector<16x8xbf16>
    %441 = vector.extract_strided_slice %412 {offsets = [0, 8], sizes = [24, 8], strides = [1, 1]} : vector<24x32xf32> to vector<24x8xf32>
    %442 = arith.truncf %441 : vector<24x8xf32> to vector<24x8xbf16>
    %443 = vector.extract_strided_slice %413 {offsets = [0, 8], sizes = [24, 8], strides = [1, 1]} : vector<24x32xf32> to vector<24x8xf32>
    %444 = arith.truncf %443 : vector<24x8xf32> to vector<24x8xbf16>
    %cst_174 = arith.constant dense<0.000000e+00> : vector<16x24xf32>
    %445 = tpu.matmul %440, %442, %cst_174 {dimension_numbers = #tpu.dot_dimension_numbers<[1], [1], [0], [0], [0, 0, 1, 0], [], []>} : vector<16x8xbf16>, vector<24x8xbf16>, vector<16x24xf32> -> vector<16x24xf32>
    %446 = vector.broadcast %304 : vector<1x24xf32> to vector<16x24xf32>
    %447 = arith.addf %445, %446 : vector<16x24xf32>
    %cst_175 = arith.constant dense<0xFF800000> : vector<16xf32>
    %448 = vector.multi_reduction <maximumf>, %447, %cst_175 [1] : vector<16x24xf32> to vector<16xf32>
    %449 = vector.shape_cast %448 : vector<16xf32> to vector<16x1xf32>
    %450 = vector.broadcast %449 : vector<16x1xf32> to vector<16x24xf32>
    %451 = arith.subf %447, %450 : vector<16x24xf32>
    %452 = math.exp %451 : vector<16x24xf32>
    %cst_176 = arith.constant dense<0.000000e+00> : vector<16xf32>
    %453 = vector.multi_reduction <add>, %452, %cst_176 [1] : vector<16x24xf32> to vector<16xf32>
    %454 = vector.shape_cast %453 : vector<16xf32> to vector<16x1xf32>
    %455 = tpu.reciprocal %454 {approx = true} : vector<16x1xf32> -> vector<16x1xf32>
    %456 = vector.broadcast %455 : vector<16x1xf32> to vector<16x24xf32>
    %457 = arith.mulf %452, %456 : vector<16x24xf32>
    %458 = arith.truncf %457 : vector<16x24xf32> to vector<16x24xbf16>
    %cst_177 = arith.constant dense<0.000000e+00> : vector<16x8xf32>
    %459 = tpu.matmul %458, %444, %cst_177 {dimension_numbers = #tpu.dot_dimension_numbers<[1], [0], [0], [1], [0, 0, 1, 1], [], []>} : vector<16x24xbf16>, vector<24x8xbf16>, vector<16x8xf32> -> vector<16x8xf32>
    %460 = arith.truncf %459 : vector<16x8xf32> to vector<16x8xbf16>
    %c0_178 = arith.constant 0 : index
    %c1_179 = arith.constant 1 : index
    %c0_180 = arith.constant 0 : index
    %c0_181 = arith.constant 0 : index
    %461 = vector.load %arg17[%c0_178, %c1_179, %c0_180, %c0_181] : memref<1x4x8x32xbf16, #tpu.memory_space<vmem>>, vector<1x1x8x32xbf16>
    %462 = vector.shape_cast %461 : vector<1x1x8x32xbf16> to vector<8x32xbf16>
    %cst_182 = arith.constant dense<0.000000e+00> : vector<16x32xf32>
    %463 = tpu.matmul %460, %462, %cst_182 {dimension_numbers = #tpu.dot_dimension_numbers<[1], [0], [0], [1], [0, 0, 1, 1], [], []>} : vector<16x8xbf16>, vector<8x32xbf16>, vector<16x32xf32> -> vector<16x32xf32>
    %464 = arith.addf %438, %463 : vector<16x32xf32>
    %465 = vector.extract_strided_slice %411 {offsets = [0, 16], sizes = [16, 8], strides = [1, 1]} : vector<16x32xf32> to vector<16x8xf32>
    %466 = arith.truncf %465 : vector<16x8xf32> to vector<16x8xbf16>
    %467 = vector.extract_strided_slice %412 {offsets = [0, 16], sizes = [24, 8], strides = [1, 1]} : vector<24x32xf32> to vector<24x8xf32>
    %468 = arith.truncf %467 : vector<24x8xf32> to vector<24x8xbf16>
    %469 = vector.extract_strided_slice %413 {offsets = [0, 16], sizes = [24, 8], strides = [1, 1]} : vector<24x32xf32> to vector<24x8xf32>
    %470 = arith.truncf %469 : vector<24x8xf32> to vector<24x8xbf16>
    %cst_183 = arith.constant dense<0.000000e+00> : vector<16x24xf32>
    %471 = tpu.matmul %466, %468, %cst_183 {dimension_numbers = #tpu.dot_dimension_numbers<[1], [1], [0], [0], [0, 0, 1, 0], [], []>} : vector<16x8xbf16>, vector<24x8xbf16>, vector<16x24xf32> -> vector<16x24xf32>
    %472 = vector.broadcast %304 : vector<1x24xf32> to vector<16x24xf32>
    %473 = arith.addf %471, %472 : vector<16x24xf32>
    %cst_184 = arith.constant dense<0xFF800000> : vector<16xf32>
    %474 = vector.multi_reduction <maximumf>, %473, %cst_184 [1] : vector<16x24xf32> to vector<16xf32>
    %475 = vector.shape_cast %474 : vector<16xf32> to vector<16x1xf32>
    %476 = vector.broadcast %475 : vector<16x1xf32> to vector<16x24xf32>
    %477 = arith.subf %473, %476 : vector<16x24xf32>
    %478 = math.exp %477 : vector<16x24xf32>
    %cst_185 = arith.constant dense<0.000000e+00> : vector<16xf32>
    %479 = vector.multi_reduction <add>, %478, %cst_185 [1] : vector<16x24xf32> to vector<16xf32>
    %480 = vector.shape_cast %479 : vector<16xf32> to vector<16x1xf32>
    %481 = tpu.reciprocal %480 {approx = true} : vector<16x1xf32> -> vector<16x1xf32>
    %482 = vector.broadcast %481 : vector<16x1xf32> to vector<16x24xf32>
    %483 = arith.mulf %478, %482 : vector<16x24xf32>
    %484 = arith.truncf %483 : vector<16x24xf32> to vector<16x24xbf16>
    %cst_186 = arith.constant dense<0.000000e+00> : vector<16x8xf32>
    %485 = tpu.matmul %484, %470, %cst_186 {dimension_numbers = #tpu.dot_dimension_numbers<[1], [0], [0], [1], [0, 0, 1, 1], [], []>} : vector<16x24xbf16>, vector<24x8xbf16>, vector<16x8xf32> -> vector<16x8xf32>
    %486 = arith.truncf %485 : vector<16x8xf32> to vector<16x8xbf16>
    %c0_187 = arith.constant 0 : index
    %c2_188 = arith.constant 2 : index
    %c0_189 = arith.constant 0 : index
    %c0_190 = arith.constant 0 : index
    %487 = vector.load %arg17[%c0_187, %c2_188, %c0_189, %c0_190] : memref<1x4x8x32xbf16, #tpu.memory_space<vmem>>, vector<1x1x8x32xbf16>
    %488 = vector.shape_cast %487 : vector<1x1x8x32xbf16> to vector<8x32xbf16>
    %cst_191 = arith.constant dense<0.000000e+00> : vector<16x32xf32>
    %489 = tpu.matmul %486, %488, %cst_191 {dimension_numbers = #tpu.dot_dimension_numbers<[1], [0], [0], [1], [0, 0, 1, 1], [], []>} : vector<16x8xbf16>, vector<8x32xbf16>, vector<16x32xf32> -> vector<16x32xf32>
    %490 = arith.addf %464, %489 : vector<16x32xf32>
    %491 = vector.extract_strided_slice %411 {offsets = [0, 24], sizes = [16, 8], strides = [1, 1]} : vector<16x32xf32> to vector<16x8xf32>
    %492 = arith.truncf %491 : vector<16x8xf32> to vector<16x8xbf16>
    %493 = vector.extract_strided_slice %412 {offsets = [0, 24], sizes = [24, 8], strides = [1, 1]} : vector<24x32xf32> to vector<24x8xf32>
    %494 = arith.truncf %493 : vector<24x8xf32> to vector<24x8xbf16>
    %495 = vector.extract_strided_slice %413 {offsets = [0, 24], sizes = [24, 8], strides = [1, 1]} : vector<24x32xf32> to vector<24x8xf32>
    %496 = arith.truncf %495 : vector<24x8xf32> to vector<24x8xbf16>
    %cst_192 = arith.constant dense<0.000000e+00> : vector<16x24xf32>
    %497 = tpu.matmul %492, %494, %cst_192 {dimension_numbers = #tpu.dot_dimension_numbers<[1], [1], [0], [0], [0, 0, 1, 0], [], []>} : vector<16x8xbf16>, vector<24x8xbf16>, vector<16x24xf32> -> vector<16x24xf32>
    %498 = vector.broadcast %304 : vector<1x24xf32> to vector<16x24xf32>
    %499 = arith.addf %497, %498 : vector<16x24xf32>
    %cst_193 = arith.constant dense<0xFF800000> : vector<16xf32>
    %500 = vector.multi_reduction <maximumf>, %499, %cst_193 [1] : vector<16x24xf32> to vector<16xf32>
    %501 = vector.shape_cast %500 : vector<16xf32> to vector<16x1xf32>
    %502 = vector.broadcast %501 : vector<16x1xf32> to vector<16x24xf32>
    %503 = arith.subf %499, %502 : vector<16x24xf32>
    %504 = math.exp %503 : vector<16x24xf32>
    %cst_194 = arith.constant dense<0.000000e+00> : vector<16xf32>
    %505 = vector.multi_reduction <add>, %504, %cst_194 [1] : vector<16x24xf32> to vector<16xf32>
    %506 = vector.shape_cast %505 : vector<16xf32> to vector<16x1xf32>
    %507 = tpu.reciprocal %506 {approx = true} : vector<16x1xf32> -> vector<16x1xf32>
    %508 = vector.broadcast %507 : vector<16x1xf32> to vector<16x24xf32>
    %509 = arith.mulf %504, %508 : vector<16x24xf32>
    %510 = arith.truncf %509 : vector<16x24xf32> to vector<16x24xbf16>
    %cst_195 = arith.constant dense<0.000000e+00> : vector<16x8xf32>
    %511 = tpu.matmul %510, %496, %cst_195 {dimension_numbers = #tpu.dot_dimension_numbers<[1], [0], [0], [1], [0, 0, 1, 1], [], []>} : vector<16x24xbf16>, vector<24x8xbf16>, vector<16x8xf32> -> vector<16x8xf32>
    %512 = arith.truncf %511 : vector<16x8xf32> to vector<16x8xbf16>
    %c0_196 = arith.constant 0 : index
    %c3_197 = arith.constant 3 : index
    %c0_198 = arith.constant 0 : index
    %c0_199 = arith.constant 0 : index
    %513 = vector.load %arg17[%c0_196, %c3_197, %c0_198, %c0_199] : memref<1x4x8x32xbf16, #tpu.memory_space<vmem>>, vector<1x1x8x32xbf16>
    %514 = vector.shape_cast %513 : vector<1x1x8x32xbf16> to vector<8x32xbf16>
    %cst_200 = arith.constant dense<0.000000e+00> : vector<16x32xf32>
    %515 = tpu.matmul %512, %514, %cst_200 {dimension_numbers = #tpu.dot_dimension_numbers<[1], [0], [0], [1], [0, 0, 1, 1], [], []>} : vector<16x8xbf16>, vector<8x32xbf16>, vector<16x32xf32> -> vector<16x32xf32>
    %516 = arith.addf %490, %515 : vector<16x32xf32>
    %517 = tpu.concatenate %410, %516 in 0 : vector<16x32xf32>, vector<16x32xf32> -> vector<32x32xf32>
    %c0_201 = arith.constant 0 : index
    %c0_202 = arith.constant 0 : index
    %c0_203 = arith.constant 0 : index
    %518 = vector.load %arg18[%c0_201, %c0_202, %c0_203] : memref<1x1x32xf32, #tpu.memory_space<vmem>>, vector<1x1x32xf32>
    %519 = vector.shape_cast %518 : vector<1x1x32xf32> to vector<1x32xf32>
    %520 = vector.broadcast %519 : vector<1x32xf32> to vector<32x32xf32>
    %521 = arith.addf %517, %520 : vector<32x32xf32>
    %522 = arith.addf %273, %521 : vector<32x32xf32>
    %c0_204 = arith.constant 0 : index
    %c0_205 = arith.constant 0 : index
    %c0_206 = arith.constant 0 : index
    %523 = vector.load %arg25[%c0_204, %c0_205, %c0_206] : memref<1x1x32xf32, #tpu.memory_space<vmem>>, vector<1x1x32xf32>
    %524 = vector.shape_cast %523 : vector<1x1x32xf32> to vector<1x32xf32>
    %c0_207 = arith.constant 0 : index
    %c0_208 = arith.constant 0 : index
    %c0_209 = arith.constant 0 : index
    %525 = vector.load %arg26[%c0_207, %c0_208, %c0_209] : memref<1x1x32xf32, #tpu.memory_space<vmem>>, vector<1x1x32xf32>
    %526 = vector.shape_cast %525 : vector<1x1x32xf32> to vector<1x32xf32>
    %cst_210 = arith.constant dense<0.000000e+00> : vector<32xf32>
    %527 = vector.multi_reduction <add>, %522, %cst_210 [1] : vector<32x32xf32> to vector<32xf32>
    %528 = vector.shape_cast %527 : vector<32xf32> to vector<32x1xf32>
    %cst_211 = arith.constant 3.200000e+01 : f32
    %529 = vector.broadcast %cst_211 : f32 to vector<32x1xf32>
    %530 = arith.divf %528, %529 : vector<32x1xf32>
    %531 = vector.broadcast %530 : vector<32x1xf32> to vector<32x32xf32>
    %532 = arith.subf %522, %531 : vector<32x32xf32>
    %533 = arith.mulf %532, %532 : vector<32x32xf32>
    %cst_212 = arith.constant dense<0.000000e+00> : vector<32xf32>
    %534 = vector.multi_reduction <add>, %533, %cst_212 [1] : vector<32x32xf32> to vector<32xf32>
    %535 = vector.shape_cast %534 : vector<32xf32> to vector<32x1xf32>
    %cst_213 = arith.constant 3.200000e+01 : f32
    %536 = vector.broadcast %cst_213 : f32 to vector<32x1xf32>
    %537 = arith.divf %535, %536 : vector<32x1xf32>
    %538 = vector.broadcast %530 : vector<32x1xf32> to vector<32x32xf32>
    %539 = arith.subf %522, %538 : vector<32x32xf32>
    %cst_214 = arith.constant 9.99999974E-6 : f32
    %540 = vector.broadcast %cst_214 : f32 to vector<32x1xf32>
    %541 = arith.addf %537, %540 : vector<32x1xf32>
    %542 = math.rsqrt %541 : vector<32x1xf32>
    %543 = vector.broadcast %542 : vector<32x1xf32> to vector<32x32xf32>
    %544 = arith.mulf %539, %543 : vector<32x32xf32>
    %545 = vector.broadcast %524 : vector<1x32xf32> to vector<32x32xf32>
    %546 = arith.mulf %544, %545 : vector<32x32xf32>
    %547 = vector.broadcast %526 : vector<1x32xf32> to vector<32x32xf32>
    %548 = arith.addf %546, %547 : vector<32x32xf32>
    %549 = arith.truncf %548 : vector<32x32xf32> to vector<32x32xbf16>
    %c0_215 = arith.constant 0 : index
    %c0_216 = arith.constant 0 : index
    %c0_217 = arith.constant 0 : index
    %550 = vector.load %arg19[%c0_215, %c0_216, %c0_217] : memref<1x32x64xbf16, #tpu.memory_space<vmem>>, vector<1x32x64xbf16>
    %551 = vector.shape_cast %550 : vector<1x32x64xbf16> to vector<32x64xbf16>
    %cst_218 = arith.constant dense<0.000000e+00> : vector<32x64xf32>
    %552 = tpu.matmul %549, %551, %cst_218 {dimension_numbers = #tpu.dot_dimension_numbers<[1], [0], [0], [1], [0, 0, 1, 1], [], []>} : vector<32x32xbf16>, vector<32x64xbf16>, vector<32x64xf32> -> vector<32x64xf32>
    %c0_219 = arith.constant 0 : index
    %c0_220 = arith.constant 0 : index
    %c0_221 = arith.constant 0 : index
    %553 = vector.load %arg20[%c0_219, %c0_220, %c0_221] : memref<1x1x64xf32, #tpu.memory_space<vmem>>, vector<1x1x64xf32>
    %554 = vector.shape_cast %553 : vector<1x1x64xf32> to vector<1x64xf32>
    %555 = vector.broadcast %554 : vector<1x64xf32> to vector<32x64xf32>
    %556 = arith.addf %552, %555 : vector<32x64xf32>
    %cst_222 = arith.constant 0.000000e+00 : f32
    %557 = vector.broadcast %cst_222 : f32 to vector<32x64xf32>
    %558 = arith.maximumf %556, %557 : vector<32x64xf32>
    %559 = arith.truncf %558 : vector<32x64xf32> to vector<32x64xbf16>
    %c0_223 = arith.constant 0 : index
    %c0_224 = arith.constant 0 : index
    %c0_225 = arith.constant 0 : index
    %560 = vector.load %arg21[%c0_223, %c0_224, %c0_225] : memref<1x64x32xbf16, #tpu.memory_space<vmem>>, vector<1x64x32xbf16>
    %561 = vector.shape_cast %560 : vector<1x64x32xbf16> to vector<64x32xbf16>
    %cst_226 = arith.constant dense<0.000000e+00> : vector<32x32xf32>
    %562 = tpu.matmul %559, %561, %cst_226 {dimension_numbers = #tpu.dot_dimension_numbers<[1], [0], [0], [1], [0, 0, 1, 1], [], []>} : vector<32x64xbf16>, vector<64x32xbf16>, vector<32x32xf32> -> vector<32x32xf32>
    %c0_227 = arith.constant 0 : index
    %c0_228 = arith.constant 0 : index
    %c0_229 = arith.constant 0 : index
    %563 = vector.load %arg22[%c0_227, %c0_228, %c0_229] : memref<1x1x32xf32, #tpu.memory_space<vmem>>, vector<1x1x32xf32>
    %564 = vector.shape_cast %563 : vector<1x1x32xf32> to vector<1x32xf32>
    %565 = vector.broadcast %564 : vector<1x32xf32> to vector<32x32xf32>
    %566 = arith.addf %562, %565 : vector<32x32xf32>
    %567 = arith.addf %548, %566 : vector<32x32xf32>
    %c0_230 = arith.constant 0 : index
    %c0_231 = arith.constant 0 : index
    %c0_232 = arith.constant 0 : index
    %568 = vector.load %arg27[%c0_230, %c0_231, %c0_232] : memref<1x1x32xf32, #tpu.memory_space<vmem>>, vector<1x1x32xf32>
    %569 = vector.shape_cast %568 : vector<1x1x32xf32> to vector<1x32xf32>
    %c0_233 = arith.constant 0 : index
    %c0_234 = arith.constant 0 : index
    %c0_235 = arith.constant 0 : index
    %570 = vector.load %arg28[%c0_233, %c0_234, %c0_235] : memref<1x1x32xf32, #tpu.memory_space<vmem>>, vector<1x1x32xf32>
    %571 = vector.shape_cast %570 : vector<1x1x32xf32> to vector<1x32xf32>
    %cst_236 = arith.constant dense<0.000000e+00> : vector<32xf32>
    %572 = vector.multi_reduction <add>, %567, %cst_236 [1] : vector<32x32xf32> to vector<32xf32>
    %573 = vector.shape_cast %572 : vector<32xf32> to vector<32x1xf32>
    %cst_237 = arith.constant 3.200000e+01 : f32
    %574 = vector.broadcast %cst_237 : f32 to vector<32x1xf32>
    %575 = arith.divf %573, %574 : vector<32x1xf32>
    %576 = vector.broadcast %575 : vector<32x1xf32> to vector<32x32xf32>
    %577 = arith.subf %567, %576 : vector<32x32xf32>
    %578 = arith.mulf %577, %577 : vector<32x32xf32>
    %cst_238 = arith.constant dense<0.000000e+00> : vector<32xf32>
    %579 = vector.multi_reduction <add>, %578, %cst_238 [1] : vector<32x32xf32> to vector<32xf32>
    %580 = vector.shape_cast %579 : vector<32xf32> to vector<32x1xf32>
    %cst_239 = arith.constant 3.200000e+01 : f32
    %581 = vector.broadcast %cst_239 : f32 to vector<32x1xf32>
    %582 = arith.divf %580, %581 : vector<32x1xf32>
    %583 = vector.broadcast %575 : vector<32x1xf32> to vector<32x32xf32>
    %584 = arith.subf %567, %583 : vector<32x32xf32>
    %cst_240 = arith.constant 9.99999974E-6 : f32
    %585 = vector.broadcast %cst_240 : f32 to vector<32x1xf32>
    %586 = arith.addf %582, %585 : vector<32x1xf32>
    %587 = math.rsqrt %586 : vector<32x1xf32>
    %588 = vector.broadcast %587 : vector<32x1xf32> to vector<32x32xf32>
    %589 = arith.mulf %584, %588 : vector<32x32xf32>
    %590 = vector.broadcast %569 : vector<1x32xf32> to vector<32x32xf32>
    %591 = arith.mulf %589, %590 : vector<32x32xf32>
    %592 = vector.broadcast %571 : vector<1x32xf32> to vector<32x32xf32>
    %593 = arith.addf %591, %592 : vector<32x32xf32>
    %c0_241 = arith.constant 0 : index
    %c0_242 = arith.constant 0 : index
    %594 = vector.load %arg32[%c0_241, %c0_242] : memref<32x32xf32, #tpu.memory_space<vmem>>, vector<32x32xf32>
    tpu.vector_store %arg32[%c0_241, %c0_242], %593 {strides = array<i32>} : memref<32x32xf32, #tpu.memory_space<vmem>>, vector<32x32xf32>,
    %c0_243 = arith.constant 0 : index
    %c0_244 = arith.constant 0 : index
    %595 = vector.load %arg29[%c0_243, %c0_244] : memref<1x32xf32, #tpu.memory_space<vmem>>, vector<1x32xf32>
    %c0_245 = arith.constant 0 : index
    %c0_246 = arith.constant 0 : index
    %596 = vector.load %arg30[%c0_245, %c0_246] : memref<1x32xf32, #tpu.memory_space<vmem>>, vector<1x32xf32>
    %cst_247 = arith.constant dense<0.000000e+00> : vector<32xf32>
    %597 = vector.multi_reduction <add>, %593, %cst_247 [1] : vector<32x32xf32> to vector<32xf32>
    %598 = vector.shape_cast %597 : vector<32xf32> to vector<32x1xf32>
    %cst_248 = arith.constant 3.200000e+01 : f32
    %599 = vector.broadcast %cst_248 : f32 to vector<32x1xf32>
    %600 = arith.divf %598, %599 : vector<32x1xf32>
    %601 = vector.broadcast %600 : vector<32x1xf32> to vector<32x32xf32>
    %602 = arith.subf %593, %601 : vector<32x32xf32>
    %603 = arith.mulf %602, %602 : vector<32x32xf32>
    %cst_249 = arith.constant dense<0.000000e+00> : vector<32xf32>
    %604 = vector.multi_reduction <add>, %603, %cst_249 [1] : vector<32x32xf32> to vector<32xf32>
    %605 = vector.shape_cast %604 : vector<32xf32> to vector<32x1xf32>
    %cst_250 = arith.constant 3.200000e+01 : f32
    %606 = vector.broadcast %cst_250 : f32 to vector<32x1xf32>
    %607 = arith.divf %605, %606 : vector<32x1xf32>
    %608 = vector.broadcast %600 : vector<32x1xf32> to vector<32x32xf32>
    %609 = arith.subf %593, %608 : vector<32x32xf32>
    %cst_251 = arith.constant 9.99999974E-6 : f32
    %610 = vector.broadcast %cst_251 : f32 to vector<32x1xf32>
    %611 = arith.addf %607, %610 : vector<32x1xf32>
    %612 = math.rsqrt %611 : vector<32x1xf32>
    %613 = vector.broadcast %612 : vector<32x1xf32> to vector<32x32xf32>
    %614 = arith.mulf %609, %613 : vector<32x32xf32>
    %615 = vector.broadcast %595 : vector<1x32xf32> to vector<32x32xf32>
    %616 = arith.mulf %614, %615 : vector<32x32xf32>
    %617 = vector.broadcast %596 : vector<1x32xf32> to vector<32x32xf32>
    %618 = arith.addf %616, %617 : vector<32x32xf32>
    %619 = arith.truncf %618 : vector<32x32xf32> to vector<32x32xbf16>
    %c0_252 = arith.constant 0 : index
    %c0_253 = arith.constant 0 : index
    %c0_254 = arith.constant 0 : index
    %620 = vector.load %arg31[%c0_252, %c0_253, %c0_254] : memref<1x32x32xbf16, #tpu.memory_space<vmem>>, vector<1x32x32xbf16>
    %621 = vector.shape_cast %620 : vector<1x32x32xbf16> to vector<32x32xbf16>
    %622 = vector.shape_cast %619 : vector<32x32xbf16> to vector<1x32x32xbf16>
    tpu.vector_store %arg31[%c0_252, %c0_253, %c0_254], %622 {strides = array<i32>} : memref<1x32x32xbf16, #tpu.memory_space<vmem>>, vector<1x32x32xbf16>,
    return
  }
  func.func @transform_0(%arg0: i32) -> (i32, i32) {
    %c0_i32 = arith.constant 0 : i32
    %c0_i32_0 = arith.constant 0 : i32
    %c0_i32_1 = arith.constant 0 : i32
    return %c0_i32, %c0_i32_0 : i32, i32
  }
  func.func @transform_1(%arg0: i32) -> (i32, i32) {
    %c0_i32 = arith.constant 0 : i32
    %c0_i32_0 = arith.constant 0 : i32
    %c0_i32_1 = arith.constant 0 : i32
    return %c0_i32, %c0_i32_0 : i32, i32
  }
  func.func @transform_2(%arg0: i32) -> (i32, i32) {
    %c0_i32 = arith.constant 0 : i32
    %c0_i32_0 = arith.constant 0 : i32
    %c0_i32_1 = arith.constant 0 : i32
    return %c0_i32, %c0_i32_0 : i32, i32
  }
  func.func @transform_3(%arg0: i32) -> (i32, i32) {
    %c0_i32 = arith.constant 0 : i32
    %c0_i32_0 = arith.constant 0 : i32
    %c0_i32_1 = arith.constant 0 : i32
    return %c0_i32, %c0_i32_0 : i32, i32
  }
  func.func @transform_4(%arg0: i32) -> (i32, i32, i32) {
    %c0_i32 = arith.constant 0 : i32
    %c0_i32_0 = arith.constant 0 : i32
    %c0_i32_1 = arith.constant 0 : i32
    return %arg0, %c0_i32, %c0_i32_0 : i32, i32, i32
  }
  func.func @transform_5(%arg0: i32) -> (i32, i32, i32) {
    %c0_i32 = arith.constant 0 : i32
    %c0_i32_0 = arith.constant 0 : i32
    %c0_i32_1 = arith.constant 0 : i32
    return %arg0, %c0_i32, %c0_i32_0 : i32, i32, i32
  }
  func.func @transform_6(%arg0: i32) -> (i32, i32, i32) {
    %c0_i32 = arith.constant 0 : i32
    %c0_i32_0 = arith.constant 0 : i32
    %c0_i32_1 = arith.constant 0 : i32
    return %arg0, %c0_i32, %c0_i32_0 : i32, i32, i32
  }
  func.func @transform_7(%arg0: i32) -> (i32, i32, i32) {
    %c0_i32 = arith.constant 0 : i32
    %c0_i32_0 = arith.constant 0 : i32
    %c0_i32_1 = arith.constant 0 : i32
    return %arg0, %c0_i32, %c0_i32_0 : i32, i32, i32
  }
  func.func @transform_8(%arg0: i32) -> (i32, i32, i32, i32) {
    %c0_i32 = arith.constant 0 : i32
    %c0_i32_0 = arith.constant 0 : i32
    %c0_i32_1 = arith.constant 0 : i32
    %c0_i32_2 = arith.constant 0 : i32
    return %arg0, %c0_i32, %c0_i32_0, %c0_i32_1 : i32, i32, i32, i32
  }
  func.func @transform_9(%arg0: i32) -> (i32, i32, i32) {
    %c0_i32 = arith.constant 0 : i32
    %c0_i32_0 = arith.constant 0 : i32
    %c0_i32_1 = arith.constant 0 : i32
    return %arg0, %c0_i32, %c0_i32_0 : i32, i32, i32
  }
  func.func @transform_10(%arg0: i32) -> (i32, i32, i32) {
    %c0_i32 = arith.constant 0 : i32
    %c0_i32_0 = arith.constant 0 : i32
    %c0_i32_1 = arith.constant 0 : i32
    return %arg0, %c0_i32, %c0_i32_0 : i32, i32, i32
  }
  func.func @transform_11(%arg0: i32) -> (i32, i32, i32) {
    %c0_i32 = arith.constant 0 : i32
    %c0_i32_0 = arith.constant 0 : i32
    %c0_i32_1 = arith.constant 0 : i32
    return %arg0, %c0_i32, %c0_i32_0 : i32, i32, i32
  }
  func.func @transform_12(%arg0: i32) -> (i32, i32, i32) {
    %c0_i32 = arith.constant 0 : i32
    %c0_i32_0 = arith.constant 0 : i32
    %c0_i32_1 = arith.constant 0 : i32
    return %arg0, %c0_i32, %c0_i32_0 : i32, i32, i32
  }
  func.func @transform_13(%arg0: i32) -> (i32, i32, i32) {
    %c0_i32 = arith.constant 0 : i32
    %c0_i32_0 = arith.constant 0 : i32
    %c0_i32_1 = arith.constant 0 : i32
    return %arg0, %c0_i32, %c0_i32_0 : i32, i32, i32
  }
  func.func @transform_14(%arg0: i32) -> (i32, i32, i32) {
    %c0_i32 = arith.constant 0 : i32
    %c0_i32_0 = arith.constant 0 : i32
    %c0_i32_1 = arith.constant 0 : i32
    return %arg0, %c0_i32, %c0_i32_0 : i32, i32, i32
  }
  func.func @transform_15(%arg0: i32) -> (i32, i32, i32) {
    %c0_i32 = arith.constant 0 : i32
    %c0_i32_0 = arith.constant 0 : i32
    %c0_i32_1 = arith.constant 0 : i32
    return %arg0, %c0_i32, %c0_i32_0 : i32, i32, i32
  }
  func.func @transform_16(%arg0: i32) -> (i32, i32, i32, i32) {
    %c0_i32 = arith.constant 0 : i32
    %c0_i32_0 = arith.constant 0 : i32
    %c0_i32_1 = arith.constant 0 : i32
    %c0_i32_2 = arith.constant 0 : i32
    return %arg0, %c0_i32, %c0_i32_0, %c0_i32_1 : i32, i32, i32, i32
  }
  func.func @transform_17(%arg0: i32) -> (i32, i32, i32) {
    %c0_i32 = arith.constant 0 : i32
    %c0_i32_0 = arith.constant 0 : i32
    %c0_i32_1 = arith.constant 0 : i32
    return %arg0, %c0_i32, %c0_i32_0 : i32, i32, i32
  }
  func.func @transform_18(%arg0: i32) -> (i32, i32, i32) {
    %c0_i32 = arith.constant 0 : i32
    %c0_i32_0 = arith.constant 0 : i32
    %c0_i32_1 = arith.constant 0 : i32
    return %arg0, %c0_i32, %c0_i32_0 : i32, i32, i32
  }
  func.func @transform_19(%arg0: i32) -> (i32, i32, i32) {
    %c0_i32 = arith.constant 0 : i32
    %c0_i32_0 = arith.constant 0 : i32
    %c0_i32_1 = arith.constant 0 : i32
    return %arg0, %c0_i32, %c0_i32_0 : i32, i32, i32
  }
  func.func @transform_20(%arg0: i32) -> (i32, i32, i32) {
    %c0_i32 = arith.constant 0 : i32
    %c0_i32_0 = arith.constant 0 : i32
    %c0_i32_1 = arith.constant 0 : i32
    return %arg0, %c0_i32, %c0_i32_0 : i32, i32, i32
  }
  func.func @transform_21(%arg0: i32) -> (i32, i32, i32) {
    %c0_i32 = arith.constant 0 : i32
    %c0_i32_0 = arith.constant 0 : i32
    %c0_i32_1 = arith.constant 0 : i32
    return %arg0, %c0_i32, %c0_i32_0 : i32, i32, i32
  }
  func.func @transform_22(%arg0: i32) -> (i32, i32, i32) {
    %c0_i32 = arith.constant 0 : i32
    %c0_i32_0 = arith.constant 0 : i32
    %c0_i32_1 = arith.constant 0 : i32
    return %arg0, %c0_i32, %c0_i32_0 : i32, i32, i32
  }
  func.func @transform_23(%arg0: i32) -> (i32, i32, i32) {
    %c0_i32 = arith.constant 0 : i32
    %c0_i32_0 = arith.constant 0 : i32
    %c0_i32_1 = arith.constant 0 : i32
    return %arg0, %c0_i32, %c0_i32_0 : i32, i32, i32
  }
  func.func @transform_24(%arg0: i32) -> (i32, i32, i32) {
    %c0_i32 = arith.constant 0 : i32
    %c0_i32_0 = arith.constant 0 : i32
    %c0_i32_1 = arith.constant 0 : i32
    return %arg0, %c0_i32, %c0_i32_0 : i32, i32, i32
  }
  func.func @transform_25(%arg0: i32) -> (i32, i32, i32) {
    %c0_i32 = arith.constant 0 : i32
    %c0_i32_0 = arith.constant 0 : i32
    %c0_i32_1 = arith.constant 0 : i32
    return %arg0, %c0_i32, %c0_i32_0 : i32, i32, i32
  }
  func.func @transform_26(%arg0: i32) -> (i32, i32, i32) {
    %c0_i32 = arith.constant 0 : i32
    %c0_i32_0 = arith.constant 0 : i32
    %c0_i32_1 = arith.constant 0 : i32
    return %arg0, %c0_i32, %c0_i32_0 : i32, i32, i32
  }
  func.func @transform_27(%arg0: i32) -> (i32, i32, i32) {
    %c0_i32 = arith.constant 0 : i32
    %c0_i32_0 = arith.constant 0 : i32
    %c0_i32_1 = arith.constant 0 : i32
    return %arg0, %c0_i32, %c0_i32_0 : i32, i32, i32
  }
  func.func @transform_28(%arg0: i32) -> (i32, i32) {
    %c0_i32 = arith.constant 0 : i32
    %c0_i32_0 = arith.constant 0 : i32
    %c0_i32_1 = arith.constant 0 : i32
    return %c0_i32, %c0_i32_0 : i32, i32
  }
  func.func @transform_29(%arg0: i32) -> (i32, i32) {
    %c0_i32 = arith.constant 0 : i32
    %c0_i32_0 = arith.constant 0 : i32
    %c0_i32_1 = arith.constant 0 : i32
    return %c0_i32, %c0_i32_0 : i32, i32
  }
  func.func @transform_30(%arg0: i32) -> (i32, i32, i32) {
    %c0_i32 = arith.constant 0 : i32
    %c0_i32_0 = arith.constant 0 : i32
    %c0_i32_1 = arith.constant 0 : i32
    return %arg0, %c0_i32, %c0_i32_0 : i32, i32, i32
  }
}

</mosaic_0001>

<llo_original>
// kernel: tpu_custom_call.1
$region0: #{tpu_custom_call.1}
  #allocation0 [shape = 'u32[]', space=smem, size = 0x4, offset = 0x4, fixed_abs, tag = 'smem constant byte address 0x4 - core index']
  #allocation1 [shape = 'u32[72,128]{1,0:T(1,128)}', space=vmem, size = 0x9000, scoped, tag = 'internal scratch']
  #allocation2 [shape = 'f32[32,32]{1,0:T(8,128)}', space=vmem, size = 0x4000, scoped, tag = 'scratch operand']
  %s0 = inlined_call_operand.smem [shape: u32[31], index: -1, kind: input, shape index: {}]
  %s1 = sld [smem:[%s0]]
  %s2 = scalar_lea.smem %s0, 1
  %s3 = sld [smem:[%s2]]
  %s4 = scalar_lea.smem %s0, 2
  %s5 = sld [smem:[%s4]]
  %s6 = scalar_lea.smem %s0, 3
  %s7 = sld [smem:[%s6]]
  %s8 = scalar_lea.smem %s0, 4
  %s9 = sld [smem:[%s8]]
  %s10 = scalar_lea.smem %s0, 5
  %s11 = sld [smem:[%s10]]
  %s12 = scalar_lea.smem %s0, 6
  %s13 = sld [smem:[%s12]]
  %s14 = scalar_lea.smem %s0, 7
  %s15 = sld [smem:[%s14]]
  %s16 = scalar_lea.smem %s0, 8
  %s17 = sld [smem:[%s16]]
  %s18 = scalar_lea.smem %s0, 9
  %s19 = sld [smem:[%s18]]
  %s20 = scalar_lea.smem %s0, 10
  %s21 = sld [smem:[%s20]]
  %s22 = scalar_lea.smem %s0, 11
  %s23 = sld [smem:[%s22]]
  %s24 = scalar_lea.smem %s0, 12
  %s25 = sld [smem:[%s24]]
  %s26 = scalar_lea.smem %s0, 13
  %s27 = sld [smem:[%s26]]
  %s28 = scalar_lea.smem %s0, 14
  %s29 = sld [smem:[%s28]]
  %s30 = scalar_lea.smem %s0, 15
  %s31 = sld [smem:[%s30]]
  %s32 = scalar_lea.smem %s0, 16
  %s33 = sld [smem:[%s32]]
  %s34 = scalar_lea.smem %s0, 17
  %s35 = sld [smem:[%s34]]
  %s36 = scalar_lea.smem %s0, 18
  %s37 = sld [smem:[%s36]]
  %s38 = scalar_lea.smem %s0, 19
  %s39 = sld [smem:[%s38]]
  %s40 = scalar_lea.smem %s0, 20
  %s41 = sld [smem:[%s40]]
  %s42 = scalar_lea.smem %s0, 21
  %s43 = sld [smem:[%s42]]
  %s44 = scalar_lea.smem %s0, 22
  %s45 = sld [smem:[%s44]]
  %s46 = scalar_lea.smem %s0, 23
  %s47 = sld [smem:[%s46]]
  %s48 = scalar_lea.smem %s0, 24
  %s49 = sld [smem:[%s48]]
  %s50 = scalar_lea.smem %s0, 25
  %s51 = sld [smem:[%s50]]
  %s52 = scalar_lea.smem %s0, 26
  %s53 = sld [smem:[%s52]]
  %s54 = scalar_lea.smem %s0, 27
  %s55 = sld [smem:[%s54]]
  %s56 = scalar_lea.smem %s0, 28
  %s57 = sld [smem:[%s56]]
  %s58 = scalar_lea.smem %s0, 29
  %s59 = sld [smem:[%s58]]
  %s60 = scalar_lea.smem %s0, 30
  %s61 = sld [smem:[%s60]]
  %s62 = sld [smem:[#allocation0]]
  $region197: #{tpu_custom_call.1} parent=0
    _
  %s64 = ssub.s32 1, %s62
  %s65 = scalar_select 0, %s64, %s62
  $region1: #{tpu_custom_call.1} parent=0
    #allocation3 [shape = 'u8[16384]{0}', space=vmem, size = 0x4000, scoped, tag = 'input window, operand 8']
    #allocation4 [shape = 's32[2]{0}', space=sflag, size = 0x8, scoped, tag = 'scoped memory for tpu_custom_call.1']
    #allocation5 [shape = 's32[2]{0}', space=sflag, size = 0x8, scoped, tag = 'scoped memory for tpu_custom_call.1']
    #allocation6 [shape = 'u8[16384]{0}', space=vmem, size = 0x4000, scoped, tag = 'input window, operand 10']
    #allocation7 [shape = 's32[2]{0}', space=sflag, size = 0x8, scoped, tag = 'scoped memory for tpu_custom_call.1']
    #allocation8 [shape = 'u8[16384]{0}', space=vmem, size = 0x4000, scoped, tag = 'input window, operand 12']
    #allocation9 [shape = 'u8[16384]{0}', space=vmem, size = 0x4000, scoped, tag = 'input window, operand 14']
    #allocation10 [shape = 's32[2]{0}', space=sflag, size = 0x8, scoped, tag = 'scoped memory for tpu_custom_call.1']
    #allocation11 [shape = 'u8[16384]{0}', space=vmem, size = 0x4000, scoped, tag = 'input window, operand 16']
    #allocation12 [shape = 'u8[16384]{0}', space=vmem, size = 0x4000, scoped, tag = 'input window, operand 18']
    #allocation13 [shape = 's32[2]{0}', space=sflag, size = 0x8, scoped, tag = 'scoped memory for tpu_custom_call.1']
    #allocation14 [shape = 'u8[1024]{0}', space=vmem, size = 0x400, scoped, tag = 'input window, operand 23']
    #allocation15 [shape = 'u8[1024]{0}', space=vmem, size = 0x400, scoped, tag = 'input window, operand 25']
    #allocation16 [shape = 's32[2]{0}', space=sflag, size = 0x8, scoped, tag = 'scoped memory for tpu_custom_call.1']
    #allocation17 [shape = 'u8[1024]{0}', space=vmem, size = 0x400, scoped, tag = 'input window, operand 26']
    #allocation18 [shape = 'u8[512]{0}', space=vmem, size = 0x400, scoped, tag = 'input window, operand 29, single buffered']
    #allocation19 [shape = 's32[1]{0}', space=sflag, size = 0x4, scoped, tag = 'scoped memory for tpu_custom_call.1']
    #allocation20 [shape = 'u8[16384]{0}', space=vmem, size = 0x4000, scoped, tag = 'output window, operand 0']
    %66 = vsyncpa [#allocation4], 0
    %s67 = scalar_lea.sflag [#allocation4], 1
    %68 = vsyncpa %s67, 0
    %69 = vsyncpa [#allocation7], 0
    %s70 = scalar_lea.sflag [#allocation7], 1
    %71 = vsyncpa %s70, 0
    %72 = vsyncpa [#allocation10], 0
    %s73 = scalar_lea.sflag [#allocation10], 1
    %74 = vsyncpa %s73, 0
    %75 = vsyncpa [#allocation13], 0
    %s76 = scalar_lea.sflag [#allocation13], 1
    %77 = vsyncpa %s76, 0
    %78 = vsyncpa [#allocation16], 0
    %s79 = scalar_lea.sflag [#allocation16], 1
    %80 = vsyncpa %s79, 0
    %81 = vsyncpa [#allocation19], 0
    %82 = vsyncpa [#allocation5], 0
    %s83 = scalar_lea.sflag [#allocation5], 1
    %84 = vsyncpa %s83, 0
    loop: start=0, step=1, limit=4
    $region2: #{tpu_custom_call.1} parent=1 // loop_pre_header
      _
    $region3: #{tpu_custom_call.1} parent=1 // loop_header
      %s86 = sphi 0, %s90
      %p87 = scmp.ge.s32.totalorder %s86, 4
      %s94 = sphi 0, %s94
      %s96 = sphi 0, %s94
      %s97 = sphi 0, %s96
      %s111 = sphi 0, %s97
      %s115 = sphi 0, %s115
      %s117 = sphi 0, %s115
      %s118 = sphi 0, %s117
      %s132 = sphi 0, %s118
      %s136 = sphi 0, %s136
      %s138 = sphi 0, %s136
      %s139 = sphi 0, %s138
      %s153 = sphi 0, %s139
      %s157 = sphi 0, %s157
      %s159 = sphi 0, %s157
      %s160 = sphi 0, %s159
      %s174 = sphi 0, %s160
      %s180 = sphi 0, %s182
      %s183 = sphi 0, %s180
      %s184 = sphi 0, %s183
      %s200 = sphi 0, %s184
      %s206 = sphi 0, %s208
      %s209 = sphi 0, %s206
      %s210 = sphi 0, %s209
      %s226 = sphi 0, %s210
      %s232 = sphi 0, %s234
      %s235 = sphi 0, %s232
      %s236 = sphi 0, %s235
      %s252 = sphi 0, %s236
      %s258 = sphi 0, %s260
      %s261 = sphi 0, %s258
      %s262 = sphi 0, %s261
      %s278 = sphi 0, %s262
      %s284 = sphi 0, %s286
      %s287 = sphi 0, %s284
      %s288 = sphi 0, %s287
      %s304 = sphi 0, %s288
      %s310 = sphi 0, %s312
      %s313 = sphi 0, %s310
      %s314 = sphi 0, %s313
      %s330 = sphi 0, %s314
      %s336 = sphi 0, %s338
      %s339 = sphi 0, %s336
      %s340 = sphi 0, %s339
      %s356 = sphi 0, %s340
      %s362 = sphi 0, %s364
      %s365 = sphi 0, %s362
      %s366 = sphi 0, %s365
      %s382 = sphi 0, %s366
      %s388 = sphi 0, %s390
      %s391 = sphi 0, %s388
      %s392 = sphi 0, %s391
      %s408 = sphi 0, %s392
      %s414 = sphi 0, %s416
      %s417 = sphi 0, %s414
      %s418 = sphi 0, %s417
      %s434 = sphi 0, %s418
      %s440 = sphi 0, %s442
      %s443 = sphi 0, %s440
      %s444 = sphi 0, %s443
      %s460 = sphi 0, %s444
      %s466 = sphi 0, %s468
      %s469 = sphi 0, %s466
      %s470 = sphi 0, %s469
      %s486 = sphi 0, %s470
      %s492 = sphi 0, %s494
      %s495 = sphi 0, %s492
      %s496 = sphi 0, %s495
      %s512 = sphi 0, %s496
      %s518 = sphi 0, %s520
      %s521 = sphi 0, %s518
      %s522 = sphi 0, %s521
      %s538 = sphi 0, %s522
      %s544 = sphi 0, %s546
      %s547 = sphi 0, %s544
      %s548 = sphi 0, %s547
      %s564 = sphi 0, %s548
      %s570 = sphi 0, %s572
      %s573 = sphi 0, %s570
      %s574 = sphi 0, %s573
      %s590 = sphi 0, %s574
      %s596 = sphi 0, %s598
      %s599 = sphi 0, %s596
      %s600 = sphi 0, %s599
      %s616 = sphi 0, %s600
      %s622 = sphi 0, %s624
      %s625 = sphi 0, %s622
      %s626 = sphi 0, %s625
      %s642 = sphi 0, %s626
      %s648 = sphi 0, %s650
      %s651 = sphi 0, %s648
      %s652 = sphi 0, %s651
      %s668 = sphi 0, %s652
      %s674 = sphi 0, %s676
      %s677 = sphi 0, %s674
      %s678 = sphi 0, %s677
      %s694 = sphi 0, %s678
      %s700 = sphi 0, %s702
      %s703 = sphi 0, %s700
      %s704 = sphi 0, %s703
      %s720 = sphi 0, %s704
      %s726 = sphi 0, %s728
      %s729 = sphi 0, %s726
      %s730 = sphi 0, %s729
      %s746 = sphi 0, %s730
      %s752 = sphi 0, %s754
      %s755 = sphi 0, %s752
      %s756 = sphi 0, %s755
      %s772 = sphi 0, %s756
      %s778 = sphi 0, %s780
      %s781 = sphi 0, %s778
      %s782 = sphi 0, %s781
      %s798 = sphi 0, %s782
      %s802 = sphi 0, %s802
      %s804 = sphi 0, %s802
      %s805 = sphi 0, %s804
      %s819 = sphi 0, %s805
      %s823 = sphi 0, %s823
      %s825 = sphi 0, %s823
      %s826 = sphi 0, %s825
      %s840 = sphi 0, %s826
      %s846 = sphi 0, %s848
      %s849 = sphi 0, %s846
      %s850 = sphi 0, %s849
      %s866 = sphi 0, %s850
    $region4: #{tpu_custom_call.1} parent=1 // loop_header_branch
      %89 = sbr.rel (%p87) target = $region8
    $region5: #{tpu_custom_call.1} parent=1 // loop_body
      %s91 = ssub.s32 %s86, 1
      %s92 = ssub.s32 %s86, 2
      %s93 = sadd.s32 %s86, 1
      %s95 = sadd.s32 %s94, 1
      %p98 = scmp.eq.s32.totalorder %s86, 1
      %p99 = scmp.ne.s32.totalorder %s94, %s96
      %p100 = scmp.eq.s32.totalorder %s86, 0
      %p101 = por %p99, %p100
      %p102 = scmp.ne.s32.totalorder %s94, %s96
      %p103 = scmp.eq.s32.totalorder %s91, 1
      %p104 = por %p102, %p103
      %p105 = scmp.ne.s32.totalorder %s96, %s97
      %p106 = scmp.eq.s32.totalorder %s91, 0
      %p107 = por %p105, %p106
      %p108 = scmp.ne.s32.totalorder %s96, %s97
      %p109 = scmp.eq.s32.totalorder %s92, 1
      %p110 = por %p108, %p109
      %p112 = scmp.ne.s32.totalorder %s97, %s111
      %p113 = scmp.eq.s32.totalorder %s92, 0
      %p114 = por %p112, %p113
      %s116 = sadd.s32 %s115, 1
      %p119 = scmp.eq.s32.totalorder %s86, 1
      %p120 = scmp.ne.s32.totalorder %s115, %s117
      %p121 = scmp.eq.s32.totalorder %s86, 0
      %p122 = por %p120, %p121
      %p123 = scmp.ne.s32.totalorder %s115, %s117
      %p124 = scmp.eq.s32.totalorder %s91, 1
      %p125 = por %p123, %p124
      %p126 = scmp.ne.s32.totalorder %s117, %s118
      %p127 = scmp.eq.s32.totalorder %s91, 0
      %p128 = por %p126, %p127
      %p129 = scmp.ne.s32.totalorder %s117, %s118
      %p130 = scmp.eq.s32.totalorder %s92, 1
      %p131 = por %p129, %p130
      %p133 = scmp.ne.s32.totalorder %s118, %s132
      %p134 = scmp.eq.s32.totalorder %s92, 0
      %p135 = por %p133, %p134
      %s137 = sadd.s32 %s136, 1
      %p140 = scmp.eq.s32.totalorder %s86, 1
      %p141 = scmp.ne.s32.totalorder %s136, %s138
      %p142 = scmp.eq.s32.totalorder %s86, 0
      %p143 = por %p141, %p142
      %p144 = scmp.ne.s32.totalorder %s136, %s138
      %p145 = scmp.eq.s32.totalorder %s91, 1
      %p146 = por %p144, %p145
      %p147 = scmp.ne.s32.totalorder %s138, %s139
      %p148 = scmp.eq.s32.totalorder %s91, 0
      %p149 = por %p147, %p148
      %p150 = scmp.ne.s32.totalorder %s138, %s139
      %p151 = scmp.eq.s32.totalorder %s92, 1
      %p152 = por %p150, %p151
      %p154 = scmp.ne.s32.totalorder %s139, %s153
      %p155 = scmp.eq.s32.totalorder %s92, 0
      %p156 = por %p154, %p155
      %s158 = sadd.s32 %s157, 1
      %p161 = scmp.eq.s32.totalorder %s86, 1
      %p162 = scmp.ne.s32.totalorder %s157, %s159
      %p163 = scmp.eq.s32.totalorder %s86, 0
      %p164 = por %p162, %p163
      %p165 = scmp.ne.s32.totalorder %s157, %s159
      %p166 = scmp.eq.s32.totalorder %s91, 1
      %p167 = por %p165, %p166
      %p168 = scmp.ne.s32.totalorder %s159, %s160
      %p169 = scmp.eq.s32.totalorder %s91, 0
      %p170 = por %p168, %p169
      %p171 = scmp.ne.s32.totalorder %s159, %s160
      %p172 = scmp.eq.s32.totalorder %s92, 1
      %p173 = por %p171, %p172
      %p175 = scmp.ne.s32.totalorder %s160, %s174
      %p176 = scmp.eq.s32.totalorder %s92, 0
      %p177 = por %p175, %p176
      %s178 = ssub.s32 %s86, %s93
      %p179 = scmp.eq.s32.totalorder %s178, 0
      %s181 = sadd.s32 %s180, 1
      %s182 = scalar_select %p179, %s180, %s181
      %p185 = pneg %p179
      %p186 = scmp.eq.s32.totalorder %s86, 1
      %p187 = por %p185, %p186
      %p188 = scmp.ne.s32.totalorder %s180, %s183
      %p189 = scmp.eq.s32.totalorder %s86, 0
      %p190 = por %p188, %p189
      %p191 = scmp.ne.s32.totalorder %s180, %s183
      %p192 = scmp.eq.s32.totalorder %s91, 1
      %p193 = por %p191, %p192
      %p194 = scmp.ne.s32.totalorder %s183, %s184
      %p195 = scmp.eq.s32.totalorder %s91, 0
      %p196 = por %p194, %p195
      %p197 = scmp.ne.s32.totalorder %s183, %s184
      %p198 = scmp.eq.s32.totalorder %s92, 1
      %p199 = por %p197, %p198
      %p201 = scmp.ne.s32.totalorder %s184, %s200
      %p202 = scmp.eq.s32.totalorder %s92, 0
      %p203 = por %p201, %p202
      %s204 = ssub.s32 %s86, %s93
      %p205 = scmp.eq.s32.totalorder %s204, 0
      %s207 = sadd.s32 %s206, 1
      %s208 = scalar_select %p205, %s206, %s207
      %p211 = pneg %p205
      %p212 = scmp.eq.s32.totalorder %s86, 1
      %p213 = por %p211, %p212
      %p214 = scmp.ne.s32.totalorder %s206, %s209
      %p215 = scmp.eq.s32.totalorder %s86, 0
      %p216 = por %p214, %p215
      %p217 = scmp.ne.s32.totalorder %s206, %s209
      %p218 = scmp.eq.s32.totalorder %s91, 1
      %p219 = por %p217, %p218
      %p220 = scmp.ne.s32.totalorder %s209, %s210
      %p221 = scmp.eq.s32.totalorder %s91, 0
      %p222 = por %p220, %p221
      %p223 = scmp.ne.s32.totalorder %s209, %s210
      %p224 = scmp.eq.s32.totalorder %s92, 1
      %p225 = por %p223, %p224
      %p227 = scmp.ne.s32.totalorder %s210, %s226
      %p228 = scmp.eq.s32.totalorder %s92, 0
      %p229 = por %p227, %p228
      %s230 = ssub.s32 %s86, %s93
      %p231 = scmp.eq.s32.totalorder %s230, 0
      %s233 = sadd.s32 %s232, 1
      %s234 = scalar_select %p231, %s232, %s233
      %p237 = pneg %p231
      %p238 = scmp.eq.s32.totalorder %s86, 1
      %p239 = por %p237, %p238
      %p240 = scmp.ne.s32.totalorder %s232, %s235
      %p241 = scmp.eq.s32.totalorder %s86, 0
      %p242 = por %p240, %p241
      %p243 = scmp.ne.s32.totalorder %s232, %s235
      %p244 = scmp.eq.s32.totalorder %s91, 1
      %p245 = por %p243, %p244
      %p246 = scmp.ne.s32.totalorder %s235, %s236
      %p247 = scmp.eq.s32.totalorder %s91, 0
      %p248 = por %p246, %p247
      %p249 = scmp.ne.s32.totalorder %s235, %s236
      %p250 = scmp.eq.s32.totalorder %s92, 1
      %p251 = por %p249, %p250
      %p253 = scmp.ne.s32.totalorder %s236, %s252
      %p254 = scmp.eq.s32.totalorder %s92, 0
      %p255 = por %p253, %p254
      %s256 = ssub.s32 %s86, %s93
      %p257 = scmp.eq.s32.totalorder %s256, 0
      %s259 = sadd.s32 %s258, 1
      %s260 = scalar_select %p257, %s258, %s259
      %p263 = pneg %p257
      %p264 = scmp.eq.s32.totalorder %s86, 1
      %p265 = por %p263, %p264
      %p266 = scmp.ne.s32.totalorder %s258, %s261
      %p267 = scmp.eq.s32.totalorder %s86, 0
      %p268 = por %p266, %p267
      %p269 = scmp.ne.s32.totalorder %s258, %s261
      %p270 = scmp.eq.s32.totalorder %s91, 1
      %p271 = por %p269, %p270
      %p272 = scmp.ne.s32.totalorder %s261, %s262
      %p273 = scmp.eq.s32.totalorder %s91, 0
      %p274 = por %p272, %p273
      %p275 = scmp.ne.s32.totalorder %s261, %s262
      %p276 = scmp.eq.s32.totalorder %s92, 1
      %p277 = por %p275, %p276
      %p279 = scmp.ne.s32.totalorder %s262, %s278
      %p280 = scmp.eq.s32.totalorder %s92, 0
      %p281 = por %p279, %p280
      %s282 = ssub.s32 %s86, %s93
      %p283 = scmp.eq.s32.totalorder %s282, 0
      %s285 = sadd.s32 %s284, 1
      %s286 = scalar_select %p283, %s284, %s285
      %p289 = pneg %p283
      %p290 = scmp.eq.s32.totalorder %s86, 1
      %p291 = por %p289, %p290
      %p292 = scmp.ne.s32.totalorder %s284, %s287
      %p293 = scmp.eq.s32.totalorder %s86, 0
      %p294 = por %p292, %p293
      %p295 = scmp.ne.s32.totalorder %s284, %s287
      %p296 = scmp.eq.s32.totalorder %s91, 1
      %p297 = por %p295, %p296
      %p298 = scmp.ne.s32.totalorder %s287, %s288
      %p299 = scmp.eq.s32.totalorder %s91, 0
      %p300 = por %p298, %p299
      %p301 = scmp.ne.s32.totalorder %s287, %s288
      %p302 = scmp.eq.s32.totalorder %s92, 1
      %p303 = por %p301, %p302
      %p305 = scmp.ne.s32.totalorder %s288, %s304
      %p306 = scmp.eq.s32.totalorder %s92, 0
      %p307 = por %p305, %p306
      %s308 = ssub.s32 %s86, %s93
      %p309 = scmp.eq.s32.totalorder %s308, 0
      %s311 = sadd.s32 %s310, 1
      %s312 = scalar_select %p309, %s310, %s311
      %p315 = pneg %p309
      %p316 = scmp.eq.s32.totalorder %s86, 1
      %p317 = por %p315, %p316
      %p318 = scmp.ne.s32.totalorder %s310, %s313
      %p319 = scmp.eq.s32.totalorder %s86, 0
      %p320 = por %p318, %p319
      %p321 = scmp.ne.s32.totalorder %s310, %s313
      %p322 = scmp.eq.s32.totalorder %s91, 1
      %p323 = por %p321, %p322
      %p324 = scmp.ne.s32.totalorder %s313, %s314
      %p325 = scmp.eq.s32.totalorder %s91, 0
      %p326 = por %p324, %p325
      %p327 = scmp.ne.s32.totalorder %s313, %s314
      %p328 = scmp.eq.s32.totalorder %s92, 1
      %p329 = por %p327, %p328
      %p331 = scmp.ne.s32.totalorder %s314, %s330
      %p332 = scmp.eq.s32.totalorder %s92, 0
      %p333 = por %p331, %p332
      %s334 = ssub.s32 %s86, %s93
      %p335 = scmp.eq.s32.totalorder %s334, 0
      %s337 = sadd.s32 %s336, 1
      %s338 = scalar_select %p335, %s336, %s337
      %p341 = pneg %p335
      %p342 = scmp.eq.s32.totalorder %s86, 1
      %p343 = por %p341, %p342
      %p344 = scmp.ne.s32.totalorder %s336, %s339
      %p345 = scmp.eq.s32.totalorder %s86, 0
      %p346 = por %p344, %p345
      %p347 = scmp.ne.s32.totalorder %s336, %s339
      %p348 = scmp.eq.s32.totalorder %s91, 1
      %p349 = por %p347, %p348
      %p350 = scmp.ne.s32.totalorder %s339, %s340
      %p351 = scmp.eq.s32.totalorder %s91, 0
      %p352 = por %p350, %p351
      %p353 = scmp.ne.s32.totalorder %s339, %s340
      %p354 = scmp.eq.s32.totalorder %s92, 1
      %p355 = por %p353, %p354
      %p357 = scmp.ne.s32.totalorder %s340, %s356
      %p358 = scmp.eq.s32.totalorder %s92, 0
      %p359 = por %p357, %p358
      %s360 = ssub.s32 %s86, %s93
      %p361 = scmp.eq.s32.totalorder %s360, 0
      %s363 = sadd.s32 %s362, 1
      %s364 = scalar_select %p361, %s362, %s363
      %p367 = pneg %p361
      %p368 = scmp.eq.s32.totalorder %s86, 1
      %p369 = por %p367, %p368
      %p370 = scmp.ne.s32.totalorder %s362, %s365
      %p371 = scmp.eq.s32.totalorder %s86, 0
      %p372 = por %p370, %p371
      %p373 = scmp.ne.s32.totalorder %s362, %s365
      %p374 = scmp.eq.s32.totalorder %s91, 1
      %p375 = por %p373, %p374
      %p376 = scmp.ne.s32.totalorder %s365, %s366
      %p377 = scmp.eq.s32.totalorder %s91, 0
      %p378 = por %p376, %p377
      %p379 = scmp.ne.s32.totalorder %s365, %s366
      %p380 = scmp.eq.s32.totalorder %s92, 1
      %p381 = por %p379, %p380
      %p383 = scmp.ne.s32.totalorder %s366, %s382
      %p384 = scmp.eq.s32.totalorder %s92, 0
      %p385 = por %p383, %p384
      %s386 = ssub.s32 %s86, %s93
      %p387 = scmp.eq.s32.totalorder %s386, 0
      %s389 = sadd.s32 %s388, 1
      %s390 = scalar_select %p387, %s388, %s389
      %p393 = pneg %p387
      %p394 = scmp.eq.s32.totalorder %s86, 1
      %p395 = por %p393, %p394
      %p396 = scmp.ne.s32.totalorder %s388, %s391
      %p397 = scmp.eq.s32.totalorder %s86, 0
      %p398 = por %p396, %p397
      %p399 = scmp.ne.s32.totalorder %s388, %s391
      %p400 = scmp.eq.s32.totalorder %s91, 1
      %p401 = por %p399, %p400
      %p402 = scmp.ne.s32.totalorder %s391, %s392
      %p403 = scmp.eq.s32.totalorder %s91, 0
      %p404 = por %p402, %p403
      %p405 = scmp.ne.s32.totalorder %s391, %s392
      %p406 = scmp.eq.s32.totalorder %s92, 1
      %p407 = por %p405, %p406
      %p409 = scmp.ne.s32.totalorder %s392, %s408
      %p410 = scmp.eq.s32.totalorder %s92, 0
      %p411 = por %p409, %p410
      %s412 = ssub.s32 %s86, %s93
      %p413 = scmp.eq.s32.totalorder %s412, 0
      %s415 = sadd.s32 %s414, 1
      %s416 = scalar_select %p413, %s414, %s415
      %p419 = pneg %p413
      %p420 = scmp.eq.s32.totalorder %s86, 1
      %p421 = por %p419, %p420
      %p422 = scmp.ne.s32.totalorder %s414, %s417
      %p423 = scmp.eq.s32.totalorder %s86, 0
      %p424 = por %p422, %p423
      %p425 = scmp.ne.s32.totalorder %s414, %s417
      %p426 = scmp.eq.s32.totalorder %s91, 1
      %p427 = por %p425, %p426
      %p428 = scmp.ne.s32.totalorder %s417, %s418
      %p429 = scmp.eq.s32.totalorder %s91, 0
      %p430 = por %p428, %p429
      %p431 = scmp.ne.s32.totalorder %s417, %s418
      %p432 = scmp.eq.s32.totalorder %s92, 1
      %p433 = por %p431, %p432
      %p435 = scmp.ne.s32.totalorder %s418, %s434
      %p436 = scmp.eq.s32.totalorder %s92, 0
      %p437 = por %p435, %p436
      %s438 = ssub.s32 %s86, %s93
      %p439 = scmp.eq.s32.totalorder %s438, 0
      %s441 = sadd.s32 %s440, 1
      %s442 = scalar_select %p439, %s440, %s441
      %p445 = pneg %p439
      %p446 = scmp.eq.s32.totalorder %s86, 1
      %p447 = por %p445, %p446
      %p448 = scmp.ne.s32.totalorder %s440, %s443
      %p449 = scmp.eq.s32.totalorder %s86, 0
      %p450 = por %p448, %p449
      %p451 = scmp.ne.s32.totalorder %s440, %s443
      %p452 = scmp.eq.s32.totalorder %s91, 1
      %p453 = por %p451, %p452
      %p454 = scmp.ne.s32.totalorder %s443, %s444
      %p455 = scmp.eq.s32.totalorder %s91, 0
      %p456 = por %p454, %p455
      %p457 = scmp.ne.s32.totalorder %s443, %s444
      %p458 = scmp.eq.s32.totalorder %s92, 1
      %p459 = por %p457, %p458
      %p461 = scmp.ne.s32.totalorder %s444, %s460
      %p462 = scmp.eq.s32.totalorder %s92, 0
      %p463 = por %p461, %p462
      %s464 = ssub.s32 %s86, %s93
      %p465 = scmp.eq.s32.totalorder %s464, 0
      %s467 = sadd.s32 %s466, 1
      %s468 = scalar_select %p465, %s466, %s467
      %p471 = pneg %p465
      %p472 = scmp.eq.s32.totalorder %s86, 1
      %p473 = por %p471, %p472
      %p474 = scmp.ne.s32.totalorder %s466, %s469
      %p475 = scmp.eq.s32.totalorder %s86, 0
      %p476 = por %p474, %p475
      %p477 = scmp.ne.s32.totalorder %s466, %s469
      %p478 = scmp.eq.s32.totalorder %s91, 1
      %p479 = por %p477, %p478
      %p480 = scmp.ne.s32.totalorder %s469, %s470
      %p481 = scmp.eq.s32.totalorder %s91, 0
      %p482 = por %p480, %p481
      %p483 = scmp.ne.s32.totalorder %s469, %s470
      %p484 = scmp.eq.s32.totalorder %s92, 1
      %p485 = por %p483, %p484
      %p487 = scmp.ne.s32.totalorder %s470, %s486
      %p488 = scmp.eq.s32.totalorder %s92, 0
      %p489 = por %p487, %p488
      %s490 = ssub.s32 %s86, %s93
      %p491 = scmp.eq.s32.totalorder %s490, 0
      %s493 = sadd.s32 %s492, 1
      %s494 = scalar_select %p491, %s492, %s493
      %p497 = pneg %p491
      %p498 = scmp.eq.s32.totalorder %s86, 1
      %p499 = por %p497, %p498
      %p500 = scmp.ne.s32.totalorder %s492, %s495
      %p501 = scmp.eq.s32.totalorder %s86, 0
      %p502 = por %p500, %p501
      %p503 = scmp.ne.s32.totalorder %s492, %s495
      %p504 = scmp.eq.s32.totalorder %s91, 1
      %p505 = por %p503, %p504
      %p506 = scmp.ne.s32.totalorder %s495, %s496
      %p507 = scmp.eq.s32.totalorder %s91, 0
      %p508 = por %p506, %p507
      %p509 = scmp.ne.s32.totalorder %s495, %s496
      %p510 = scmp.eq.s32.totalorder %s92, 1
      %p511 = por %p509, %p510
      %p513 = scmp.ne.s32.totalorder %s496, %s512
      %p514 = scmp.eq.s32.totalorder %s92, 0
      %p515 = por %p513, %p514
      %s516 = ssub.s32 %s86, %s93
      %p517 = scmp.eq.s32.totalorder %s516, 0
      %s519 = sadd.s32 %s518, 1
      %s520 = scalar_select %p517, %s518, %s519
      %p523 = pneg %p517
      %p524 = scmp.eq.s32.totalorder %s86, 1
      %p525 = por %p523, %p524
      %p526 = scmp.ne.s32.totalorder %s518, %s521
      %p527 = scmp.eq.s32.totalorder %s86, 0
      %p528 = por %p526, %p527
      %p529 = scmp.ne.s32.totalorder %s518, %s521
      %p530 = scmp.eq.s32.totalorder %s91, 1
      %p531 = por %p529, %p530
      %p532 = scmp.ne.s32.totalorder %s521, %s522
      %p533 = scmp.eq.s32.totalorder %s91, 0
      %p534 = por %p532, %p533
      %p535 = scmp.ne.s32.totalorder %s521, %s522
      %p536 = scmp.eq.s32.totalorder %s92, 1
      %p537 = por %p535, %p536
      %p539 = scmp.ne.s32.totalorder %s522, %s538
      %p540 = scmp.eq.s32.totalorder %s92, 0
      %p541 = por %p539, %p540
      %s542 = ssub.s32 %s86, %s93
      %p543 = scmp.eq.s32.totalorder %s542, 0
      %s545 = sadd.s32 %s544, 1
      %s546 = scalar_select %p543, %s544, %s545
      %p549 = pneg %p543
      %p550 = scmp.eq.s32.totalorder %s86, 1
      %p551 = por %p549, %p550
      %p552 = scmp.ne.s32.totalorder %s544, %s547
      %p553 = scmp.eq.s32.totalorder %s86, 0
      %p554 = por %p552, %p553
      %p555 = scmp.ne.s32.totalorder %s544, %s547
      %p556 = scmp.eq.s32.totalorder %s91, 1
      %p557 = por %p555, %p556
      %p558 = scmp.ne.s32.totalorder %s547, %s548
      %p559 = scmp.eq.s32.totalorder %s91, 0
      %p560 = por %p558, %p559
      %p561 = scmp.ne.s32.totalorder %s547, %s548
      %p562 = scmp.eq.s32.totalorder %s92, 1
      %p563 = por %p561, %p562
      %p565 = scmp.ne.s32.totalorder %s548, %s564
      %p566 = scmp.eq.s32.totalorder %s92, 0
      %p567 = por %p565, %p566
      %s568 = ssub.s32 %s86, %s93
      %p569 = scmp.eq.s32.totalorder %s568, 0
      %s571 = sadd.s32 %s570, 1
      %s572 = scalar_select %p569, %s570, %s571
      %p575 = pneg %p569
      %p576 = scmp.eq.s32.totalorder %s86, 1
      %p577 = por %p575, %p576
      %p578 = scmp.ne.s32.totalorder %s570, %s573
      %p579 = scmp.eq.s32.totalorder %s86, 0
      %p580 = por %p578, %p579
      %p581 = scmp.ne.s32.totalorder %s570, %s573
      %p582 = scmp.eq.s32.totalorder %s91, 1
      %p583 = por %p581, %p582
      %p584 = scmp.ne.s32.totalorder %s573, %s574
      %p585 = scmp.eq.s32.totalorder %s91, 0
      %p586 = por %p584, %p585
      %p587 = scmp.ne.s32.totalorder %s573, %s574
      %p588 = scmp.eq.s32.totalorder %s92, 1
      %p589 = por %p587, %p588
      %p591 = scmp.ne.s32.totalorder %s574, %s590
      %p592 = scmp.eq.s32.totalorder %s92, 0
      %p593 = por %p591, %p592
      %s594 = ssub.s32 %s86, %s93
      %p595 = scmp.eq.s32.totalorder %s594, 0
      %s597 = sadd.s32 %s596, 1
      %s598 = scalar_select %p595, %s596, %s597
      %p601 = pneg %p595
      %p602 = scmp.eq.s32.totalorder %s86, 1
      %p603 = por %p601, %p602
      %p604 = scmp.ne.s32.totalorder %s596, %s599
      %p605 = scmp.eq.s32.totalorder %s86, 0
      %p606 = por %p604, %p605
      %p607 = scmp.ne.s32.totalorder %s596, %s599
      %p608 = scmp.eq.s32.totalorder %s91, 1
      %p609 = por %p607, %p608
      %p610 = scmp.ne.s32.totalorder %s599, %s600
      %p611 = scmp.eq.s32.totalorder %s91, 0
      %p612 = por %p610, %p611
      %p613 = scmp.ne.s32.totalorder %s599, %s600
      %p614 = scmp.eq.s32.totalorder %s92, 1
      %p615 = por %p613, %p614
      %p617 = scmp.ne.s32.totalorder %s600, %s616
      %p618 = scmp.eq.s32.totalorder %s92, 0
      %p619 = por %p617, %p618
      %s620 = ssub.s32 %s86, %s93
      %p621 = scmp.eq.s32.totalorder %s620, 0
      %s623 = sadd.s32 %s622, 1
      %s624 = scalar_select %p621, %s622, %s623
      %p627 = pneg %p621
      %p628 = scmp.eq.s32.totalorder %s86, 1
      %p629 = por %p627, %p628
      %p630 = scmp.ne.s32.totalorder %s622, %s625
      %p631 = scmp.eq.s32.totalorder %s86, 0
      %p632 = por %p630, %p631
      %p633 = scmp.ne.s32.totalorder %s622, %s625
      %p634 = scmp.eq.s32.totalorder %s91, 1
      %p635 = por %p633, %p634
      %p636 = scmp.ne.s32.totalorder %s625, %s626
      %p637 = scmp.eq.s32.totalorder %s91, 0
      %p638 = por %p636, %p637
      %p639 = scmp.ne.s32.totalorder %s625, %s626
      %p640 = scmp.eq.s32.totalorder %s92, 1
      %p641 = por %p639, %p640
      %p643 = scmp.ne.s32.totalorder %s626, %s642
      %p644 = scmp.eq.s32.totalorder %s92, 0
      %p645 = por %p643, %p644
      %s646 = ssub.s32 %s86, %s93
      %p647 = scmp.eq.s32.totalorder %s646, 0
      %s649 = sadd.s32 %s648, 1
      %s650 = scalar_select %p647, %s648, %s649
      %p653 = pneg %p647
      %p654 = scmp.eq.s32.totalorder %s86, 1
      %p655 = por %p653, %p654
      %p656 = scmp.ne.s32.totalorder %s648, %s651
      %p657 = scmp.eq.s32.totalorder %s86, 0
      %p658 = por %p656, %p657
      %p659 = scmp.ne.s32.totalorder %s648, %s651
      %p660 = scmp.eq.s32.totalorder %s91, 1
      %p661 = por %p659, %p660
      %p662 = scmp.ne.s32.totalorder %s651, %s652
      %p663 = scmp.eq.s32.totalorder %s91, 0
      %p664 = por %p662, %p663
      %p665 = scmp.ne.s32.totalorder %s651, %s652
      %p666 = scmp.eq.s32.totalorder %s92, 1
      %p667 = por %p665, %p666
      %p669 = scmp.ne.s32.totalorder %s652, %s668
      %p670 = scmp.eq.s32.totalorder %s92, 0
      %p671 = por %p669, %p670
      %s672 = ssub.s32 %s86, %s93
      %p673 = scmp.eq.s32.totalorder %s672, 0
      %s675 = sadd.s32 %s674, 1
      %s676 = scalar_select %p673, %s674, %s675
      %p679 = pneg %p673
      %p680 = scmp.eq.s32.totalorder %s86, 1
      %p681 = por %p679, %p680
      %p682 = scmp.ne.s32.totalorder %s674, %s677
      %p683 = scmp.eq.s32.totalorder %s86, 0
      %p684 = por %p682, %p683
      %p685 = scmp.ne.s32.totalorder %s674, %s677
      %p686 = scmp.eq.s32.totalorder %s91, 1
      %p687 = por %p685, %p686
      %p688 = scmp.ne.s32.totalorder %s677, %s678
      %p689 = scmp.eq.s32.totalorder %s91, 0
      %p690 = por %p688, %p689
      %p691 = scmp.ne.s32.totalorder %s677, %s678
      %p692 = scmp.eq.s32.totalorder %s92, 1
      %p693 = por %p691, %p692
      %p695 = scmp.ne.s32.totalorder %s678, %s694
      %p696 = scmp.eq.s32.totalorder %s92, 0
      %p697 = por %p695, %p696
      %s698 = ssub.s32 %s86, %s93
      %p699 = scmp.eq.s32.totalorder %s698, 0
      %s701 = sadd.s32 %s700, 1
      %s702 = scalar_select %p699, %s700, %s701
      %p705 = pneg %p699
      %p706 = scmp.eq.s32.totalorder %s86, 1
      %p707 = por %p705, %p706
      %p708 = scmp.ne.s32.totalorder %s700, %s703
      %p709 = scmp.eq.s32.totalorder %s86, 0
      %p710 = por %p708, %p709
      %p711 = scmp.ne.s32.totalorder %s700, %s703
      %p712 = scmp.eq.s32.totalorder %s91, 1
      %p713 = por %p711, %p712
      %p714 = scmp.ne.s32.totalorder %s703, %s704
      %p715 = scmp.eq.s32.totalorder %s91, 0
      %p716 = por %p714, %p715
      %p717 = scmp.ne.s32.totalorder %s703, %s704
      %p718 = scmp.eq.s32.totalorder %s92, 1
      %p719 = por %p717, %p718
      %p721 = scmp.ne.s32.totalorder %s704, %s720
      %p722 = scmp.eq.s32.totalorder %s92, 0
      %p723 = por %p721, %p722
      %s724 = ssub.s32 %s86, %s93
      %p725 = scmp.eq.s32.totalorder %s724, 0
      %s727 = sadd.s32 %s726, 1
      %s728 = scalar_select %p725, %s726, %s727
      %p731 = pneg %p725
      %p732 = scmp.eq.s32.totalorder %s86, 1
      %p733 = por %p731, %p732
      %p734 = scmp.ne.s32.totalorder %s726, %s729
      %p735 = scmp.eq.s32.totalorder %s86, 0
      %p736 = por %p734, %p735
      %p737 = scmp.ne.s32.totalorder %s726, %s729
      %p738 = scmp.eq.s32.totalorder %s91, 1
      %p739 = por %p737, %p738
      %p740 = scmp.ne.s32.totalorder %s729, %s730
      %p741 = scmp.eq.s32.totalorder %s91, 0
      %p742 = por %p740, %p741
      %p743 = scmp.ne.s32.totalorder %s729, %s730
      %p744 = scmp.eq.s32.totalorder %s92, 1
      %p745 = por %p743, %p744
      %p747 = scmp.ne.s32.totalorder %s730, %s746
      %p748 = scmp.eq.s32.totalorder %s92, 0
      %p749 = por %p747, %p748
      %s750 = ssub.s32 %s86, %s93
      %p751 = scmp.eq.s32.totalorder %s750, 0
      %s753 = sadd.s32 %s752, 1
      %s754 = scalar_select %p751, %s752, %s753
      %p757 = pneg %p751
      %p758 = scmp.eq.s32.totalorder %s86, 1
      %p759 = por %p757, %p758
      %p760 = scmp.ne.s32.totalorder %s752, %s755
      %p761 = scmp.eq.s32.totalorder %s86, 0
      %p762 = por %p760, %p761
      %p763 = scmp.ne.s32.totalorder %s752, %s755
      %p764 = scmp.eq.s32.totalorder %s91, 1
      %p765 = por %p763, %p764
      %p766 = scmp.ne.s32.totalorder %s755, %s756
      %p767 = scmp.eq.s32.totalorder %s91, 0
      %p768 = por %p766, %p767
      %p769 = scmp.ne.s32.totalorder %s755, %s756
      %p770 = scmp.eq.s32.totalorder %s92, 1
      %p771 = por %p769, %p770
      %p773 = scmp.ne.s32.totalorder %s756, %s772
      %p774 = scmp.eq.s32.totalorder %s92, 0
      %p775 = por %p773, %p774
      %s776 = ssub.s32 %s86, %s93
      %p777 = scmp.eq.s32.totalorder %s776, 0
      %s779 = sadd.s32 %s778, 1
      %s780 = scalar_select %p777, %s778, %s779
      %p783 = pneg %p777
      %p784 = scmp.eq.s32.totalorder %s86, 1
      %p785 = por %p783, %p784
      %p786 = scmp.ne.s32.totalorder %s778, %s781
      %p787 = scmp.eq.s32.totalorder %s86, 0
      %p788 = por %p786, %p787
      %p789 = scmp.ne.s32.totalorder %s778, %s781
      %p790 = scmp.eq.s32.totalorder %s91, 1
      %p791 = por %p789, %p790
      %p792 = scmp.ne.s32.totalorder %s781, %s782
      %p793 = scmp.eq.s32.totalorder %s91, 0
      %p794 = por %p792, %p793
      %p795 = scmp.ne.s32.totalorder %s781, %s782
      %p796 = scmp.eq.s32.totalorder %s92, 1
      %p797 = por %p795, %p796
      %p799 = scmp.ne.s32.totalorder %s782, %s798
      %p800 = scmp.eq.s32.totalorder %s92, 0
      %p801 = por %p799, %p800
      %s803 = sadd.s32 %s802, 1
      %p806 = scmp.eq.s32.totalorder %s86, 1
      %p807 = scmp.ne.s32.totalorder %s802, %s804
      %p808 = scmp.eq.s32.totalorder %s86, 0
      %p809 = por %p807, %p808
      %p810 = scmp.ne.s32.totalorder %s802, %s804
      %p811 = scmp.eq.s32.totalorder %s91, 1
      %p812 = por %p810, %p811
      %p813 = scmp.ne.s32.totalorder %s804, %s805
      %p814 = scmp.eq.s32.totalorder %s91, 0
      %p815 = por %p813, %p814
      %p816 = scmp.ne.s32.totalorder %s804, %s805
      %p817 = scmp.eq.s32.totalorder %s92, 1
      %p818 = por %p816, %p817
      %p820 = scmp.ne.s32.totalorder %s805, %s819
      %p821 = scmp.eq.s32.totalorder %s92, 0
      %p822 = por %p820, %p821
      %s824 = sadd.s32 %s823, 1
      %p827 = scmp.eq.s32.totalorder %s86, 1
      %p828 = scmp.ne.s32.totalorder %s823, %s825
      %p829 = scmp.eq.s32.totalorder %s86, 0
      %p830 = por %p828, %p829
      %p831 = scmp.ne.s32.totalorder %s823, %s825
      %p832 = scmp.eq.s32.totalorder %s91, 1
      %p833 = por %p831, %p832
      %p834 = scmp.ne.s32.totalorder %s825, %s826
      %p835 = scmp.eq.s32.totalorder %s91, 0
      %p836 = por %p834, %p835
      %p837 = scmp.ne.s32.totalorder %s825, %s826
      %p838 = scmp.eq.s32.totalorder %s92, 1
      %p839 = por %p837, %p838
      %p841 = scmp.ne.s32.totalorder %s826, %s840
      %p842 = scmp.eq.s32.totalorder %s92, 0
      %p843 = por %p841, %p842
      %s844 = ssub.s32 %s86, %s93
      %p845 = scmp.eq.s32.totalorder %s844, 0
      %s847 = sadd.s32 %s846, 1
      %s848 = scalar_select %p845, %s846, %s847
      %p851 = pneg %p845
      %p852 = scmp.eq.s32.totalorder %s86, 1
      %p853 = por %p851, %p852
      %p854 = scmp.ne.s32.totalorder %s846, %s849
      %p855 = scmp.eq.s32.totalorder %s86, 0
      %p856 = por %p854, %p855
      %p857 = scmp.ne.s32.totalorder %s846, %s849
      %p858 = scmp.eq.s32.totalorder %s91, 1
      %p859 = por %p857, %p858
      %p860 = scmp.ne.s32.totalorder %s849, %s850
      %p861 = scmp.eq.s32.totalorder %s91, 0
      %p862 = por %p860, %p861
      %p863 = scmp.ne.s32.totalorder %s849, %s850
      %p864 = scmp.eq.s32.totalorder %s92, 1
      %p865 = por %p863, %p864
      %p867 = scmp.ne.s32.totalorder %s850, %s866
      %p868 = scmp.eq.s32.totalorder %s92, 0
      %p869 = por %p867, %p868
      %p870 = scmp.le.s32.totalorder 1, %s86
      %p871 = scmp.lt.s32.totalorder %s86, 3
      %p872 = pnand %p870, %p871
      %p873 = pneg %p872
      // Predicated region
      $region9: #{tpu_custom_call.1} parent=5 // pred_check
        _
      $region10: #{tpu_custom_call.1} parent=5 // pred_check_branch
        %875 = sbr.rel (%p872) target = $region12
      $region11: #{tpu_custom_call.1} parent=5 // pred_region
        %s876 = ssub.s32 %s86, 1
        // Predicated region
        $region13: #{tpu_custom_call.1} parent=11 // pred_check
          %p877 = pneg %p107
        $region14: #{tpu_custom_call.1} parent=11 // pred_check_branch
          %879 = sbr.rel (%p877) target = $region16
        $region15: #{tpu_custom_call.1} parent=11 // pred_region
          _
        $region16: #{tpu_custom_call.1} parent=11 // pred_fallthru
          _
        // Predicated region
        $region17: #{tpu_custom_call.1} parent=11 // pred_check
          %p880 = pneg %p128
        $region18: #{tpu_custom_call.1} parent=11 // pred_check_branch
          %882 = sbr.rel (%p880) target = $region20
        $region19: #{tpu_custom_call.1} parent=11 // pred_region
          _
        $region20: #{tpu_custom_call.1} parent=11 // pred_fallthru
          _
        // Predicated region
        $region21: #{tpu_custom_call.1} parent=11 // pred_check
          %p883 = pneg %p149
        $region22: #{tpu_custom_call.1} parent=11 // pred_check_branch
          %885 = sbr.rel (%p883) target = $region24
        $region23: #{tpu_custom_call.1} parent=11 // pred_region
          _
        $region24: #{tpu_custom_call.1} parent=11 // pred_fallthru
          _
        // Predicated region
        $region25: #{tpu_custom_call.1} parent=11 // pred_check
          %p886 = pneg %p170
        $region26: #{tpu_custom_call.1} parent=11 // pred_check_branch
          %888 = sbr.rel (%p886) target = $region28
        $region27: #{tpu_custom_call.1} parent=11 // pred_region
          _
        $region28: #{tpu_custom_call.1} parent=11 // pred_fallthru
          _
        // Predicated region
        $region29: #{tpu_custom_call.1} parent=11 // pred_check
          %p889 = pneg %p815
        $region30: #{tpu_custom_call.1} parent=11 // pred_check_branch
          %891 = sbr.rel (%p889) target = $region32
        $region31: #{tpu_custom_call.1} parent=11 // pred_region
          _
        $region32: #{tpu_custom_call.1} parent=11 // pred_fallthru
          _
        // Predicated region
        $region33: #{tpu_custom_call.1} parent=11 // pred_check
          %p892 = pneg %p836
        $region34: #{tpu_custom_call.1} parent=11 // pred_check_branch
          %894 = sbr.rel (%p892) target = $region36
        $region35: #{tpu_custom_call.1} parent=11 // pred_region
          %896 = vsyncadd [#allocation19], 0
          %s898 = sshll.u32 %s59, 4
          %s899 = int_to_ptr.hbm [resolvable:$true] %s898
          %s900 = sshll.u32 [#allocation18], 4
          %s901 = int_to_ptr.vmem [resolvable:$true] %s900
          %903 = dma.hbm_to_vmem [thread:$0]  %s899, 16, %s901, [#allocation19]
        $region36: #{tpu_custom_call.1} parent=11 // pred_fallthru
          _
      $region12: #{tpu_custom_call.1} parent=5 // pred_fallthru
        _
      %p904 = scmp.lt.s32.totalorder %s86, 2
      // Predicated region
      $region37: #{tpu_custom_call.1} parent=5 // pred_check
        %p905 = pneg %p904
      $region38: #{tpu_custom_call.1} parent=5 // pred_check_branch
        %907 = sbr.rel (%p905) target = $region40
      $region39: #{tpu_custom_call.1} parent=5 // pred_region
        // Predicated region
        $region41: #{tpu_custom_call.1} parent=39 // pred_check
          %p908 = pneg %p190
        $region42: #{tpu_custom_call.1} parent=39 // pred_check_branch
          %910 = sbr.rel (%p908) target = $region44
        $region43: #{tpu_custom_call.1} parent=39 // pred_region
          %p911 = scmp.lt.s32.totalorder %s86, 1
          %s912 = scalar_select %p911, %s86, 1
          %s913 = smul.addr %s912, 4
          %s914 = smul.addr %s913, 4
          %s915 = scalar_lea.vmem %s9, %s914
        $region44: #{tpu_custom_call.1} parent=39 // pred_fallthru
          _
        // Predicated region
        $region45: #{tpu_custom_call.1} parent=39 // pred_check
          %p916 = pneg %p216
        $region46: #{tpu_custom_call.1} parent=39 // pred_check_branch
          %918 = sbr.rel (%p916) target = $region48
        $region47: #{tpu_custom_call.1} parent=39 // pred_region
          %p919 = scmp.lt.s32.totalorder %s86, 1
          %s920 = scalar_select %p919, %s86, 1
          %s921 = scalar_lea.vmem %s11, %s920
        $region48: #{tpu_custom_call.1} parent=39 // pred_fallthru
          _
        // Predicated region
        $region49: #{tpu_custom_call.1} parent=39 // pred_check
          %p922 = pneg %p242
        $region50: #{tpu_custom_call.1} parent=39 // pred_check_branch
          %924 = sbr.rel (%p922) target = $region52
        $region51: #{tpu_custom_call.1} parent=39 // pred_region
          %p925 = scmp.lt.s32.totalorder %s86, 1
          %s926 = scalar_select %p925, %s86, 1
          %s927 = smul.addr %s926, 4
          %s928 = smul.addr %s927, 4
          %s929 = scalar_lea.vmem %s13, %s928
        $region52: #{tpu_custom_call.1} parent=39 // pred_fallthru
          _
        // Predicated region
        $region53: #{tpu_custom_call.1} parent=39 // pred_check
          %p930 = pneg %p268
        $region54: #{tpu_custom_call.1} parent=39 // pred_check_branch
          %932 = sbr.rel (%p930) target = $region56
        $region55: #{tpu_custom_call.1} parent=39 // pred_region
          %p933 = scmp.lt.s32.totalorder %s86, 1
          %s934 = scalar_select %p933, %s86, 1
          %s935 = scalar_lea.vmem %s15, %s934
        $region56: #{tpu_custom_call.1} parent=39 // pred_fallthru
          _
        // Predicated region
        $region57: #{tpu_custom_call.1} parent=39 // pred_check
          %p936 = pneg %p294
        $region58: #{tpu_custom_call.1} parent=39 // pred_check_branch
          %938 = sbr.rel (%p936) target = $region60
        $region59: #{tpu_custom_call.1} parent=39 // pred_region
          %s939 = sand.u32 %s284, 1
          %s940 = scalar_lea.sflag [#allocation4], %s939
          %s941 = sand.u32 %s284, 1
          %s942 = smul.addr %s941, 16
          %s943 = scalar_lea.vmem [#allocation3], %s942
          %945 = vsyncadd %s940, 0
          %s946 = smul.addr %s86, 4
          %s947 = smul.addr %s946, 4
          %s948 = scalar_lea.hbm %s17, %s947
          %s949 = sshll.u32 %s948, 4
          %s950 = int_to_ptr.hbm [resolvable:$true] %s949
          %s951 = sshll.u32 %s943, 4
          %s952 = int_to_ptr.vmem [resolvable:$true] %s951
          %957 = dma.hbm_to_vmem [thread:$0]  %s950, 256, %s952, %s940, 64, 64, 4
        $region60: #{tpu_custom_call.1} parent=39 // pred_fallthru
          _
        // Predicated region
        $region61: #{tpu_custom_call.1} parent=39 // pred_check
          %p958 = pneg %p320
        $region62: #{tpu_custom_call.1} parent=39 // pred_check_branch
          %960 = sbr.rel (%p958) target = $region64
        $region63: #{tpu_custom_call.1} parent=39 // pred_region
          %p961 = scmp.lt.s32.totalorder %s86, 1
          %s962 = scalar_select %p961, %s86, 1
          %s963 = scalar_lea.vmem %s19, %s962
        $region64: #{tpu_custom_call.1} parent=39 // pred_fallthru
          _
        // Predicated region
        $region65: #{tpu_custom_call.1} parent=39 // pred_check
          %p964 = pneg %p346
        $region66: #{tpu_custom_call.1} parent=39 // pred_check_branch
          %966 = sbr.rel (%p964) target = $region68
        $region67: #{tpu_custom_call.1} parent=39 // pred_region
          %s967 = sand.u32 %s86, 1
          %s968 = scalar_lea.sflag [#allocation7], %s967
          %s969 = sand.u32 %s336, 1
          %s970 = smul.addr %s969, 16
          %s971 = scalar_lea.vmem [#allocation6], %s970
          %973 = vsyncadd %s968, 0
          %s974 = smul.addr %s86, 4
          %s975 = smul.addr %s974, 4
          %s976 = scalar_lea.hbm %s21, %s975
          %s977 = sshll.u32 %s976, 4
          %s978 = int_to_ptr.hbm [resolvable:$true] %s977
          %s979 = sshll.u32 %s971, 4
          %s980 = int_to_ptr.vmem [resolvable:$true] %s979
          %985 = dma.hbm_to_vmem [thread:$0]  %s978, 256, %s980, %s968, 64, 64, 4
        $region68: #{tpu_custom_call.1} parent=39 // pred_fallthru
          _
        // Predicated region
        $region69: #{tpu_custom_call.1} parent=39 // pred_check
          %p986 = pneg %p372
        $region70: #{tpu_custom_call.1} parent=39 // pred_check_branch
          %988 = sbr.rel (%p986) target = $region72
        $region71: #{tpu_custom_call.1} parent=39 // pred_region
          %p989 = scmp.lt.s32.totalorder %s86, 1
          %s990 = scalar_select %p989, %s86, 1
          %s991 = scalar_lea.vmem %s23, %s990
        $region72: #{tpu_custom_call.1} parent=39 // pred_fallthru
          _
        // Predicated region
        $region73: #{tpu_custom_call.1} parent=39 // pred_check
          %p992 = pneg %p398
        $region74: #{tpu_custom_call.1} parent=39 // pred_check_branch
          %994 = sbr.rel (%p992) target = $region76
        $region75: #{tpu_custom_call.1} parent=39 // pred_region
          %s995 = sand.u32 %s86, 1
          %s996 = scalar_lea.sflag [#allocation7], %s995
          %s997 = sand.u32 %s388, 1
          %s998 = smul.addr %s997, 16
          %s999 = scalar_lea.vmem [#allocation8], %s998
          %1001 = vsyncadd %s996, 0
          %s1002 = smul.addr %s86, 4
          %s1003 = smul.addr %s1002, 4
          %s1004 = scalar_lea.hbm %s25, %s1003
          %s1005 = sshll.u32 %s1004, 4
          %s1006 = int_to_ptr.hbm [resolvable:$true] %s1005
          %s1007 = sshll.u32 %s999, 4
          %s1008 = int_to_ptr.vmem [resolvable:$true] %s1007
          %1013 = dma.hbm_to_vmem [thread:$0]  %s1006, 256, %s1008, %s996, 64, 64, 4
        $region76: #{tpu_custom_call.1} parent=39 // pred_fallthru
          _
        // Predicated region
        $region77: #{tpu_custom_call.1} parent=39 // pred_check
          %p1014 = pneg %p424
        $region78: #{tpu_custom_call.1} parent=39 // pred_check_branch
          %1016 = sbr.rel (%p1014) target = $region80
        $region79: #{tpu_custom_call.1} parent=39 // pred_region
          %p1017 = scmp.lt.s32.totalorder %s86, 1
          %s1018 = scalar_select %p1017, %s86, 1
          %s1019 = scalar_lea.vmem %s27, %s1018
        $region80: #{tpu_custom_call.1} parent=39 // pred_fallthru
          _
        // Predicated region
        $region81: #{tpu_custom_call.1} parent=39 // pred_check
          %p1020 = pneg %p450
        $region82: #{tpu_custom_call.1} parent=39 // pred_check_branch
          %1022 = sbr.rel (%p1020) target = $region84
        $region83: #{tpu_custom_call.1} parent=39 // pred_region
          %s1023 = sand.u32 %s86, 1
          %s1024 = scalar_lea.sflag [#allocation10], %s1023
          %s1025 = sand.u32 %s440, 1
          %s1026 = smul.addr %s1025, 16
          %s1027 = scalar_lea.vmem [#allocation9], %s1026
          %1029 = vsyncadd %s1024, 0
          %s1030 = smul.addr %s86, 4
          %s1031 = smul.addr %s1030, 4
          %s1032 = scalar_lea.hbm %s29, %s1031
          %s1033 = sshll.u32 %s1032, 4
          %s1034 = int_to_ptr.hbm [resolvable:$true] %s1033
          %s1035 = sshll.u32 %s1027, 4
          %s1036 = int_to_ptr.vmem [resolvable:$true] %s1035
          %1041 = dma.hbm_to_vmem [thread:$0]  %s1034, 256, %s1036, %s1024, 64, 64, 4
        $region84: #{tpu_custom_call.1} parent=39 // pred_fallthru
          _
        // Predicated region
        $region85: #{tpu_custom_call.1} parent=39 // pred_check
          %p1042 = pneg %p476
        $region86: #{tpu_custom_call.1} parent=39 // pred_check_branch
          %1044 = sbr.rel (%p1042) target = $region88
        $region87: #{tpu_custom_call.1} parent=39 // pred_region
          %p1045 = scmp.lt.s32.totalorder %s86, 1
          %s1046 = scalar_select %p1045, %s86, 1
          %s1047 = scalar_lea.vmem %s31, %s1046
        $region88: #{tpu_custom_call.1} parent=39 // pred_fallthru
          _
        // Predicated region
        $region89: #{tpu_custom_call.1} parent=39 // pred_check
          %p1048 = pneg %p502
        $region90: #{tpu_custom_call.1} parent=39 // pred_check_branch
          %1050 = sbr.rel (%p1048) target = $region92
        $region91: #{tpu_custom_call.1} parent=39 // pred_region
          %s1051 = sand.u32 %s86, 1
          %s1052 = scalar_lea.sflag [#allocation10], %s1051
          %s1053 = sand.u32 %s492, 1
          %s1054 = smul.addr %s1053, 16
          %s1055 = scalar_lea.vmem [#allocation11], %s1054
          %1057 = vsyncadd %s1052, 0
          %s1058 = smul.addr %s86, 4
          %s1059 = smul.addr %s1058, 4
          %s1060 = scalar_lea.hbm %s33, %s1059
          %s1061 = sshll.u32 %s1060, 4
          %s1062 = int_to_ptr.hbm [resolvable:$true] %s1061
          %s1063 = sshll.u32 %s1055, 4
          %s1064 = int_to_ptr.vmem [resolvable:$true] %s1063
          %1069 = dma.hbm_to_vmem [thread:$0]  %s1062, 256, %s1064, %s1052, 64, 64, 4
        $region92: #{tpu_custom_call.1} parent=39 // pred_fallthru
          _
        // Predicated region
        $region93: #{tpu_custom_call.1} parent=39 // pred_check
          %p1070 = pneg %p528
        $region94: #{tpu_custom_call.1} parent=39 // pred_check_branch
          %1072 = sbr.rel (%p1070) target = $region96
        $region95: #{tpu_custom_call.1} parent=39 // pred_region
          %p1073 = scmp.lt.s32.totalorder %s86, 1
          %s1074 = scalar_select %p1073, %s86, 1
          %s1075 = scalar_lea.vmem %s35, %s1074
        $region96: #{tpu_custom_call.1} parent=39 // pred_fallthru
          _
        // Predicated region
        $region97: #{tpu_custom_call.1} parent=39 // pred_check
          %p1076 = pneg %p554
        $region98: #{tpu_custom_call.1} parent=39 // pred_check_branch
          %1078 = sbr.rel (%p1076) target = $region100
        $region99: #{tpu_custom_call.1} parent=39 // pred_region
          %s1079 = sand.u32 %s86, 1
          %s1080 = scalar_lea.sflag [#allocation13], %s1079
          %s1081 = sand.u32 %s544, 1
          %s1082 = smul.addr %s1081, 16
          %s1083 = scalar_lea.vmem [#allocation12], %s1082
          %1085 = vsyncadd %s1080, 0
          %s1086 = smul.addr %s86, 4
          %s1087 = smul.addr %s1086, 4
          %s1088 = scalar_lea.hbm %s37, %s1087
          %s1089 = sshll.u32 %s1088, 4
          %s1090 = int_to_ptr.hbm [resolvable:$true] %s1089
          %s1091 = sshll.u32 %s1083, 4
          %s1092 = int_to_ptr.vmem [resolvable:$true] %s1091
          %1097 = dma.hbm_to_vmem [thread:$0]  %s1090, 256, %s1092, %s1080, 64, 64, 4
        $region100: #{tpu_custom_call.1} parent=39 // pred_fallthru
          _
        // Predicated region
        $region101: #{tpu_custom_call.1} parent=39 // pred_check
          %p1098 = pneg %p580
        $region102: #{tpu_custom_call.1} parent=39 // pred_check_branch
          %1100 = sbr.rel (%p1098) target = $region104
        $region103: #{tpu_custom_call.1} parent=39 // pred_region
          %p1101 = scmp.lt.s32.totalorder %s86, 1
          %s1102 = scalar_select %p1101, %s86, 1
          %s1103 = scalar_lea.vmem %s39, %s1102
        $region104: #{tpu_custom_call.1} parent=39 // pred_fallthru
          _
        // Predicated region
        $region105: #{tpu_custom_call.1} parent=39 // pred_check
          %p1104 = pneg %p606
        $region106: #{tpu_custom_call.1} parent=39 // pred_check_branch
          %1106 = sbr.rel (%p1104) target = $region108
        $region107: #{tpu_custom_call.1} parent=39 // pred_region
          %p1107 = scmp.lt.s32.totalorder %s86, 1
          %s1108 = scalar_select %p1107, %s86, 1
          %s1109 = smul.addr %s1108, 8
          %s1110 = smul.addr %s1109, 4
          %s1111 = scalar_lea.vmem %s41, %s1110
        $region108: #{tpu_custom_call.1} parent=39 // pred_fallthru
          _
        // Predicated region
        $region109: #{tpu_custom_call.1} parent=39 // pred_check
          %p1112 = pneg %p632
        $region110: #{tpu_custom_call.1} parent=39 // pred_check_branch
          %1114 = sbr.rel (%p1112) target = $region112
        $region111: #{tpu_custom_call.1} parent=39 // pred_region
          %p1115 = scmp.lt.s32.totalorder %s86, 1
          %s1116 = scalar_select %p1115, %s86, 1
          %s1117 = scalar_lea.vmem %s43, %s1116
        $region112: #{tpu_custom_call.1} parent=39 // pred_fallthru
          _
        // Predicated region
        $region113: #{tpu_custom_call.1} parent=39 // pred_check
          %p1118 = pneg %p658
        $region114: #{tpu_custom_call.1} parent=39 // pred_check_branch
          %1120 = sbr.rel (%p1118) target = $region116
        $region115: #{tpu_custom_call.1} parent=39 // pred_region
          %p1121 = scmp.lt.s32.totalorder %s86, 1
          %s1122 = scalar_select %p1121, %s86, 1
          %s1123 = scalar_lea.vmem %s45, %s1122
        $region116: #{tpu_custom_call.1} parent=39 // pred_fallthru
          _
        // Predicated region
        $region117: #{tpu_custom_call.1} parent=39 // pred_check
          %p1124 = pneg %p684
        $region118: #{tpu_custom_call.1} parent=39 // pred_check_branch
          %1126 = sbr.rel (%p1124) target = $region120
        $region119: #{tpu_custom_call.1} parent=39 // pred_region
          %s1127 = sand.u32 %s86, 1
          %s1128 = scalar_lea.sflag [#allocation13], %s1127
          %s1129 = sand.u32 %s674, 1
          %s1130 = scalar_lea.vmem [#allocation14], %s1129
          %1132 = vsyncadd %s1128, 0
          %s1133 = scalar_lea.hbm %s47, %s86
          %s1135 = sshll.u32 %s1133, 4
          %s1136 = int_to_ptr.hbm [resolvable:$true] %s1135
          %s1137 = sshll.u32 %s1130, 4
          %s1138 = int_to_ptr.vmem [resolvable:$true] %s1137
          %1140 = dma.hbm_to_vmem [thread:$0]  %s1136, 16, %s1138, %s1128
        $region120: #{tpu_custom_call.1} parent=39 // pred_fallthru
          _
        // Predicated region
        $region121: #{tpu_custom_call.1} parent=39 // pred_check
          %p1141 = pneg %p710
        $region122: #{tpu_custom_call.1} parent=39 // pred_check_branch
          %1143 = sbr.rel (%p1141) target = $region124
        $region123: #{tpu_custom_call.1} parent=39 // pred_region
          %p1144 = scmp.lt.s32.totalorder %s86, 1
          %s1145 = scalar_select %p1144, %s86, 1
          %s1146 = scalar_lea.vmem %s49, %s1145
        $region124: #{tpu_custom_call.1} parent=39 // pred_fallthru
          _
        // Predicated region
        $region125: #{tpu_custom_call.1} parent=39 // pred_check
          %p1147 = pneg %p736
        $region126: #{tpu_custom_call.1} parent=39 // pred_check_branch
          %1149 = sbr.rel (%p1147) target = $region128
        $region127: #{tpu_custom_call.1} parent=39 // pred_region
          %s1150 = sand.u32 %s86, 1
          %s1151 = scalar_lea.sflag [#allocation16], %s1150
          %s1152 = sand.u32 %s726, 1
          %s1153 = scalar_lea.vmem [#allocation15], %s1152
          %1155 = vsyncadd %s1151, 0
          %s1156 = scalar_lea.hbm %s51, %s86
          %s1158 = sshll.u32 %s1156, 4
          %s1159 = int_to_ptr.hbm [resolvable:$true] %s1158
          %s1160 = sshll.u32 %s1153, 4
          %s1161 = int_to_ptr.vmem [resolvable:$true] %s1160
          %1163 = dma.hbm_to_vmem [thread:$0]  %s1159, 16, %s1161, %s1151
        $region128: #{tpu_custom_call.1} parent=39 // pred_fallthru
          _
        // Predicated region
        $region129: #{tpu_custom_call.1} parent=39 // pred_check
          %p1164 = pneg %p762
        $region130: #{tpu_custom_call.1} parent=39 // pred_check_branch
          %1166 = sbr.rel (%p1164) target = $region132
        $region131: #{tpu_custom_call.1} parent=39 // pred_region
          %s1167 = sand.u32 %s86, 1
          %s1168 = scalar_lea.sflag [#allocation16], %s1167
          %s1169 = sand.u32 %s752, 1
          %s1170 = scalar_lea.vmem [#allocation17], %s1169
          %1172 = vsyncadd %s1168, 0
          %s1173 = scalar_lea.hbm %s53, %s86
          %s1175 = sshll.u32 %s1173, 4
          %s1176 = int_to_ptr.hbm [resolvable:$true] %s1175
          %s1177 = sshll.u32 %s1170, 4
          %s1178 = int_to_ptr.vmem [resolvable:$true] %s1177
          %1180 = dma.hbm_to_vmem [thread:$0]  %s1176, 16, %s1178, %s1168
        $region132: #{tpu_custom_call.1} parent=39 // pred_fallthru
          _
        // Predicated region
        $region133: #{tpu_custom_call.1} parent=39 // pred_check
          %p1181 = pneg %p788
        $region134: #{tpu_custom_call.1} parent=39 // pred_check_branch
          %1183 = sbr.rel (%p1181) target = $region136
        $region135: #{tpu_custom_call.1} parent=39 // pred_region
          %p1184 = scmp.lt.s32.totalorder %s86, 1
          %s1185 = scalar_select %p1184, %s86, 1
          %s1186 = scalar_lea.vmem %s55, %s1185
        $region136: #{tpu_custom_call.1} parent=39 // pred_fallthru
          _
      $region40: #{tpu_custom_call.1} parent=5 // pred_fallthru
        _
      %p1187 = scmp.le.s32.totalorder 1, %s86
      %p1188 = scmp.lt.s32.totalorder %s86, 3
      %p1189 = pnand %p1187, %p1188
      %p1190 = pneg %p1189
      // Predicated region
      $region137: #{tpu_custom_call.1} parent=5 // pred_check
        _
      $region138: #{tpu_custom_call.1} parent=5 // pred_check_branch
        %1192 = sbr.rel (%p1189) target = $region140
      $region139: #{tpu_custom_call.1} parent=5 // pred_region
        %s1193 = ssub.s32 %s86, 1
        %s1194 = sand.u32 %s287, 1
        %s1195 = scalar_lea.sflag [#allocation4], %s1194
        %s1196 = sand.u32 %s287, 1
        %s1197 = smul.addr %s1196, 16
        %s1198 = scalar_lea.vmem [#allocation3], %s1197
        // Predicated region
        $region141: #{tpu_custom_call.1} parent=139 // pred_check
          %p1199 = pneg %p300
        $region142: #{tpu_custom_call.1} parent=139 // pred_check_branch
          %1201 = sbr.rel (%p1199) target = $region144
        $region143: #{tpu_custom_call.1} parent=139 // pred_region
          %1203 = dma.done %s1195, 256
        $region144: #{tpu_custom_call.1} parent=139 // pred_fallthru
          _
        %s1204 = sand.u32 %s91, 1
        %s1205 = scalar_lea.sflag [#allocation7], %s1204
        %s1206 = sand.u32 %s339, 1
        %s1207 = smul.addr %s1206, 16
        %s1208 = scalar_lea.vmem [#allocation6], %s1207
        // Predicated region
        $region145: #{tpu_custom_call.1} parent=139 // pred_check
          %p1209 = pneg %p352
        $region146: #{tpu_custom_call.1} parent=139 // pred_check_branch
          %1211 = sbr.rel (%p1209) target = $region148
        $region147: #{tpu_custom_call.1} parent=139 // pred_region
          %1213 = dma.done %s1205, 256
        $region148: #{tpu_custom_call.1} parent=139 // pred_fallthru
          _
        %s1214 = sand.u32 %s91, 1
        %s1215 = scalar_lea.sflag [#allocation7], %s1214
        %s1216 = sand.u32 %s391, 1
        %s1217 = smul.addr %s1216, 16
        %s1218 = scalar_lea.vmem [#allocation8], %s1217
        // Predicated region
        $region149: #{tpu_custom_call.1} parent=139 // pred_check
          %p1219 = pneg %p404
        $region150: #{tpu_custom_call.1} parent=139 // pred_check_branch
          %1221 = sbr.rel (%p1219) target = $region152
        $region151: #{tpu_custom_call.1} parent=139 // pred_region
          %1223 = dma.done %s1215, 256
        $region152: #{tpu_custom_call.1} parent=139 // pred_fallthru
          _
        %s1224 = sand.u32 %s91, 1
        %s1225 = scalar_lea.sflag [#allocation10], %s1224
        %s1226 = sand.u32 %s443, 1
        %s1227 = smul.addr %s1226, 16
        %s1228 = scalar_lea.vmem [#allocation9], %s1227
        // Predicated region
        $region153: #{tpu_custom_call.1} parent=139 // pred_check
          %p1229 = pneg %p456
        $region154: #{tpu_custom_call.1} parent=139 // pred_check_branch
          %1231 = sbr.rel (%p1229) target = $region156
        $region155: #{tpu_custom_call.1} parent=139 // pred_region
          %1233 = dma.done %s1225, 256
        $region156: #{tpu_custom_call.1} parent=139 // pred_fallthru
          _
        %s1234 = sand.u32 %s91, 1
        %s1235 = scalar_lea.sflag [#allocation10], %s1234
        %s1236 = sand.u32 %s495, 1
        %s1237 = smul.addr %s1236, 16
        %s1238 = scalar_lea.vmem [#allocation11], %s1237
        // Predicated region
        $region157: #{tpu_custom_call.1} parent=139 // pred_check
          %p1239 = pneg %p508
        $region158: #{tpu_custom_call.1} parent=139 // pred_check_branch
          %1241 = sbr.rel (%p1239) target = $region160
        $region159: #{tpu_custom_call.1} parent=139 // pred_region
          %1243 = dma.done %s1235, 256
        $region160: #{tpu_custom_call.1} parent=139 // pred_fallthru
          _
        %s1244 = sand.u32 %s91, 1
        %s1245 = scalar_lea.sflag [#allocation13], %s1244
        %s1246 = sand.u32 %s547, 1
        %s1247 = smul.addr %s1246, 16
        %s1248 = scalar_lea.vmem [#allocation12], %s1247
        // Predicated region
        $region161: #{tpu_custom_call.1} parent=139 // pred_check
          %p1249 = pneg %p560
        $region162: #{tpu_custom_call.1} parent=139 // pred_check_branch
          %1251 = sbr.rel (%p1249) target = $region164
        $region163: #{tpu_custom_call.1} parent=139 // pred_region
          %1253 = dma.done %s1245, 256
        $region164: #{tpu_custom_call.1} parent=139 // pred_fallthru
          _
        %s1254 = sand.u32 %s91, 1
        %s1255 = scalar_lea.sflag [#allocation13], %s1254
        %s1256 = sand.u32 %s677, 1
        %s1257 = scalar_lea.vmem [#allocation14], %s1256
        // Predicated region
        $region165: #{tpu_custom_call.1} parent=139 // pred_check
          %p1258 = pneg %p690
        $region166: #{tpu_custom_call.1} parent=139 // pred_check_branch
          %1260 = sbr.rel (%p1258) target = $region168
        $region167: #{tpu_custom_call.1} parent=139 // pred_region
          %1262 = dma.done %s1255, 16
        $region168: #{tpu_custom_call.1} parent=139 // pred_fallthru
          _
        %s1263 = sand.u32 %s91, 1
        %s1264 = scalar_lea.sflag [#allocation16], %s1263
        %s1265 = sand.u32 %s729, 1
        %s1266 = scalar_lea.vmem [#allocation15], %s1265
        // Predicated region
        $region169: #{tpu_custom_call.1} parent=139 // pred_check
          %p1267 = pneg %p742
        $region170: #{tpu_custom_call.1} parent=139 // pred_check_branch
          %1269 = sbr.rel (%p1267) target = $region172
        $region171: #{tpu_custom_call.1} parent=139 // pred_region
          %1271 = dma.done %s1264, 16
        $region172: #{tpu_custom_call.1} parent=139 // pred_fallthru
          _
        %s1272 = sand.u32 %s91, 1
        %s1273 = scalar_lea.sflag [#allocation16], %s1272
        %s1274 = sand.u32 %s755, 1
        %s1275 = scalar_lea.vmem [#allocation17], %s1274
        // Predicated region
        $region173: #{tpu_custom_call.1} parent=139 // pred_check
          %p1276 = pneg %p768
        $region174: #{tpu_custom_call.1} parent=139 // pred_check_branch
          %1278 = sbr.rel (%p1276) target = $region176
        $region175: #{tpu_custom_call.1} parent=139 // pred_region
          %1280 = dma.done %s1273, 16
        $region176: #{tpu_custom_call.1} parent=139 // pred_fallthru
          _
        // Predicated region
        $region177: #{tpu_custom_call.1} parent=139 // pred_check
          %p1281 = pneg %p836
        $region178: #{tpu_custom_call.1} parent=139 // pred_check_branch
          %1283 = sbr.rel (%p1281) target = $region180
        $region179: #{tpu_custom_call.1} parent=139 // pred_region
          %1285 = dma.done [#allocation19], 16
        $region180: #{tpu_custom_call.1} parent=139 // pred_fallthru
          _
        %p1286 = pneg %p107
        %p1287 = pneg %p104
        %p1288 = pneg %p128
        %p1289 = pneg %p125
        %p1290 = pneg %p149
        %p1291 = pneg %p146
        %p1292 = pneg %p170
        %p1293 = pneg %p167
        %p1294 = scmp.lt.s32.totalorder %s91, 1
        %s1295 = scalar_select %p1294, %s91, 1
        %s1296 = smul.addr %s1295, 4
        %s1297 = smul.addr %s1296, 4
        %s1298 = scalar_lea.vmem %s9, %s1297
        %p1299 = pneg %p196
        %p1300 = pneg %p193
        %p1301 = scmp.lt.s32.totalorder %s91, 1
        %s1302 = scalar_select %p1301, %s91, 1
        %s1303 = scalar_lea.vmem %s11, %s1302
        %p1304 = pneg %p222
        %p1305 = pneg %p219
        %p1306 = scmp.lt.s32.totalorder %s91, 1
        %s1307 = scalar_select %p1306, %s91, 1
        %s1308 = smul.addr %s1307, 4
        %s1309 = smul.addr %s1308, 4
        %s1310 = scalar_lea.vmem %s13, %s1309
        %p1311 = pneg %p248
        %p1312 = pneg %p245
        %p1313 = scmp.lt.s32.totalorder %s91, 1
        %s1314 = scalar_select %p1313, %s91, 1
        %s1315 = scalar_lea.vmem %s15, %s1314
        %p1316 = pneg %p274
        %p1317 = pneg %p271
        %s1318 = sand.u32 %s287, 1
        %s1319 = scalar_lea.sflag [#allocation4], %s1318
        %s1320 = sand.u32 %s287, 1
        %s1321 = smul.addr %s1320, 16
        %s1322 = scalar_lea.vmem [#allocation3], %s1321
        %p1323 = pneg %p300
        %p1324 = pneg %p297
        %p1325 = scmp.lt.s32.totalorder %s91, 1
        %s1326 = scalar_select %p1325, %s91, 1
        %s1327 = scalar_lea.vmem %s19, %s1326
        %p1328 = pneg %p326
        %p1329 = pneg %p323
        %s1330 = sand.u32 %s91, 1
        %s1331 = scalar_lea.sflag [#allocation7], %s1330
        %s1332 = sand.u32 %s339, 1
        %s1333 = smul.addr %s1332, 16
        %s1334 = scalar_lea.vmem [#allocation6], %s1333
        %p1335 = pneg %p352
        %p1336 = pneg %p349
        %p1337 = scmp.lt.s32.totalorder %s91, 1
        %s1338 = scalar_select %p1337, %s91, 1
        %s1339 = scalar_lea.vmem %s23, %s1338
        %p1340 = pneg %p378
        %p1341 = pneg %p375
        %s1342 = sand.u32 %s91, 1
        %s1343 = scalar_lea.sflag [#allocation7], %s1342
        %s1344 = sand.u32 %s391, 1
        %s1345 = smul.addr %s1344, 16
        %s1346 = scalar_lea.vmem [#allocation8], %s1345
        %p1347 = pneg %p404
        %p1348 = pneg %p401
        %p1349 = scmp.lt.s32.totalorder %s91, 1
        %s1350 = scalar_select %p1349, %s91, 1
        %s1351 = scalar_lea.vmem %s27, %s1350
        %p1352 = pneg %p430
        %p1353 = pneg %p427
        %s1354 = sand.u32 %s91, 1
        %s1355 = scalar_lea.sflag [#allocation10], %s1354
        %s1356 = sand.u32 %s443, 1
        %s1357 = smul.addr %s1356, 16
        %s1358 = scalar_lea.vmem [#allocation9], %s1357
        %p1359 = pneg %p456
        %p1360 = pneg %p453
        %p1361 = scmp.lt.s32.totalorder %s91, 1
        %s1362 = scalar_select %p1361, %s91, 1
        %s1363 = scalar_lea.vmem %s31, %s1362
        %p1364 = pneg %p482
        %p1365 = pneg %p479
        %s1366 = sand.u32 %s91, 1
        %s1367 = scalar_lea.sflag [#allocation10], %s1366
        %s1368 = sand.u32 %s495, 1
        %s1369 = smul.addr %s1368, 16
        %s1370 = scalar_lea.vmem [#allocation11], %s1369
        %p1371 = pneg %p508
        %p1372 = pneg %p505
        %p1373 = scmp.lt.s32.totalorder %s91, 1
        %s1374 = scalar_select %p1373, %s91, 1
        %s1375 = scalar_lea.vmem %s35, %s1374
        %p1376 = pneg %p534
        %p1377 = pneg %p531
        %s1378 = sand.u32 %s91, 1
        %s1379 = scalar_lea.sflag [#allocation13], %s1378
        %s1380 = sand.u32 %s547, 1
        %s1381 = smul.addr %s1380, 16
        %s1382 = scalar_lea.vmem [#allocation12], %s1381
        %p1383 = pneg %p560
        %p1384 = pneg %p557
        %p1385 = scmp.lt.s32.totalorder %s91, 1
        %s1386 = scalar_select %p1385, %s91, 1
        %s1387 = scalar_lea.vmem %s39, %s1386
        %p1388 = pneg %p586
        %p1389 = pneg %p583
        %p1390 = scmp.lt.s32.totalorder %s91, 1
        %s1391 = scalar_select %p1390, %s91, 1
        %s1392 = smul.addr %s1391, 8
        %s1393 = smul.addr %s1392, 4
        %s1394 = scalar_lea.vmem %s41, %s1393
        %p1395 = pneg %p612
        %p1396 = pneg %p609
        %p1397 = scmp.lt.s32.totalorder %s91, 1
        %s1398 = scalar_select %p1397, %s91, 1
        %s1399 = scalar_lea.vmem %s43, %s1398
        %p1400 = pneg %p638
        %p1401 = pneg %p635
        %p1402 = scmp.lt.s32.totalorder %s91, 1
        %s1403 = scalar_select %p1402, %s91, 1
        %s1404 = scalar_lea.vmem %s45, %s1403
        %p1405 = pneg %p664
        %p1406 = pneg %p661
        %s1407 = sand.u32 %s91, 1
        %s1408 = scalar_lea.sflag [#allocation13], %s1407
        %s1409 = sand.u32 %s677, 1
        %s1410 = scalar_lea.vmem [#allocation14], %s1409
        %p1411 = pneg %p690
        %p1412 = pneg %p687
        %p1413 = scmp.lt.s32.totalorder %s91, 1
        %s1414 = scalar_select %p1413, %s91, 1
        %s1415 = scalar_lea.vmem %s49, %s1414
        %p1416 = pneg %p716
        %p1417 = pneg %p713
        %s1418 = sand.u32 %s91, 1
        %s1419 = scalar_lea.sflag [#allocation16], %s1418
        %s1420 = sand.u32 %s729, 1
        %s1421 = scalar_lea.vmem [#allocation15], %s1420
        %p1422 = pneg %p742
        %p1423 = pneg %p739
        %s1424 = sand.u32 %s91, 1
        %s1425 = scalar_lea.sflag [#allocation16], %s1424
        %s1426 = sand.u32 %s755, 1
        %s1427 = scalar_lea.vmem [#allocation17], %s1426
        %p1428 = pneg %p768
        %p1429 = pneg %p765
        %p1430 = scmp.lt.s32.totalorder %s91, 1
        %s1431 = scalar_select %p1430, %s91, 1
        %s1432 = scalar_lea.vmem %s55, %s1431
        %p1433 = pneg %p794
        %p1434 = pneg %p791
        %p1435 = pneg %p815
        %p1436 = pneg %p812
        %p1437 = pneg %p836
        %p1438 = pneg %p833
        %p1439 = pneg %p862
        %p1440 = pneg %p859
        %s1441 = sand.u32 %s849, 1
        %s1442 = scalar_lea.sflag [#allocation5], %s1441
        %s1443 = sand.u32 %s849, 1
        %s1444 = smul.addr %s1443, 16
        %s1445 = scalar_lea.vmem [#allocation20], %s1444
        %p1446 = scmp.lt.s32.totalorder %s91, 1
        %s1447 = scalar_select %p1446, %s91, 1
        %s1448 = smul.addr %s1447, 4
        %s1449 = smul.addr %s1448, 4
        %s1450 = scalar_lea.vmem %s9, %s1449
        %p1451 = scmp.lt.s32.totalorder %s91, 1
        %s1452 = scalar_select %p1451, %s91, 1
        %s1453 = scalar_lea.vmem %s11, %s1452
        %p1454 = scmp.lt.s32.totalorder %s91, 1
        %s1455 = scalar_select %p1454, %s91, 1
        %s1456 = smul.addr %s1455, 4
        %s1457 = smul.addr %s1456, 4
        %s1458 = scalar_lea.vmem %s13, %s1457
        %p1459 = scmp.lt.s32.totalorder %s91, 1
        %s1460 = scalar_select %p1459, %s91, 1
        %s1461 = scalar_lea.vmem %s15, %s1460
        %p1462 = scmp.lt.s32.totalorder %s91, 1
        %s1463 = scalar_select %p1462, %s91, 1
        %s1464 = scalar_lea.vmem %s19, %s1463
        %p1465 = scmp.lt.s32.totalorder %s91, 1
        %s1466 = scalar_select %p1465, %s91, 1
        %s1467 = scalar_lea.vmem %s23, %s1466
        %p1468 = scmp.lt.s32.totalorder %s91, 1
        %s1469 = scalar_select %p1468, %s91, 1
        %s1470 = scalar_lea.vmem %s27, %s1469
        %p1471 = scmp.lt.s32.totalorder %s91, 1
        %s1472 = scalar_select %p1471, %s91, 1
        %s1473 = scalar_lea.vmem %s31, %s1472
        %p1474 = scmp.lt.s32.totalorder %s91, 1
        %s1475 = scalar_select %p1474, %s91, 1
        %s1476 = scalar_lea.vmem %s35, %s1475
        %p1477 = scmp.lt.s32.totalorder %s91, 1
        %s1478 = scalar_select %p1477, %s91, 1
        %s1479 = scalar_lea.vmem %s39, %s1478
        %p1480 = scmp.lt.s32.totalorder %s91, 1
        %s1481 = scalar_select %p1480, %s91, 1
        %s1482 = smul.addr %s1481, 8
        %s1483 = smul.addr %s1482, 4
        %s1484 = scalar_lea.vmem %s41, %s1483
        %p1485 = scmp.lt.s32.totalorder %s91, 1
        %s1486 = scalar_select %p1485, %s91, 1
        %s1487 = scalar_lea.vmem %s43, %s1486
        %p1488 = scmp.lt.s32.totalorder %s91, 1
        %s1489 = scalar_select %p1488, %s91, 1
        %s1490 = scalar_lea.vmem %s45, %s1489
        %p1491 = scmp.lt.s32.totalorder %s91, 1
        %s1492 = scalar_select %p1491, %s91, 1
        %s1493 = scalar_lea.vmem %s49, %s1492
        %p1494 = scmp.lt.s32.totalorder %s91, 1
        %s1495 = scalar_select %p1494, %s91, 1
        %s1496 = scalar_lea.vmem %s55, %s1495
        %p1498 = scmp.eq.s32.totalorder %s91, 0
        // Predicated region
        $region181: #{tpu_custom_call.1} parent=139 // pred_check
          %p1499 = pneg %p1498
        $region182: #{tpu_custom_call.1} parent=139 // pred_check_branch
          %1501 = sbr.rel (%p1499) target = $region184
        $region183: #{tpu_custom_call.1} parent=139 // pred_region
          %v1502 = vld [vmem:[%s1] sm:$0xff]
          %v1503 = vld [vmem:[%s1 + $0x8] sm:$0xff]
          %v1504 = vld [vmem:[%s1 + $0x10] sm:$0xff]
          %v1505 = vld [vmem:[%s1 + $0x18] sm:$0xff]
          %vm1506 = vcmask 261120
          %1507 = vst.msk [vmem:[#allocation2] sm:$0xff] %vm1506, %v1502
          %1508 = vst.msk [vmem:[#allocation2 + $0x8] sm:$0xff] %vm1506, %v1503
          %1509 = vst.msk [vmem:[#allocation2 + $0x10] sm:$0xff] %vm1506, %v1504
          %1510 = vst.msk [vmem:[#allocation2 + $0x18] sm:$0xff] %vm1506, %v1505
        $region184: #{tpu_custom_call.1} parent=139 // pred_fallthru
          _
        %v1511 = vld [vmem:[#allocation2] sm:$0xff]
        %v1512 = vld [vmem:[#allocation2 + $0x8] sm:$0xff]
        %v1513 = vld [vmem:[#allocation2 + $0x10] sm:$0xff]
        %v1514 = vld [vmem:[#allocation2 + $0x18] sm:$0xff]
        %v1515 = vld [vmem:[%s3] sm:$0xff]
        %v1516 = vld [vmem:[%s3 + $0x8] sm:$0xff]
        %v1517 = vld [vmem:[%s3 + $0x10] sm:$0xff]
        %v1518 = vld [vmem:[%s3 + $0x18] sm:$0xff]
        %v1519 = vadd.f32 %v1511, %v1515
        %v1520 = vadd.f32 %v1512, %v1516
        %v1521 = vadd.f32 %v1513, %v1517
        %v1522 = vadd.f32 %v1514, %v1518
        %v1523 = vpack.c.bf16 %v1520, %v1519
        %v1524 = vpack.c.bf16 %v1522, %v1521
        %v1525 = vld [vmem:[%s1450] sm:$0xf]
        %v1526 = vld [vmem:[%s1450 + $0x4] sm:$0xf]
        %v1527 = vld [vmem:[%s1450 + $0x8] sm:$0xf]
        %v1528 = vld [vmem:[%s1450 + $0xc] sm:$0xf]
        %v1529 = vld [vmem:[%s1453] sm:$0x1]
        %v1531 = vperm.slane %v1529, 0
        %v1537 = vunpack.c.l.b16 %v1525
        %v1538 = vunpack.c.l.b16 %v1526
        %v1539 = vunpack.c.l.b16 %v1527
        %v1540 = vunpack.c.l.b16 %v1528
        %v1541 = vpack.c.b16 %v1538, %v1537
        %v1542 = vpack.c.b16 %v1540, %v1539
        %vm1545 = vcmask 261120
        %v1547 = vsel %vm1545, %v1523, 0
        %v1550 = vsel %vm1545, %v1524, 0
        %1552 = vmatpush.bf16.msra.mxu0 0
        %1553 = vmatpush.bf16.msra.mxu0 0
        %1554 = vmatpush.bf16.msra.mxu0 0
        %1555 = vmatpush.bf16.msra.mxu0 0
        %1556 = vmatpush.bf16.msra.mxu0 0
        %1557 = vmatpush.bf16.msra.mxu0 0
        %1558 = vmatpush.bf16.msra.mxu0 %v1542
        %1559 = vmatpush.bf16.msra.mxu0 %v1541
        %1560 = vmatmul.bf16.gmra.mxu0 %v1547
        %v1561 = vpop.f32.mrf.mxu0
        %v1562 = vadd.f32 %v1531, %v1561
        %v1563 = vpop.f32.mrf.mxu0
        %v1564 = vadd.f32 %v1531, %v1563
        %1565 = vmatmul.bf16.gmra.mxu0 %v1550
        %v1566 = vpop.f32.mrf.mxu0
        %v1567 = vadd.f32 %v1531, %v1566
        %v1568 = vpop.f32.mrf.mxu0
        %v1569 = vadd.f32 %v1531, %v1568
        %1570 = vdwg.mxu0
        %v1571 = vpack.c.bf16 %v1512, %v1511
        %v1572 = vpack.c.bf16 %v1514, %v1513
        %v1573 = vld [vmem:[%s1458] sm:$0xf]
        %v1574 = vld [vmem:[%s1458 + $0x4] sm:$0xf]
        %v1575 = vld [vmem:[%s1458 + $0x8] sm:$0xf]
        %v1576 = vld [vmem:[%s1458 + $0xc] sm:$0xf]
        %v1577 = vld [vmem:[%s1461] sm:$0x1]
        %v1579 = vperm.slane %v1577, 0
        %v1585 = vunpack.c.l.b16 %v1573
        %v1586 = vunpack.c.l.b16 %v1574
        %v1587 = vunpack.c.l.b16 %v1575
        %v1588 = vunpack.c.l.b16 %v1576
        %v1589 = vpack.c.b16 %v1586, %v1585
        %v1590 = vpack.c.b16 %v1588, %v1587
        %v1594 = vsel %vm1545, %v1571, 0
        %v1597 = vsel %vm1545, %v1572, 0
        %1599 = vmatpush.bf16.msra.mxu0 0
        %1600 = vmatpush.bf16.msra.mxu0 0
        %1601 = vmatpush.bf16.msra.mxu0 0
        %1602 = vmatpush.bf16.msra.mxu0 0
        %1603 = vmatpush.bf16.msra.mxu0 0
        %1604 = vmatpush.bf16.msra.mxu0 0
        %1605 = vmatpush.bf16.msra.mxu0 %v1590
        %1606 = vmatpush.bf16.msra.mxu0 %v1589
        %1607 = vmatmul.bf16.gmra.mxu0 %v1594
        %v1608 = vpop.f32.mrf.mxu0
        %v1609 = vadd.f32 %v1579, %v1608
        %v1610 = vpop.f32.mrf.mxu0
        %v1611 = vadd.f32 %v1579, %v1610
        %1612 = vmatmul.bf16.gmra.mxu0 %v1597
        %v1613 = vpop.f32.mrf.mxu0
        %v1614 = vadd.f32 %v1579, %v1613
        %v1615 = vpop.f32.mrf.mxu0
        %v1616 = vadd.f32 %v1579, %v1615
        %1617 = vdwg.mxu0
        %v1618 = vlaneseq
        %v1619 = vand.u32 %v1618, 127
        %vm1620 = vcmp.lt.s32.totalorder %v1619, 10
        %v1621 = vsel %vm1620, 0.0, -1e+30
        %v1622 = vpack.c.bf16 %v1564, %v1562
        %v1623 = vpack.c.bf16 %v1611, %v1609
        %1625 = vrot.lane.b32.xlu0 %v1622, 96
        %v1626 = vpop.permute.xlu0 %1625
        %vm1627 = vcmask 64512
        %v1629 = vsel %vm1627, %v1622, 0
        %v1632 = vsel %vm1627, %v1626, 0
        %1634 = vmatpush.bf16.xpose.msra.mxu0 0
        %1635 = vmatpush.bf16.xpose.msra.mxu0 0
        %1636 = vmatpush.bf16.xpose.msra.mxu0 0
        %1637 = vmatpush.bf16.xpose.msra.mxu0 0
        %1638 = vmatpush.bf16.xpose.msra.mxu0 0
        %1639 = vmatpush.bf16.xpose.msra.mxu0 0
        %1640 = vmatpush.bf16.xpose.msra.mxu0 0
        %1641 = vmatpush.bf16.xpose.msra.mxu0 %v1632
        %1642 = vmatmul.bf16.gmra.mxu0 %v1629
        %v1643 = vpop.f32.mrf.mxu0
        %v1644 = vadd.f32 %v1621, %v1643
        %v1645 = vpop.f32.mrf.mxu0
        %v1646 = vadd.f32 %v1621, %v1645
        %1647 = vdwg.mxu0
        %vm1648 = vcmask 130048
        %v1649 = vsel %vm1648, %v1644, -inf
        %1650 = vmax.xlane.f32.xlu0 %v1649
        %v1651 = vpop.xlane.xlu0 %1650
        %v1652 = vsel %vm1648, %v1646, -inf
        %1653 = vmax.xlane.f32.xlu0 %v1652
        %v1654 = vpop.xlane.xlu0 %1653
        %v1655 = vsub.f32 %v1644, %v1651
        %v1656 = vsub.f32 %v1646, %v1654
        %v1657 = vmul.f32 %v1655, 1.442695
        %v1658 = vpow.pop %v1657
        %v1659 = vmul.f32 %v1656, 1.442695
        %v1660 = vpow.pop %v1659
        %v1661 = vsel %vm1648, %v1658, 0.0
        %1662 = vadd.xlane.f32.xlu0 %v1661
        %v1663 = vpop.xlane.xlu0 %1662
        %v1664 = vsel %vm1648, %v1660, 0.0
        %1665 = vadd.xlane.f32.xlu0 %v1664
        %v1666 = vpop.xlane.xlu0 %1665
        %v1667 = vrcp.pop %v1663
        %v1668 = vrcp.pop %v1666
        %v1669 = vmul.f32 %v1658, %v1667
        %v1670 = vmul.f32 %v1660, %v1668
        %v1671 = vpack.c.bf16 %v1670, %v1669
        %v1673 = vsel %vm1648, %v1671, 0
        %1675 = vmatpush.bf16.msra.mxu0 0
        %1676 = vmatpush.bf16.msra.mxu0 0
        %1677 = vmatpush.bf16.msra.mxu0 0
        %1678 = vmatpush.bf16.msra.mxu0 0
        %1679 = vmatpush.bf16.msra.mxu0 0
        %1680 = vmatpush.bf16.msra.mxu0 0
        %1681 = vmatpush.bf16.msra.mxu0 0
        %1682 = vmatpush.bf16.msra.mxu0 %v1623
        %1683 = vmatmul.bf16.gmra.mxu0 %v1673
        %v1684 = vpop.f32.mrf.mxu0
        %v1685 = vadd.f32 0.0, %v1684
        %v1686 = vpop.f32.mrf.mxu0
        %v1687 = vadd.f32 0.0, %v1686
        %1688 = vdwg.mxu0
        %v1689 = vpack.c.bf16 %v1687, %v1685
        %v1690 = vld [vmem:[%s1198] sm:$0xf]
        %1691 = vrot.lane.b32.xlu0 %v1622, 120
        %v1692 = vpop.permute.xlu0 %1691
        %1693 = vrot.lane.b32.xlu0 %v1622, 88
        %v1694 = vpop.permute.xlu0 %1693
        %v1696 = vsel %vm1627, %v1692, 0
        %v1699 = vsel %vm1627, %v1694, 0
        %1701 = vmatpush.bf16.xpose.msra.mxu0 0
        %1702 = vmatpush.bf16.xpose.msra.mxu0 0
        %1703 = vmatpush.bf16.xpose.msra.mxu0 0
        %1704 = vmatpush.bf16.xpose.msra.mxu0 0
        %1705 = vmatpush.bf16.xpose.msra.mxu0 0
        %1706 = vmatpush.bf16.xpose.msra.mxu0 0
        %1707 = vmatpush.bf16.xpose.msra.mxu0 0
        %1708 = vmatpush.bf16.xpose.msra.mxu0 %v1699
        %1709 = vmatmul.bf16.gmra.mxu0 %v1696
        %v1710 = vpop.f32.mrf.mxu0
        %v1711 = vadd.f32 %v1621, %v1710
        %v1712 = vpop.f32.mrf.mxu0
        %v1713 = vadd.f32 %v1621, %v1712
        %1714 = vdwg.mxu0
        %v1715 = vsel %vm1648, %v1711, -inf
        %1716 = vmax.xlane.f32.xlu0 %v1715
        %v1717 = vpop.xlane.xlu0 %1716
        %v1718 = vsel %vm1648, %v1713, -inf
        %1719 = vmax.xlane.f32.xlu0 %v1718
        %v1720 = vpop.xlane.xlu0 %1719
        %v1721 = vsub.f32 %v1711, %v1717
        %v1722 = vsub.f32 %v1713, %v1720
        %v1723 = vmul.f32 %v1721, 1.442695
        %v1724 = vpow.pop %v1723
        %v1725 = vmul.f32 %v1722, 1.442695
        %v1726 = vpow.pop %v1725
        %v1727 = vsel %vm1648, %v1724, 0.0
        %1728 = vadd.xlane.f32.xlu0 %v1727
        %v1729 = vpop.xlane.xlu0 %1728
        %v1730 = vsel %vm1648, %v1726, 0.0
        %1731 = vadd.xlane.f32.xlu0 %v1730
        %v1732 = vpop.xlane.xlu0 %1731
        %v1733 = vrcp.pop %v1729
        %v1734 = vrcp.pop %v1732
        %v1735 = vmul.f32 %v1724, %v1733
        %v1736 = vmul.f32 %v1726, %v1734
        %v1737 = vpack.c.bf16 %v1736, %v1735
        %1739 = vrot.lane.b32.xlu0 %v1623, 120
        %v1740 = vpop.permute.xlu0 %1739
        %v1743 = vsel %vm1648, %v1737, 0
        %1745 = vmatpush.bf16.msra.mxu0 0
        %1746 = vmatpush.bf16.msra.mxu0 0
        %1747 = vmatpush.bf16.msra.mxu0 0
        %1748 = vmatpush.bf16.msra.mxu0 0
        %1749 = vmatpush.bf16.msra.mxu0 0
        %1750 = vmatpush.bf16.msra.mxu0 0
        %1751 = vmatpush.bf16.msra.mxu0 0
        %1752 = vmatpush.bf16.msra.mxu0 %v1740
        %1753 = vmatmul.bf16.gmra.mxu0 %v1743
        %v1754 = vpop.f32.mrf.mxu0
        %v1755 = vadd.f32 0.0, %v1754
        %v1756 = vpop.f32.mrf.mxu0
        %v1757 = vadd.f32 0.0, %v1756
        %1758 = vdwg.mxu0
        %v1759 = vpack.c.bf16 %v1757, %v1755
        %s1760 = scalar_lea.vmem %s1198, 4 [#allocation3]
        %v1761 = vld [vmem:[%s1760] sm:$0xf]
        %v1763 = vsel %vm1627, %v1759, 0
        %vm1765 = vcmask 1043456
        %v1767 = vsel %vm1765, %v1761, 0
        %1769 = vmatpush.bf16.msra.mxu0 0
        %1770 = vmatpush.bf16.msra.mxu0 0
        %1771 = vmatpush.bf16.msra.mxu0 0
        %1772 = vmatpush.bf16.msra.mxu0 0
        %1773 = vmatpush.bf16.msra.mxu0 0
        %1774 = vmatpush.bf16.msra.mxu0 0
        %1775 = vmatpush.bf16.msra.mxu0 0
        %1776 = vmatpush.bf16.msra.mxu0 %v1767
        %1777 = vmatmul.bf16.gmra.mxu0 %v1763
        %v1778 = vpop.f32.mrf.mxu0
        %v1779 = vadd.f32 0.0, %v1778
        %v1780 = vpop.f32.mrf.mxu0
        %v1781 = vadd.f32 0.0, %v1780
        %1782 = vdwg.mxu0
        %v1784 = vsel %vm1627, %v1689, 0
        %v1787 = vsel %vm1765, %v1690, 0
        %1789 = vmatpush.bf16.msra.mxu0 0
        %1790 = vmatpush.bf16.msra.mxu0 0
        %1791 = vmatpush.bf16.msra.mxu0 0
        %1792 = vmatpush.bf16.msra.mxu0 0
        %1793 = vmatpush.bf16.msra.mxu0 0
        %1794 = vmatpush.bf16.msra.mxu0 0
        %1795 = vmatpush.bf16.msra.mxu0 0
        %1796 = vmatpush.bf16.msra.mxu0 %v1787
        %1797 = vmatmul.bf16.gmra.mxu0 %v1784
        %v1798 = vpop.f32.mrf.mxu0
        %v1799 = vadd.f32 %v1779, %v1798
        %v1800 = vpop.f32.mrf.mxu0
        %v1801 = vadd.f32 %v1781, %v1800
        %1802 = vdwg.mxu0
        %1803 = vrot.lane.b32.xlu0 %v1622, 112
        %v1804 = vpop.permute.xlu0 %1803
        %1805 = vrot.lane.b32.xlu0 %v1622, 80
        %v1806 = vpop.permute.xlu0 %1805
        %v1808 = vsel %vm1627, %v1804, 0
        %v1811 = vsel %vm1627, %v1806, 0
        %1813 = vmatpush.bf16.xpose.msra.mxu0 0
        %1814 = vmatpush.bf16.xpose.msra.mxu0 0
        %1815 = vmatpush.bf16.xpose.msra.mxu0 0
        %1816 = vmatpush.bf16.xpose.msra.mxu0 0
        %1817 = vmatpush.bf16.xpose.msra.mxu0 0
        %1818 = vmatpush.bf16.xpose.msra.mxu0 0
        %1819 = vmatpush.bf16.xpose.msra.mxu0 0
        %1820 = vmatpush.bf16.xpose.msra.mxu0 %v1811
        %1821 = vmatmul.bf16.gmra.mxu0 %v1808
        %v1822 = vpop.f32.mrf.mxu0
        %v1823 = vadd.f32 %v1621, %v1822
        %v1824 = vpop.f32.mrf.mxu0
        %v1825 = vadd.f32 %v1621, %v1824
        %1826 = vdwg.mxu0
        %v1827 = vsel %vm1648, %v1823, -inf
        %1828 = vmax.xlane.f32.xlu0 %v1827
        %v1829 = vpop.xlane.xlu0 %1828
        %v1830 = vsel %vm1648, %v1825, -inf
        %1831 = vmax.xlane.f32.xlu0 %v1830
        %v1832 = vpop.xlane.xlu0 %1831
        %v1833 = vsub.f32 %v1823, %v1829
        %v1834 = vsub.f32 %v1825, %v1832
        %v1835 = vmul.f32 %v1833, 1.442695
        %v1836 = vpow.pop %v1835
        %v1837 = vmul.f32 %v1834, 1.442695
        %v1838 = vpow.pop %v1837
        %v1839 = vsel %vm1648, %v1836, 0.0
        %1840 = vadd.xlane.f32.xlu0 %v1839
        %v1841 = vpop.xlane.xlu0 %1840
        %v1842 = vsel %vm1648, %v1838, 0.0
        %1843 = vadd.xlane.f32.xlu0 %v1842
        %v1844 = vpop.xlane.xlu0 %1843
        %v1845 = vrcp.pop %v1841
        %v1846 = vrcp.pop %v1844
        %v1847 = vmul.f32 %v1836, %v1845
        %v1848 = vmul.f32 %v1838, %v1846
        %v1849 = vpack.c.bf16 %v1848, %v1847
        %1850 = vrot.lane.b32.xlu0 %v1623, 112
        %v1851 = vpop.permute.xlu0 %1850
        %v1854 = vsel %vm1648, %v1849, 0
        %1856 = vmatpush.bf16.msra.mxu0 0
        %1857 = vmatpush.bf16.msra.mxu0 0
        %1858 = vmatpush.bf16.msra.mxu0 0
        %1859 = vmatpush.bf16.msra.mxu0 0
        %1860 = vmatpush.bf16.msra.mxu0 0
        %1861 = vmatpush.bf16.msra.mxu0 0
        %1862 = vmatpush.bf16.msra.mxu0 0
        %1863 = vmatpush.bf16.msra.mxu0 %v1851
        %1864 = vmatmul.bf16.gmra.mxu0 %v1854
        %v1865 = vpop.f32.mrf.mxu0
        %v1866 = vadd.f32 0.0, %v1865
        %v1867 = vpop.f32.mrf.mxu0
        %v1868 = vadd.f32 0.0, %v1867
        %1869 = vdwg.mxu0
        %v1870 = vpack.c.bf16 %v1868, %v1866
        %s1871 = scalar_lea.vmem %s1198, 8 [#allocation3]
        %v1872 = vld [vmem:[%s1871] sm:$0xf]
        %v1874 = vsel %vm1627, %v1870, 0
        %v1877 = vsel %vm1765, %v1872, 0
        %1879 = vmatpush.bf16.msra.mxu0 0
        %1880 = vmatpush.bf16.msra.mxu0 0
        %1881 = vmatpush.bf16.msra.mxu0 0
        %1882 = vmatpush.bf16.msra.mxu0 0
        %1883 = vmatpush.bf16.msra.mxu0 0
        %1884 = vmatpush.bf16.msra.mxu0 0
        %1885 = vmatpush.bf16.msra.mxu0 0
        %1886 = vmatpush.bf16.msra.mxu0 %v1877
        %1887 = vmatmul.bf16.gmra.mxu0 %v1874
        %v1888 = vpop.f32.mrf.mxu0
        %v1889 = vadd.f32 0.0, %v1888
        %v1890 = vpop.f32.mrf.mxu0
        %v1891 = vadd.f32 0.0, %v1890
        %1892 = vdwg.mxu0
        %v1893 = vadd.f32 %v1799, %v1889
        %v1894 = vadd.f32 %v1801, %v1891
        %1895 = vrot.lane.b32.xlu0 %v1622, 104
        %v1896 = vpop.permute.xlu0 %1895
        %1897 = vrot.lane.b32.xlu0 %v1622, 72
        %v1898 = vpop.permute.xlu0 %1897
        %v1900 = vsel %vm1627, %v1896, 0
        %v1903 = vsel %vm1627, %v1898, 0
        %1905 = vmatpush.bf16.xpose.msra.mxu0 0
        %1906 = vmatpush.bf16.xpose.msra.mxu0 0
        %1907 = vmatpush.bf16.xpose.msra.mxu0 0
        %1908 = vmatpush.bf16.xpose.msra.mxu0 0
        %1909 = vmatpush.bf16.xpose.msra.mxu0 0
        %1910 = vmatpush.bf16.xpose.msra.mxu0 0
        %1911 = vmatpush.bf16.xpose.msra.mxu0 0
        %1912 = vmatpush.bf16.xpose.msra.mxu0 %v1903
        %1913 = vmatmul.bf16.gmra.mxu0 %v1900
        %v1914 = vpop.f32.mrf.mxu0
        %v1915 = vadd.f32 %v1621, %v1914
        %v1916 = vpop.f32.mrf.mxu0
        %v1917 = vadd.f32 %v1621, %v1916
        %1918 = vdwg.mxu0
        %v1919 = vsel %vm1648, %v1915, -inf
        %1920 = vmax.xlane.f32.xlu0 %v1919
        %v1921 = vpop.xlane.xlu0 %1920
        %v1922 = vsel %vm1648, %v1917, -inf
        %1923 = vmax.xlane.f32.xlu0 %v1922
        %v1924 = vpop.xlane.xlu0 %1923
        %v1925 = vsub.f32 %v1915, %v1921
        %v1926 = vsub.f32 %v1917, %v1924
        %v1927 = vmul.f32 %v1925, 1.442695
        %v1928 = vpow.pop %v1927
        %v1929 = vmul.f32 %v1926, 1.442695
        %v1930 = vpow.pop %v1929
        %v1931 = vsel %vm1648, %v1928, 0.0
        %1932 = vadd.xlane.f32.xlu0 %v1931
        %v1933 = vpop.xlane.xlu0 %1932
        %v1934 = vsel %vm1648, %v1930, 0.0
        %1935 = vadd.xlane.f32.xlu0 %v1934
        %v1936 = vpop.xlane.xlu0 %1935
        %v1937 = vrcp.pop %v1933
        %v1938 = vrcp.pop %v1936
        %v1939 = vmul.f32 %v1928, %v1937
        %v1940 = vmul.f32 %v1930, %v1938
        %v1941 = vpack.c.bf16 %v1940, %v1939
        %1942 = vrot.lane.b32.xlu0 %v1623, 104
        %v1943 = vpop.permute.xlu0 %1942
        %v1946 = vsel %vm1648, %v1941, 0
        %1948 = vmatpush.bf16.msra.mxu0 0
        %1949 = vmatpush.bf16.msra.mxu0 0
        %1950 = vmatpush.bf16.msra.mxu0 0
        %1951 = vmatpush.bf16.msra.mxu0 0
        %1952 = vmatpush.bf16.msra.mxu0 0
        %1953 = vmatpush.bf16.msra.mxu0 0
        %1954 = vmatpush.bf16.msra.mxu0 0
        %1955 = vmatpush.bf16.msra.mxu0 %v1943
        %1956 = vmatmul.bf16.gmra.mxu0 %v1946
        %v1957 = vpop.f32.mrf.mxu0
        %v1958 = vadd.f32 0.0, %v1957
        %v1959 = vpop.f32.mrf.mxu0
        %v1960 = vadd.f32 0.0, %v1959
        %1961 = vdwg.mxu0
        %v1962 = vpack.c.bf16 %v1960, %v1958
        %s1963 = scalar_lea.vmem %s1198, 12 [#allocation3]
        %v1964 = vld [vmem:[%s1963] sm:$0xf]
        %v1966 = vsel %vm1627, %v1962, 0
        %v1969 = vsel %vm1765, %v1964, 0
        %1971 = vmatpush.bf16.msra.mxu0 0
        %1972 = vmatpush.bf16.msra.mxu0 0
        %1973 = vmatpush.bf16.msra.mxu0 0
        %1974 = vmatpush.bf16.msra.mxu0 0
        %1975 = vmatpush.bf16.msra.mxu0 0
        %1976 = vmatpush.bf16.msra.mxu0 0
        %1977 = vmatpush.bf16.msra.mxu0 0
        %1978 = vmatpush.bf16.msra.mxu0 %v1969
        %1979 = vmatmul.bf16.gmra.mxu0 %v1966
        %v1980 = vpop.f32.mrf.mxu0
        %v1981 = vadd.f32 0.0, %v1980
        %v1982 = vpop.f32.mrf.mxu0
        %v1983 = vadd.f32 0.0, %v1982
        %1984 = vdwg.mxu0
        %v1985 = vadd.f32 %v1893, %v1981
        %v1986 = vadd.f32 %v1894, %v1983
        %v1987 = vpack.c.bf16 %v1569, %v1567
        %v1988 = vpack.c.bf16 %v1616, %v1614
        %1990 = vrot.lane.b32.xlu0 %v1987, 96
        %v1991 = vpop.permute.xlu0 %1990
        %v1993 = vsel %vm1627, %v1987, 0
        %v1996 = vsel %vm1627, %v1991, 0
        %1998 = vmatpush.bf16.xpose.msra.mxu0 0
        %1999 = vmatpush.bf16.xpose.msra.mxu0 0
        %2000 = vmatpush.bf16.xpose.msra.mxu0 0
        %2001 = vmatpush.bf16.xpose.msra.mxu0 0
        %2002 = vmatpush.bf16.xpose.msra.mxu0 0
        %2003 = vmatpush.bf16.xpose.msra.mxu0 0
        %2004 = vmatpush.bf16.xpose.msra.mxu0 0
        %2005 = vmatpush.bf16.xpose.msra.mxu0 %v1996
        %2006 = vmatmul.bf16.gmra.mxu0 %v1993
        %v2007 = vpop.f32.mrf.mxu0
        %v2008 = vadd.f32 %v1621, %v2007
        %v2009 = vpop.f32.mrf.mxu0
        %v2010 = vadd.f32 %v1621, %v2009
        %2011 = vdwg.mxu0
        %v2012 = vsel %vm1648, %v2008, -inf
        %2013 = vmax.xlane.f32.xlu0 %v2012
        %v2014 = vpop.xlane.xlu0 %2013
        %v2015 = vsel %vm1648, %v2010, -inf
        %2016 = vmax.xlane.f32.xlu0 %v2015
        %v2017 = vpop.xlane.xlu0 %2016
        %v2018 = vsub.f32 %v2008, %v2014
        %v2019 = vsub.f32 %v2010, %v2017
        %v2020 = vmul.f32 %v2018, 1.442695
        %v2021 = vpow.pop %v2020
        %v2022 = vmul.f32 %v2019, 1.442695
        %v2023 = vpow.pop %v2022
        %v2024 = vsel %vm1648, %v2021, 0.0
        %2025 = vadd.xlane.f32.xlu0 %v2024
        %v2026 = vpop.xlane.xlu0 %2025
        %v2027 = vsel %vm1648, %v2023, 0.0
        %2028 = vadd.xlane.f32.xlu0 %v2027
        %v2029 = vpop.xlane.xlu0 %2028
        %v2030 = vrcp.pop %v2026
        %v2031 = vrcp.pop %v2029
        %v2032 = vmul.f32 %v2021, %v2030
        %v2033 = vmul.f32 %v2023, %v2031
        %v2034 = vpack.c.bf16 %v2033, %v2032
        %v2036 = vsel %vm1648, %v2034, 0
        %2038 = vmatpush.bf16.msra.mxu0 0
        %2039 = vmatpush.bf16.msra.mxu0 0
        %2040 = vmatpush.bf16.msra.mxu0 0
        %2041 = vmatpush.bf16.msra.mxu0 0
        %2042 = vmatpush.bf16.msra.mxu0 0
        %2043 = vmatpush.bf16.msra.mxu0 0
        %2044 = vmatpush.bf16.msra.mxu0 0
        %2045 = vmatpush.bf16.msra.mxu0 %v1988
        %2046 = vmatmul.bf16.gmra.mxu0 %v2036
        %v2047 = vpop.f32.mrf.mxu0
        %v2048 = vadd.f32 0.0, %v2047
        %v2049 = vpop.f32.mrf.mxu0
        %v2050 = vadd.f32 0.0, %v2049
        %2051 = vdwg.mxu0
        %v2052 = vpack.c.bf16 %v2050, %v2048
        %2053 = vrot.lane.b32.xlu0 %v1987, 120
        %v2054 = vpop.permute.xlu0 %2053
        %2055 = vrot.lane.b32.xlu0 %v1987, 88
        %v2056 = vpop.permute.xlu0 %2055
        %v2058 = vsel %vm1627, %v2054, 0
        %v2061 = vsel %vm1627, %v2056, 0
        %2063 = vmatpush.bf16.xpose.msra.mxu0 0
        %2064 = vmatpush.bf16.xpose.msra.mxu0 0
        %2065 = vmatpush.bf16.xpose.msra.mxu0 0
        %2066 = vmatpush.bf16.xpose.msra.mxu0 0
        %2067 = vmatpush.bf16.xpose.msra.mxu0 0
        %2068 = vmatpush.bf16.xpose.msra.mxu0 0
        %2069 = vmatpush.bf16.xpose.msra.mxu0 0
        %2070 = vmatpush.bf16.xpose.msra.mxu0 %v2061
        %2071 = vmatmul.bf16.gmra.mxu0 %v2058
        %v2072 = vpop.f32.mrf.mxu0
        %v2073 = vadd.f32 %v1621, %v2072
        %v2074 = vpop.f32.mrf.mxu0
        %v2075 = vadd.f32 %v1621, %v2074
        %2076 = vdwg.mxu0
        %v2077 = vsel %vm1648, %v2073, -inf
        %2078 = vmax.xlane.f32.xlu0 %v2077
        %v2079 = vpop.xlane.xlu0 %2078
        %v2080 = vsel %vm1648, %v2075, -inf
        %2081 = vmax.xlane.f32.xlu0 %v2080
        %v2082 = vpop.xlane.xlu0 %2081
        %v2083 = vsub.f32 %v2073, %v2079
        %v2084 = vsub.f32 %v2075, %v2082
        %v2085 = vmul.f32 %v2083, 1.442695
        %v2086 = vpow.pop %v2085
        %v2087 = vmul.f32 %v2084, 1.442695
        %v2088 = vpow.pop %v2087
        %v2089 = vsel %vm1648, %v2086, 0.0
        %2090 = vadd.xlane.f32.xlu0 %v2089
        %v2091 = vpop.xlane.xlu0 %2090
        %v2092 = vsel %vm1648, %v2088, 0.0
        %2093 = vadd.xlane.f32.xlu0 %v2092
        %v2094 = vpop.xlane.xlu0 %2093
        %v2095 = vrcp.pop %v2091
        %v2096 = vrcp.pop %v2094
        %v2097 = vmul.f32 %v2086, %v2095
        %v2098 = vmul.f32 %v2088, %v2096
        %v2099 = vpack.c.bf16 %v2098, %v2097
        %2101 = vrot.lane.b32.xlu0 %v1988, 120
        %v2102 = vpop.permute.xlu0 %2101
        %v2105 = vsel %vm1648, %v2099, 0
        %2107 = vmatpush.bf16.msra.mxu0 0
        %2108 = vmatpush.bf16.msra.mxu0 0
        %2109 = vmatpush.bf16.msra.mxu0 0
        %2110 = vmatpush.bf16.msra.mxu0 0
        %2111 = vmatpush.bf16.msra.mxu0 0
        %2112 = vmatpush.bf16.msra.mxu0 0
        %2113 = vmatpush.bf16.msra.mxu0 0
        %2114 = vmatpush.bf16.msra.mxu0 %v2102
        %2115 = vmatmul.bf16.gmra.mxu0 %v2105
        %v2116 = vpop.f32.mrf.mxu0
        %v2117 = vadd.f32 0.0, %v2116
        %v2118 = vpop.f32.mrf.mxu0
        %v2119 = vadd.f32 0.0, %v2118
        %2120 = vdwg.mxu0
        %v2121 = vpack.c.bf16 %v2119, %v2117
        %v2123 = vsel %vm1627, %v2121, 0
        %2125 = vmatpush.bf16.msra.mxu0 0
        %2126 = vmatpush.bf16.msra.mxu0 0
        %2127 = vmatpush.bf16.msra.mxu0 0
        %2128 = vmatpush.bf16.msra.mxu0 0
        %2129 = vmatpush.bf16.msra.mxu0 0
        %2130 = vmatpush.bf16.msra.mxu0 0
        %2131 = vmatpush.bf16.msra.mxu0 0
        %2132 = vmatpush.bf16.msra.mxu0 %v1767
        %2133 = vmatmul.bf16.gmra.mxu0 %v2123
        %v2134 = vpop.f32.mrf.mxu0
        %v2135 = vadd.f32 0.0, %v2134
        %v2136 = vpop.f32.mrf.mxu0
        %v2137 = vadd.f32 0.0, %v2136
        %2138 = vdwg.mxu0
        %v2140 = vsel %vm1627, %v2052, 0
        %2142 = vmatpush.bf16.msra.mxu0 0
        %2143 = vmatpush.bf16.msra.mxu0 0
        %2144 = vmatpush.bf16.msra.mxu0 0
        %2145 = vmatpush.bf16.msra.mxu0 0
        %2146 = vmatpush.bf16.msra.mxu0 0
        %2147 = vmatpush.bf16.msra.mxu0 0
        %2148 = vmatpush.bf16.msra.mxu0 0
        %2149 = vmatpush.bf16.msra.mxu0 %v1787
        %2150 = vmatmul.bf16.gmra.mxu0 %v2140
        %v2151 = vpop.f32.mrf.mxu0
        %v2152 = vadd.f32 %v2135, %v2151
        %v2153 = vpop.f32.mrf.mxu0
        %v2154 = vadd.f32 %v2137, %v2153
        %2155 = vdwg.mxu0
        %2156 = vrot.lane.b32.xlu0 %v1987, 112
        %v2157 = vpop.permute.xlu0 %2156
        %2158 = vrot.lane.b32.xlu0 %v1987, 80
        %v2159 = vpop.permute.xlu0 %2158
        %v2161 = vsel %vm1627, %v2157, 0
        %v2164 = vsel %vm1627, %v2159, 0
        %2166 = vmatpush.bf16.xpose.msra.mxu0 0
        %2167 = vmatpush.bf16.xpose.msra.mxu0 0
        %2168 = vmatpush.bf16.xpose.msra.mxu0 0
        %2169 = vmatpush.bf16.xpose.msra.mxu0 0
        %2170 = vmatpush.bf16.xpose.msra.mxu0 0
        %2171 = vmatpush.bf16.xpose.msra.mxu0 0
        %2172 = vmatpush.bf16.xpose.msra.mxu0 0
        %2173 = vmatpush.bf16.xpose.msra.mxu0 %v2164
        %2174 = vmatmul.bf16.gmra.mxu0 %v2161
        %v2175 = vpop.f32.mrf.mxu0
        %v2176 = vadd.f32 %v1621, %v2175
        %v2177 = vpop.f32.mrf.mxu0
        %v2178 = vadd.f32 %v1621, %v2177
        %2179 = vdwg.mxu0
        %v2180 = vsel %vm1648, %v2176, -inf
        %2181 = vmax.xlane.f32.xlu0 %v2180
        %v2182 = vpop.xlane.xlu0 %2181
        %v2183 = vsel %vm1648, %v2178, -inf
        %2184 = vmax.xlane.f32.xlu0 %v2183
        %v2185 = vpop.xlane.xlu0 %2184
        %v2186 = vsub.f32 %v2176, %v2182
        %v2187 = vsub.f32 %v2178, %v2185
        %v2188 = vmul.f32 %v2186, 1.442695
        %v2189 = vpow.pop %v2188
        %v2190 = vmul.f32 %v2187, 1.442695
        %v2191 = vpow.pop %v2190
        %v2192 = vsel %vm1648, %v2189, 0.0
        %2193 = vadd.xlane.f32.xlu0 %v2192
        %v2194 = vpop.xlane.xlu0 %2193
        %v2195 = vsel %vm1648, %v2191, 0.0
        %2196 = vadd.xlane.f32.xlu0 %v2195
        %v2197 = vpop.xlane.xlu0 %2196
        %v2198 = vrcp.pop %v2194
        %v2199 = vrcp.pop %v2197
        %v2200 = vmul.f32 %v2189, %v2198
        %v2201 = vmul.f32 %v2191, %v2199
        %v2202 = vpack.c.bf16 %v2201, %v2200
        %2203 = vrot.lane.b32.xlu0 %v1988, 112
        %v2204 = vpop.permute.xlu0 %2203
        %v2207 = vsel %vm1648, %v2202, 0
        %2209 = vmatpush.bf16.msra.mxu0 0
        %2210 = vmatpush.bf16.msra.mxu0 0
        %2211 = vmatpush.bf16.msra.mxu0 0
        %2212 = vmatpush.bf16.msra.mxu0 0
        %2213 = vmatpush.bf16.msra.mxu0 0
        %2214 = vmatpush.bf16.msra.mxu0 0
        %2215 = vmatpush.bf16.msra.mxu0 0
        %2216 = vmatpush.bf16.msra.mxu0 %v2204
        %2217 = vmatmul.bf16.gmra.mxu0 %v2207
        %v2218 = vpop.f32.mrf.mxu0
        %v2219 = vadd.f32 0.0, %v2218
        %v2220 = vpop.f32.mrf.mxu0
        %v2221 = vadd.f32 0.0, %v2220
        %2222 = vdwg.mxu0
        %v2223 = vpack.c.bf16 %v2221, %v2219
        %v2225 = vsel %vm1627, %v2223, 0
        %2227 = vmatpush.bf16.msra.mxu0 0
        %2228 = vmatpush.bf16.msra.mxu0 0
        %2229 = vmatpush.bf16.msra.mxu0 0
        %2230 = vmatpush.bf16.msra.mxu0 0
        %2231 = vmatpush.bf16.msra.mxu0 0
        %2232 = vmatpush.bf16.msra.mxu0 0
        %2233 = vmatpush.bf16.msra.mxu0 0
        %2234 = vmatpush.bf16.msra.mxu0 %v1877
        %2235 = vmatmul.bf16.gmra.mxu0 %v2225
        %v2236 = vpop.f32.mrf.mxu0
        %v2237 = vadd.f32 0.0, %v2236
        %v2238 = vpop.f32.mrf.mxu0
        %v2239 = vadd.f32 0.0, %v2238
        %2240 = vdwg.mxu0
        %v2241 = vadd.f32 %v2152, %v2237
        %v2242 = vadd.f32 %v2154, %v2239
        %2243 = vrot.lane.b32.xlu0 %v1987, 104
        %v2244 = vpop.permute.xlu0 %2243
        %2245 = vrot.lane.b32.xlu0 %v1987, 72
        %v2246 = vpop.permute.xlu0 %2245
        %v2248 = vsel %vm1627, %v2244, 0
        %v2251 = vsel %vm1627, %v2246, 0
        %2253 = vmatpush.bf16.xpose.msra.mxu0 0
        %2254 = vmatpush.bf16.xpose.msra.mxu0 0
        %2255 = vmatpush.bf16.xpose.msra.mxu0 0
        %2256 = vmatpush.bf16.xpose.msra.mxu0 0
        %2257 = vmatpush.bf16.xpose.msra.mxu0 0
        %2258 = vmatpush.bf16.xpose.msra.mxu0 0
        %2259 = vmatpush.bf16.xpose.msra.mxu0 0
        %2260 = vmatpush.bf16.xpose.msra.mxu0 %v2251
        %2261 = vmatmul.bf16.gmra.mxu0 %v2248
        %v2262 = vpop.f32.mrf.mxu0
        %v2263 = vadd.f32 %v1621, %v2262
        %v2264 = vpop.f32.mrf.mxu0
        %v2265 = vadd.f32 %v1621, %v2264
        %2266 = vdwg.mxu0
        %v2267 = vsel %vm1648, %v2263, -inf
        %2268 = vmax.xlane.f32.xlu0 %v2267
        %v2269 = vpop.xlane.xlu0 %2268
        %v2270 = vsel %vm1648, %v2265, -inf
        %2271 = vmax.xlane.f32.xlu0 %v2270
        %v2272 = vpop.xlane.xlu0 %2271
        %v2273 = vsub.f32 %v2263, %v2269
        %v2274 = vsub.f32 %v2265, %v2272
        %v2275 = vmul.f32 %v2273, 1.442695
        %v2276 = vpow.pop %v2275
        %v2277 = vmul.f32 %v2274, 1.442695
        %v2278 = vpow.pop %v2277
        %v2279 = vsel %vm1648, %v2276, 0.0
        %2280 = vadd.xlane.f32.xlu0 %v2279
        %v2281 = vpop.xlane.xlu0 %2280
        %v2282 = vsel %vm1648, %v2278, 0.0
        %2283 = vadd.xlane.f32.xlu0 %v2282
        %v2284 = vpop.xlane.xlu0 %2283
        %v2285 = vrcp.pop %v2281
        %v2286 = vrcp.pop %v2284
        %v2287 = vmul.f32 %v2276, %v2285
        %v2288 = vmul.f32 %v2278, %v2286
        %v2289 = vpack.c.bf16 %v2288, %v2287
        %2290 = vrot.lane.b32.xlu0 %v1988, 104
        %v2291 = vpop.permute.xlu0 %2290
        %v2294 = vsel %vm1648, %v2289, 0
        %2296 = vmatpush.bf16.msra.mxu0 0
        %2297 = vmatpush.bf16.msra.mxu0 0
        %2298 = vmatpush.bf16.msra.mxu0 0
        %2299 = vmatpush.bf16.msra.mxu0 0
        %2300 = vmatpush.bf16.msra.mxu0 0
        %2301 = vmatpush.bf16.msra.mxu0 0
        %2302 = vmatpush.bf16.msra.mxu0 0
        %2303 = vmatpush.bf16.msra.mxu0 %v2291
        %2304 = vmatmul.bf16.gmra.mxu0 %v2294
        %v2305 = vpop.f32.mrf.mxu0
        %v2306 = vadd.f32 0.0, %v2305
        %v2307 = vpop.f32.mrf.mxu0
        %v2308 = vadd.f32 0.0, %v2307
        %2309 = vdwg.mxu0
        %v2310 = vpack.c.bf16 %v2308, %v2306
        %v2312 = vsel %vm1627, %v2310, 0
        %2314 = vmatpush.bf16.msra.mxu0 0
        %2315 = vmatpush.bf16.msra.mxu0 0
        %2316 = vmatpush.bf16.msra.mxu0 0
        %2317 = vmatpush.bf16.msra.mxu0 0
        %2318 = vmatpush.bf16.msra.mxu0 0
        %2319 = vmatpush.bf16.msra.mxu0 0
        %2320 = vmatpush.bf16.msra.mxu0 0
        %2321 = vmatpush.bf16.msra.mxu0 %v1969
        %2322 = vmatmul.bf16.gmra.mxu0 %v2312
        %v2323 = vpop.f32.mrf.mxu0
        %v2324 = vadd.f32 0.0, %v2323
        %v2325 = vpop.f32.mrf.mxu0
        %v2326 = vadd.f32 0.0, %v2325
        %2327 = vdwg.mxu0
        %v2328 = vadd.f32 %v2241, %v2324
        %v2329 = vadd.f32 %v2242, %v2326
        %v2330 = vld [vmem:[%s1464] sm:$0x1]
        %v2332 = vperm.slane %v2330, 0
        %v2334 = vadd.f32 %v1985, %v2332
        %v2335 = vadd.f32 %v1986, %v2332
        %v2336 = vadd.f32 %v2328, %v2332
        %v2337 = vadd.f32 %v2329, %v2332
        %v2338 = vadd.f32 %v1511, %v2334
        %v2339 = vadd.f32 %v1512, %v2335
        %v2340 = vadd.f32 %v1513, %v2336
        %v2341 = vadd.f32 %v1514, %v2337
        %v2342 = vld [vmem:[%s1490] sm:$0x1]
        %v2343 = vld [vmem:[%s1257] sm:$0x1]
        %v2344 = vsel %vm1545, %v2338, 0.0
        %2345 = vadd.xlane.f32.xlu0 %v2344
        %v2346 = vpop.xlane.xlu0 %2345
        %v2347 = vsel %vm1545, %v2339, 0.0
        %2348 = vadd.xlane.f32.xlu0 %v2347
        %v2349 = vpop.xlane.xlu0 %2348
        %v2350 = vsel %vm1545, %v2340, 0.0
        %2351 = vadd.xlane.f32.xlu0 %v2350
        %v2352 = vpop.xlane.xlu0 %2351
        %v2353 = vsel %vm1545, %v2341, 0.0
        %2354 = vadd.xlane.f32.xlu0 %v2353
        %v2355 = vpop.xlane.xlu0 %2354
        %v2356 = vrcp.pop 32.0
        %v2357 = vmul.f32 32.0, %v2356
        %v2358 = vsub.f32 1.0, %v2357
        %v2359 = vmul.f32 %v2356, %v2358
        %v2360 = vadd.f32 %v2356, %v2359
        %vm2361 = vweird.f32 %v2356
        %v2362 = vsel %vm2361, %v2356, %v2360
        %v2363 = vmul.f32 %v2346, %v2362
        %v2364 = vmul.f32 %v2349, %v2362
        %v2365 = vmul.f32 %v2352, %v2362
        %v2366 = vmul.f32 %v2355, %v2362
        %v2367 = vsub.f32 %v2338, %v2363
        %v2368 = vsub.f32 %v2339, %v2364
        %v2369 = vsub.f32 %v2340, %v2365
        %v2370 = vsub.f32 %v2341, %v2366
        %v2371 = vmul.f32 %v2367, %v2367
        %v2372 = vmul.f32 %v2368, %v2368
        %v2373 = vmul.f32 %v2369, %v2369
        %v2374 = vmul.f32 %v2370, %v2370
        %v2375 = vsel %vm1545, %v2371, 0.0
        %2376 = vadd.xlane.f32.xlu0 %v2375
        %v2377 = vpop.xlane.xlu0 %2376
        %v2378 = vsel %vm1545, %v2372, 0.0
        %2379 = vadd.xlane.f32.xlu0 %v2378
        %v2380 = vpop.xlane.xlu0 %2379
        %v2381 = vsel %vm1545, %v2373, 0.0
        %2382 = vadd.xlane.f32.xlu0 %v2381
        %v2383 = vpop.xlane.xlu0 %2382
        %v2384 = vsel %vm1545, %v2374, 0.0
        %2385 = vadd.xlane.f32.xlu0 %v2384
        %v2386 = vpop.xlane.xlu0 %2385
        %v2387 = vmul.f32 %v2377, %v2362
        %v2388 = vmul.f32 %v2380, %v2362
        %v2389 = vmul.f32 %v2383, %v2362
        %v2390 = vmul.f32 %v2386, %v2362
        %v2391 = vadd.f32 %v2387, 1e-05
        %v2392 = vadd.f32 %v2388, 1e-05
        %v2393 = vadd.f32 %v2389, 1e-05
        %v2394 = vadd.f32 %v2390, 1e-05
        %v2395 = vrsqrt.pop %v2391
        %v2396 = vmul.f32 %v2395, %v2391
        %v2397 = vmul.f32 %v2396, %v2395
        %v2398 = vmul.f32 0.5, %v2397
        %v2399 = vsub.f32 1.5, %v2398
        %v2400 = vmul.f32 %v2395, %v2399
        %vm2401 = vweird.f32 %v2391
        %vm2402 = vweird.f32 %v2395
        %vm2403 = vmor %vm2401, %vm2402
        %v2404 = vsel %vm2403, %v2395, %v2400
        %v2405 = vrsqrt.pop %v2392
        %v2406 = vmul.f32 %v2405, %v2392
        %v2407 = vmul.f32 %v2406, %v2405
        %v2408 = vmul.f32 0.5, %v2407
        %v2409 = vsub.f32 1.5, %v2408
        %v2410 = vmul.f32 %v2405, %v2409
        %vm2411 = vweird.f32 %v2392
        %vm2412 = vweird.f32 %v2405
        %vm2413 = vmor %vm2411, %vm2412
        %v2414 = vsel %vm2413, %v2405, %v2410
        %v2415 = vrsqrt.pop %v2393
        %v2416 = vmul.f32 %v2415, %v2393
        %v2417 = vmul.f32 %v2416, %v2415
        %v2418 = vmul.f32 0.5, %v2417
        %v2419 = vsub.f32 1.5, %v2418
        %v2420 = vmul.f32 %v2415, %v2419
        %vm2421 = vweird.f32 %v2393
        %vm2422 = vweird.f32 %v2415
        %vm2423 = vmor %vm2421, %vm2422
        %v2424 = vsel %vm2423, %v2415, %v2420
        %v2425 = vrsqrt.pop %v2394
        %v2426 = vmul.f32 %v2425, %v2394
        %v2427 = vmul.f32 %v2426, %v2425
        %v2428 = vmul.f32 0.5, %v2427
        %v2429 = vsub.f32 1.5, %v2428
        %v2430 = vmul.f32 %v2425, %v2429
        %vm2431 = vweird.f32 %v2394
        %vm2432 = vweird.f32 %v2425
        %vm2433 = vmor %vm2431, %vm2432
        %v2434 = vsel %vm2433, %v2425, %v2430
        %v2435 = vmul.f32 %v2367, %v2404
        %v2436 = vmul.f32 %v2368, %v2414
        %v2437 = vmul.f32 %v2369, %v2424
        %v2438 = vmul.f32 %v2370, %v2434
        %v2440 = vperm.slane %v2342, 0
        %v2442 = vmul.f32 %v2435, %v2440
        %v2443 = vmul.f32 %v2436, %v2440
        %v2444 = vmul.f32 %v2437, %v2440
        %v2445 = vmul.f32 %v2438, %v2440
        %v2447 = vperm.slane %v2343, 0
        %v2449 = vadd.f32 %v2442, %v2447
        %v2450 = vadd.f32 %v2443, %v2447
        %v2451 = vadd.f32 %v2444, %v2447
        %v2452 = vadd.f32 %v2445, %v2447
        %v2453 = vadd.f32 %v2449, %v1515
        %v2454 = vadd.f32 %v2450, %v1516
        %v2455 = vadd.f32 %v2451, %v1517
        %v2456 = vadd.f32 %v2452, %v1518
        %v2457 = vpack.c.bf16 %v2454, %v2453
        %v2458 = vpack.c.bf16 %v2456, %v2455
        %v2459 = vld [vmem:[%s1208] sm:$0xf]
        %v2460 = vld [vmem:[%s1208 + $0x4] sm:$0xf]
        %v2461 = vld [vmem:[%s1208 + $0x8] sm:$0xf]
        %v2462 = vld [vmem:[%s1208 + $0xc] sm:$0xf]
        %v2463 = vld [vmem:[%s1467] sm:$0x1]
        %v2465 = vperm.slane %v2463, 0
        %v2471 = vunpack.c.l.b16 %v2459
        %v2472 = vunpack.c.l.b16 %v2460
        %v2473 = vunpack.c.l.b16 %v2461
        %v2474 = vunpack.c.l.b16 %v2462
        %v2475 = vpack.c.b16 %v2472, %v2471
        %v2476 = vpack.c.b16 %v2474, %v2473
        %v2480 = vsel %vm1545, %v2457, 0
        %v2483 = vsel %vm1545, %v2458, 0
        %2485 = vmatpush.bf16.msra.mxu0 0
        %2486 = vmatpush.bf16.msra.mxu0 0
        %2487 = vmatpush.bf16.msra.mxu0 0
        %2488 = vmatpush.bf16.msra.mxu0 0
        %2489 = vmatpush.bf16.msra.mxu0 0
        %2490 = vmatpush.bf16.msra.mxu0 0
        %2491 = vmatpush.bf16.msra.mxu0 %v2476
        %2492 = vmatpush.bf16.msra.mxu0 %v2475
        %2493 = vmatmul.bf16.gmra.mxu0 %v2480
        %v2494 = vpop.f32.mrf.mxu0
        %v2495 = vadd.f32 %v2465, %v2494
        %v2496 = vpop.f32.mrf.mxu0
        %v2497 = vadd.f32 %v2465, %v2496
        %2498 = vmatmul.bf16.gmra.mxu0 %v2483
        %v2499 = vpop.f32.mrf.mxu0
        %v2500 = vadd.f32 %v2465, %v2499
        %v2501 = vpop.f32.mrf.mxu0
        %v2502 = vadd.f32 %v2465, %v2501
        %2503 = vdwg.mxu0
        %v2504 = vld [vmem:[%s7] sm:$0xf]
        %v2505 = vld [vmem:[%s7 + $0x4] sm:$0xf]
        %v2506 = vld [vmem:[%s7 + $0x8] sm:$0xf]
        %v2507 = vld [vmem:[%s7 + $0xc] sm:$0xf]
        %v2508 = vld [vmem:[%s7 + $0x10] sm:$0xf]
        %v2509 = vld [vmem:[%s7 + $0x14] sm:$0xf]
        %v2510 = vld [vmem:[%s1218] sm:$0xf]
        %v2511 = vld [vmem:[%s1218 + $0x4] sm:$0xf]
        %v2512 = vld [vmem:[%s1218 + $0x8] sm:$0xf]
        %v2513 = vld [vmem:[%s1218 + $0xc] sm:$0xf]
        %v2514 = vld [vmem:[%s1470] sm:$0x1]
        %v2516 = vperm.slane %v2514, 0
        %v2524 = vunpack.c.l.b16 %v2504
        %v2525 = vunpack.c.l.b16 %v2505
        %v2526 = vunpack.c.l.b16 %v2506
        %v2527 = vunpack.c.l.b16 %v2507
        %v2528 = vunpack.c.l.b16 %v2508
        %v2529 = vunpack.c.l.b16 %v2509
        %v2530 = vpack.c.b16 %v2525, %v2524
        %v2531 = vpack.c.b16 %v2527, %v2526
        %v2532 = vpack.c.b16 %v2529, %v2528
        %v2537 = vunpack.c.l.b16 %v2510
        %v2538 = vunpack.c.l.b16 %v2511
        %v2539 = vunpack.c.l.b16 %v2512
        %v2540 = vunpack.c.l.b16 %v2513
        %v2541 = vpack.c.b16 %v2538, %v2537
        %v2542 = vpack.c.b16 %v2540, %v2539
        %v2546 = vsel %vm1545, %v2530, 0
        %v2549 = vsel %vm1545, %v2531, 0
        %v2552 = vsel %vm1545, %v2532, 0
        %2554 = vmatpush.bf16.msra.mxu0 0
        %2555 = vmatpush.bf16.msra.mxu0 0
        %2556 = vmatpush.bf16.msra.mxu0 0
        %2557 = vmatpush.bf16.msra.mxu0 0
        %2558 = vmatpush.bf16.msra.mxu0 0
        %2559 = vmatpush.bf16.msra.mxu0 0
        %2560 = vmatpush.bf16.msra.mxu0 %v2542
        %2561 = vmatpush.bf16.msra.mxu0 %v2541
        %2562 = vmatmul.bf16.gmra.mxu0 %v2546
        %v2563 = vpop.f32.mrf.mxu0
        %v2564 = vadd.f32 %v2516, %v2563
        %v2565 = vpop.f32.mrf.mxu0
        %v2566 = vadd.f32 %v2516, %v2565
        %2567 = vmatmul.bf16.gmra.mxu0 %v2549
        %v2568 = vpop.f32.mrf.mxu0
        %v2569 = vadd.f32 %v2516, %v2568
        %v2570 = vpop.f32.mrf.mxu0
        %v2571 = vadd.f32 %v2516, %v2570
        %2572 = vmatmul.bf16.gmra.mxu0 %v2552
        %v2573 = vpop.f32.mrf.mxu0
        %v2574 = vadd.f32 %v2516, %v2573
        %v2575 = vpop.f32.mrf.mxu0
        %v2576 = vadd.f32 %v2516, %v2575
        %2577 = vdwg.mxu0
        %v2578 = vld [vmem:[%s5] sm:$0xf]
        %v2579 = vld [vmem:[%s5 + $0x4] sm:$0xf]
        %v2580 = vld [vmem:[%s5 + $0x8] sm:$0xf]
        %v2581 = vld [vmem:[%s5 + $0xc] sm:$0xf]
        %v2582 = vld [vmem:[%s5 + $0x10] sm:$0xf]
        %v2583 = vld [vmem:[%s5 + $0x14] sm:$0xf]
        %v2584 = vld [vmem:[%s1228] sm:$0xf]
        %v2585 = vld [vmem:[%s1228 + $0x4] sm:$0xf]
        %v2586 = vld [vmem:[%s1228 + $0x8] sm:$0xf]
        %v2587 = vld [vmem:[%s1228 + $0xc] sm:$0xf]
        %v2588 = vld [vmem:[%s1473] sm:$0x1]
        %v2590 = vperm.slane %v2588, 0
        %v2598 = vunpack.c.l.b16 %v2578
        %v2599 = vunpack.c.l.b16 %v2579
        %v2600 = vunpack.c.l.b16 %v2580
        %v2601 = vunpack.c.l.b16 %v2581
        %v2602 = vunpack.c.l.b16 %v2582
        %v2603 = vunpack.c.l.b16 %v2583
        %v2604 = vpack.c.b16 %v2599, %v2598
        %v2605 = vpack.c.b16 %v2601, %v2600
        %v2606 = vpack.c.b16 %v2603, %v2602
        %v2611 = vunpack.c.l.b16 %v2584
        %v2612 = vunpack.c.l.b16 %v2585
        %v2613 = vunpack.c.l.b16 %v2586
        %v2614 = vunpack.c.l.b16 %v2587
        %v2615 = vpack.c.b16 %v2612, %v2611
        %v2616 = vpack.c.b16 %v2614, %v2613
        %v2620 = vsel %vm1545, %v2604, 0
        %v2623 = vsel %vm1545, %v2605, 0
        %v2626 = vsel %vm1545, %v2606, 0
        %2628 = vmatpush.bf16.msra.mxu0 0
        %2629 = vmatpush.bf16.msra.mxu0 0
        %2630 = vmatpush.bf16.msra.mxu0 0
        %2631 = vmatpush.bf16.msra.mxu0 0
        %2632 = vmatpush.bf16.msra.mxu0 0
        %2633 = vmatpush.bf16.msra.mxu0 0
        %2634 = vmatpush.bf16.msra.mxu0 %v2616
        %2635 = vmatpush.bf16.msra.mxu0 %v2615
        %2636 = vmatmul.bf16.gmra.mxu0 %v2620
        %v2637 = vpop.f32.mrf.mxu0
        %v2638 = vadd.f32 %v2590, %v2637
        %v2639 = vpop.f32.mrf.mxu0
        %v2640 = vadd.f32 %v2590, %v2639
        %2641 = vmatmul.bf16.gmra.mxu0 %v2623
        %v2642 = vpop.f32.mrf.mxu0
        %v2643 = vadd.f32 %v2590, %v2642
        %v2644 = vpop.f32.mrf.mxu0
        %v2645 = vadd.f32 %v2590, %v2644
        %2646 = vmatmul.bf16.gmra.mxu0 %v2626
        %v2647 = vpop.f32.mrf.mxu0
        %v2648 = vadd.f32 %v2590, %v2647
        %v2649 = vpop.f32.mrf.mxu0
        %v2650 = vadd.f32 %v2590, %v2649
        %2651 = vdwg.mxu0
        %vm2652 = vcmp.lt.s32.totalorder %v1619, 23
        %v2653 = vsel %vm2652, 0.0, -1e+30
        %v2654 = vpack.c.bf16 %v2497, %v2495
        %v2655 = vpack.c.bf16 %v2566, %v2564
        %v2656 = vpack.c.bf16 %v2569, %v2569
        %v2657 = vpack.c.bf16 %v2640, %v2638
        %v2658 = vpack.c.bf16 %v2643, %v2643
        %v2660 = vsel %vm1627, %v2654, 0
        %v2663 = vsel %vm1627, %v2655, 0
        %v2666 = vsel %vm1627, %v2656, 0
        %2668 = vmatpush.bf16.xpose.msra.mxu0 0
        %2669 = vmatpush.bf16.xpose.msra.mxu0 0
        %2670 = vmatpush.bf16.xpose.msra.mxu0 0
        %2671 = vmatpush.bf16.xpose.msra.mxu0 0
        %2672 = vmatpush.bf16.xpose.msra.mxu0 0
        %2673 = vmatpush.bf16.xpose.msra.mxu0 0
        %2674 = vmatpush.bf16.xpose.msra.mxu0 %v2666
        %2675 = vmatpush.bf16.xpose.msra.mxu0 %v2663
        %2676 = vmatmul.bf16.gmra.mxu0 %v2660
        %v2677 = vpop.f32.mrf.mxu0
        %v2678 = vadd.f32 %v2653, %v2677
        %v2679 = vpop.f32.mrf.mxu0
        %v2680 = vadd.f32 %v2653, %v2679
        %2681 = vdwg.mxu0
        %vm2682 = vcmask 195584
        %v2683 = vsel %vm2682, %v2678, -inf
        %2684 = vmax.xlane.f32.xlu0 %v2683
        %v2685 = vpop.xlane.xlu0 %2684
        %v2686 = vsel %vm2682, %v2680, -inf
        %2687 = vmax.xlane.f32.xlu0 %v2686
        %v2688 = vpop.xlane.xlu0 %2687
        %v2689 = vsub.f32 %v2678, %v2685
        %v2690 = vsub.f32 %v2680, %v2688
        %v2691 = vmul.f32 %v2689, 1.442695
        %v2692 = vpow.pop %v2691
        %v2693 = vmul.f32 %v2690, 1.442695
        %v2694 = vpow.pop %v2693
        %v2695 = vsel %vm2682, %v2692, 0.0
        %2696 = vadd.xlane.f32.xlu0 %v2695
        %v2697 = vpop.xlane.xlu0 %2696
        %v2698 = vsel %vm2682, %v2694, 0.0
        %2699 = vadd.xlane.f32.xlu0 %v2698
        %v2700 = vpop.xlane.xlu0 %2699
        %v2701 = vrcp.pop %v2697
        %v2702 = vrcp.pop %v2700
        %v2703 = vmul.f32 %v2692, %v2701
        %v2704 = vmul.f32 %v2694, %v2702
        %v2705 = vpack.c.bf16 %v2704, %v2703
        %v2707 = vsel %vm2682, %v2705, 0
        %v2710 = vsel %vm1765, %v2658, 0
        %2712 = vmatpush.bf16.msra.mxu0 0
        %2713 = vmatpush.bf16.msra.mxu0 0
        %2714 = vmatpush.bf16.msra.mxu0 0
        %2715 = vmatpush.bf16.msra.mxu0 0
        %2716 = vmatpush.bf16.msra.mxu0 0
        %2717 = vmatpush.bf16.msra.mxu0 0
        %2718 = vmatpush.bf16.msra.mxu0 %v2710
        %2719 = vmatpush.bf16.msra.mxu0 %v2657
        %2720 = vmatmul.bf16.gmra.mxu0 %v2707
        %v2721 = vpop.f32.mrf.mxu0
        %v2722 = vadd.f32 0.0, %v2721
        %v2723 = vpop.f32.mrf.mxu0
        %v2724 = vadd.f32 0.0, %v2723
        %2725 = vdwg.mxu0
        %v2726 = vpack.c.bf16 %v2724, %v2722
        %v2727 = vld [vmem:[%s1238] sm:$0xf]
        %2729 = vrot.lane.b32.xlu0 %v2654, 120
        %v2730 = vpop.permute.xlu0 %2729
        %2733 = vrot.lane.b32.xlu0 %v2655, 120
        %v2734 = vpop.permute.xlu0 %2733
        %2735 = vrot.lane.b32.xlu0 %v2656, 120
        %v2736 = vpop.permute.xlu0 %2735
        %v2738 = vsel %vm1627, %v2730, 0
        %v2741 = vsel %vm1627, %v2734, 0
        %v2744 = vsel %vm1627, %v2736, 0
        %2746 = vmatpush.bf16.xpose.msra.mxu0 0
        %2747 = vmatpush.bf16.xpose.msra.mxu0 0
        %2748 = vmatpush.bf16.xpose.msra.mxu0 0
        %2749 = vmatpush.bf16.xpose.msra.mxu0 0
        %2750 = vmatpush.bf16.xpose.msra.mxu0 0
        %2751 = vmatpush.bf16.xpose.msra.mxu0 0
        %2752 = vmatpush.bf16.xpose.msra.mxu0 %v2744
        %2753 = vmatpush.bf16.xpose.msra.mxu0 %v2741
        %2754 = vmatmul.bf16.gmra.mxu0 %v2738
        %v2755 = vpop.f32.mrf.mxu0
        %v2756 = vadd.f32 %v2653, %v2755
        %v2757 = vpop.f32.mrf.mxu0
        %v2758 = vadd.f32 %v2653, %v2757
        %2759 = vdwg.mxu0
        %v2760 = vsel %vm2682, %v2756, -inf
        %2761 = vmax.xlane.f32.xlu0 %v2760
        %v2762 = vpop.xlane.xlu0 %2761
        %v2763 = vsel %vm2682, %v2758, -inf
        %2764 = vmax.xlane.f32.xlu0 %v2763
        %v2765 = vpop.xlane.xlu0 %2764
        %v2766 = vsub.f32 %v2756, %v2762
        %v2767 = vsub.f32 %v2758, %v2765
        %v2768 = vmul.f32 %v2766, 1.442695
        %v2769 = vpow.pop %v2768
        %v2770 = vmul.f32 %v2767, 1.442695
        %v2771 = vpow.pop %v2770
        %v2772 = vsel %vm2682, %v2769, 0.0
        %2773 = vadd.xlane.f32.xlu0 %v2772
        %v2774 = vpop.xlane.xlu0 %2773
        %v2775 = vsel %vm2682, %v2771, 0.0
        %2776 = vadd.xlane.f32.xlu0 %v2775
        %v2777 = vpop.xlane.xlu0 %2776
        %v2778 = vrcp.pop %v2774
        %v2779 = vrcp.pop %v2777
        %v2780 = vmul.f32 %v2769, %v2778
        %v2781 = vmul.f32 %v2771, %v2779
        %v2782 = vpack.c.bf16 %v2781, %v2780
        %2785 = vrot.lane.b32.xlu0 %v2657, 120
        %v2786 = vpop.permute.xlu0 %2785
        %2787 = vrot.lane.b32.xlu0 %v2658, 120
        %v2788 = vpop.permute.xlu0 %2787
        %v2791 = vsel %vm2682, %v2782, 0
        %v2794 = vsel %vm1765, %v2788, 0
        %2796 = vmatpush.bf16.msra.mxu0 0
        %2797 = vmatpush.bf16.msra.mxu0 0
        %2798 = vmatpush.bf16.msra.mxu0 0
        %2799 = vmatpush.bf16.msra.mxu0 0
        %2800 = vmatpush.bf16.msra.mxu0 0
        %2801 = vmatpush.bf16.msra.mxu0 0
        %2802 = vmatpush.bf16.msra.mxu0 %v2794
        %2803 = vmatpush.bf16.msra.mxu0 %v2786
        %2804 = vmatmul.bf16.gmra.mxu0 %v2791
        %v2805 = vpop.f32.mrf.mxu0
        %v2806 = vadd.f32 0.0, %v2805
        %v2807 = vpop.f32.mrf.mxu0
        %v2808 = vadd.f32 0.0, %v2807
        %2809 = vdwg.mxu0
        %v2810 = vpack.c.bf16 %v2808, %v2806
        %s2811 = scalar_lea.vmem %s1238, 4 [#allocation11]
        %v2812 = vld [vmem:[%s2811] sm:$0xf]
        %v2814 = vsel %vm1627, %v2810, 0
        %v2817 = vsel %vm1765, %v2812, 0
        %2819 = vmatpush.bf16.msra.mxu0 0
        %2820 = vmatpush.bf16.msra.mxu0 0
        %2821 = vmatpush.bf16.msra.mxu0 0
        %2822 = vmatpush.bf16.msra.mxu0 0
        %2823 = vmatpush.bf16.msra.mxu0 0
        %2824 = vmatpush.bf16.msra.mxu0 0
        %2825 = vmatpush.bf16.msra.mxu0 0
        %2826 = vmatpush.bf16.msra.mxu0 %v2817
        %2827 = vmatmul.bf16.gmra.mxu0 %v2814
        %v2828 = vpop.f32.mrf.mxu0
        %v2829 = vadd.f32 0.0, %v2828
        %v2830 = vpop.f32.mrf.mxu0
        %v2831 = vadd.f32 0.0, %v2830
        %2832 = vdwg.mxu0
        %v2834 = vsel %vm1627, %v2726, 0
        %v2837 = vsel %vm1765, %v2727, 0
        %2839 = vmatpush.bf16.msra.mxu0 0
        %2840 = vmatpush.bf16.msra.mxu0 0
        %2841 = vmatpush.bf16.msra.mxu0 0
        %2842 = vmatpush.bf16.msra.mxu0 0
        %2843 = vmatpush.bf16.msra.mxu0 0
        %2844 = vmatpush.bf16.msra.mxu0 0
        %2845 = vmatpush.bf16.msra.mxu0 0
        %2846 = vmatpush.bf16.msra.mxu0 %v2837
        %2847 = vmatmul.bf16.gmra.mxu0 %v2834
        %v2848 = vpop.f32.mrf.mxu0
        %v2849 = vadd.f32 %v2829, %v2848
        %v2850 = vpop.f32.mrf.mxu0
        %v2851 = vadd.f32 %v2831, %v2850
        %2852 = vdwg.mxu0
        %2853 = vrot.lane.b32.xlu0 %v2654, 112
        %v2854 = vpop.permute.xlu0 %2853
        %2855 = vrot.lane.b32.xlu0 %v2655, 112
        %v2856 = vpop.permute.xlu0 %2855
        %2857 = vrot.lane.b32.xlu0 %v2656, 112
        %v2858 = vpop.permute.xlu0 %2857
        %v2860 = vsel %vm1627, %v2854, 0
        %v2863 = vsel %vm1627, %v2856, 0
        %v2866 = vsel %vm1627, %v2858, 0
        %2868 = vmatpush.bf16.xpose.msra.mxu0 0
        %2869 = vmatpush.bf16.xpose.msra.mxu0 0
        %2870 = vmatpush.bf16.xpose.msra.mxu0 0
        %2871 = vmatpush.bf16.xpose.msra.mxu0 0
        %2872 = vmatpush.bf16.xpose.msra.mxu0 0
        %2873 = vmatpush.bf16.xpose.msra.mxu0 0
        %2874 = vmatpush.bf16.xpose.msra.mxu0 %v2866
        %2875 = vmatpush.bf16.xpose.msra.mxu0 %v2863
        %2876 = vmatmul.bf16.gmra.mxu0 %v2860
        %v2877 = vpop.f32.mrf.mxu0
        %v2878 = vadd.f32 %v2653, %v2877
        %v2879 = vpop.f32.mrf.mxu0
        %v2880 = vadd.f32 %v2653, %v2879
        %2881 = vdwg.mxu0
        %v2882 = vsel %vm2682, %v2878, -inf
        %2883 = vmax.xlane.f32.xlu0 %v2882
        %v2884 = vpop.xlane.xlu0 %2883
        %v2885 = vsel %vm2682, %v2880, -inf
        %2886 = vmax.xlane.f32.xlu0 %v2885
        %v2887 = vpop.xlane.xlu0 %2886
        %v2888 = vsub.f32 %v2878, %v2884
        %v2889 = vsub.f32 %v2880, %v2887
        %v2890 = vmul.f32 %v2888, 1.442695
        %v2891 = vpow.pop %v2890
        %v2892 = vmul.f32 %v2889, 1.442695
        %v2893 = vpow.pop %v2892
        %v2894 = vsel %vm2682, %v2891, 0.0
        %2895 = vadd.xlane.f32.xlu0 %v2894
        %v2896 = vpop.xlane.xlu0 %2895
        %v2897 = vsel %vm2682, %v2893, 0.0
        %2898 = vadd.xlane.f32.xlu0 %v2897
        %v2899 = vpop.xlane.xlu0 %2898
        %v2900 = vrcp.pop %v2896
        %v2901 = vrcp.pop %v2899
        %v2902 = vmul.f32 %v2891, %v2900
        %v2903 = vmul.f32 %v2893, %v2901
        %v2904 = vpack.c.bf16 %v2903, %v2902
        %2905 = vrot.lane.b32.xlu0 %v2657, 112
        %v2906 = vpop.permute.xlu0 %2905
        %2907 = vrot.lane.b32.xlu0 %v2658, 112
        %v2908 = vpop.permute.xlu0 %2907
        %v2911 = vsel %vm2682, %v2904, 0
        %v2914 = vsel %vm1765, %v2908, 0
        %2916 = vmatpush.bf16.msra.mxu0 0
        %2917 = vmatpush.bf16.msra.mxu0 0
        %2918 = vmatpush.bf16.msra.mxu0 0
        %2919 = vmatpush.bf16.msra.mxu0 0
        %2920 = vmatpush.bf16.msra.mxu0 0
        %2921 = vmatpush.bf16.msra.mxu0 0
        %2922 = vmatpush.bf16.msra.mxu0 %v2914
        %2923 = vmatpush.bf16.msra.mxu0 %v2906
        %2924 = vmatmul.bf16.gmra.mxu0 %v2911
        %v2925 = vpop.f32.mrf.mxu0
        %v2926 = vadd.f32 0.0, %v2925
        %v2927 = vpop.f32.mrf.mxu0
        %v2928 = vadd.f32 0.0, %v2927
        %2929 = vdwg.mxu0
        %v2930 = vpack.c.bf16 %v2928, %v2926
        %s2931 = scalar_lea.vmem %s1238, 8 [#allocation11]
        %v2932 = vld [vmem:[%s2931] sm:$0xf]
        %v2934 = vsel %vm1627, %v2930, 0
        %v2937 = vsel %vm1765, %v2932, 0
        %2939 = vmatpush.bf16.msra.mxu0 0
        %2940 = vmatpush.bf16.msra.mxu0 0
        %2941 = vmatpush.bf16.msra.mxu0 0
        %2942 = vmatpush.bf16.msra.mxu0 0
        %2943 = vmatpush.bf16.msra.mxu0 0
        %2944 = vmatpush.bf16.msra.mxu0 0
        %2945 = vmatpush.bf16.msra.mxu0 0
        %2946 = vmatpush.bf16.msra.mxu0 %v2937
        %2947 = vmatmul.bf16.gmra.mxu0 %v2934
        %v2948 = vpop.f32.mrf.mxu0
        %v2949 = vadd.f32 0.0, %v2948
        %v2950 = vpop.f32.mrf.mxu0
        %v2951 = vadd.f32 0.0, %v2950
        %2952 = vdwg.mxu0
        %v2953 = vadd.f32 %v2849, %v2949
        %v2954 = vadd.f32 %v2851, %v2951
        %2955 = vrot.lane.b32.xlu0 %v2654, 104
        %v2956 = vpop.permute.xlu0 %2955
        %2957 = vrot.lane.b32.xlu0 %v2655, 104
        %v2958 = vpop.permute.xlu0 %2957
        %2959 = vrot.lane.b32.xlu0 %v2656, 104
        %v2960 = vpop.permute.xlu0 %2959
        %v2962 = vsel %vm1627, %v2956, 0
        %v2965 = vsel %vm1627, %v2958, 0
        %v2968 = vsel %vm1627, %v2960, 0
        %2970 = vmatpush.bf16.xpose.msra.mxu0 0
        %2971 = vmatpush.bf16.xpose.msra.mxu0 0
        %2972 = vmatpush.bf16.xpose.msra.mxu0 0
        %2973 = vmatpush.bf16.xpose.msra.mxu0 0
        %2974 = vmatpush.bf16.xpose.msra.mxu0 0
        %2975 = vmatpush.bf16.xpose.msra.mxu0 0
        %2976 = vmatpush.bf16.xpose.msra.mxu0 %v2968
        %2977 = vmatpush.bf16.xpose.msra.mxu0 %v2965
        %2978 = vmatmul.bf16.gmra.mxu0 %v2962
        %v2979 = vpop.f32.mrf.mxu0
        %v2980 = vadd.f32 %v2653, %v2979
        %v2981 = vpop.f32.mrf.mxu0
        %v2982 = vadd.f32 %v2653, %v2981
        %2983 = vdwg.mxu0
        %v2984 = vsel %vm2682, %v2980, -inf
        %2985 = vmax.xlane.f32.xlu0 %v2984
        %v2986 = vpop.xlane.xlu0 %2985
        %v2987 = vsel %vm2682, %v2982, -inf
        %2988 = vmax.xlane.f32.xlu0 %v2987
        %v2989 = vpop.xlane.xlu0 %2988
        %v2990 = vsub.f32 %v2980, %v2986
        %v2991 = vsub.f32 %v2982, %v2989
        %v2992 = vmul.f32 %v2990, 1.442695
        %v2993 = vpow.pop %v2992
        %v2994 = vmul.f32 %v2991, 1.442695
        %v2995 = vpow.pop %v2994
        %v2996 = vsel %vm2682, %v2993, 0.0
        %2997 = vadd.xlane.f32.xlu0 %v2996
        %v2998 = vpop.xlane.xlu0 %2997
        %v2999 = vsel %vm2682, %v2995, 0.0
        %3000 = vadd.xlane.f32.xlu0 %v2999
        %v3001 = vpop.xlane.xlu0 %3000
        %v3002 = vrcp.pop %v2998
        %v3003 = vrcp.pop %v3001
        %v3004 = vmul.f32 %v2993, %v3002
        %v3005 = vmul.f32 %v2995, %v3003
        %v3006 = vpack.c.bf16 %v3005, %v3004
        %3007 = vrot.lane.b32.xlu0 %v2657, 104
        %v3008 = vpop.permute.xlu0 %3007
        %3009 = vrot.lane.b32.xlu0 %v2658, 104
        %v3010 = vpop.permute.xlu0 %3009
        %v3013 = vsel %vm2682, %v3006, 0
        %v3016 = vsel %vm1765, %v3010, 0
        %3018 = vmatpush.bf16.msra.mxu0 0
        %3019 = vmatpush.bf16.msra.mxu0 0
        %3020 = vmatpush.bf16.msra.mxu0 0
        %3021 = vmatpush.bf16.msra.mxu0 0
        %3022 = vmatpush.bf16.msra.mxu0 0
        %3023 = vmatpush.bf16.msra.mxu0 0
        %3024 = vmatpush.bf16.msra.mxu0 %v3016
        %3025 = vmatpush.bf16.msra.mxu0 %v3008
        %3026 = vmatmul.bf16.gmra.mxu0 %v3013
        %v3027 = vpop.f32.mrf.mxu0
        %v3028 = vadd.f32 0.0, %v3027
        %v3029 = vpop.f32.mrf.mxu0
        %v3030 = vadd.f32 0.0, %v3029
        %3031 = vdwg.mxu0
        %v3032 = vpack.c.bf16 %v3030, %v3028
        %s3033 = scalar_lea.vmem %s1238, 12 [#allocation11]
        %v3034 = vld [vmem:[%s3033] sm:$0xf]
        %v3036 = vsel %vm1627, %v3032, 0
        %v3039 = vsel %vm1765, %v3034, 0
        %3041 = vmatpush.bf16.msra.mxu0 0
        %3042 = vmatpush.bf16.msra.mxu0 0
        %3043 = vmatpush.bf16.msra.mxu0 0
        %3044 = vmatpush.bf16.msra.mxu0 0
        %3045 = vmatpush.bf16.msra.mxu0 0
        %3046 = vmatpush.bf16.msra.mxu0 0
        %3047 = vmatpush.bf16.msra.mxu0 0
        %3048 = vmatpush.bf16.msra.mxu0 %v3039
        %3049 = vmatmul.bf16.gmra.mxu0 %v3036
        %v3050 = vpop.f32.mrf.mxu0
        %v3051 = vadd.f32 0.0, %v3050
        %v3052 = vpop.f32.mrf.mxu0
        %v3053 = vadd.f32 0.0, %v3052
        %3054 = vdwg.mxu0
        %v3055 = vadd.f32 %v2953, %v3051
        %v3056 = vadd.f32 %v2954, %v3053
        %v3057 = vpack.c.bf16 %v2502, %v2500
        %v3058 = vpack.c.bf16 %v2574, %v2571
        %v3059 = vpack.c.bf16 %v2576, %v2576
        %v3060 = vpack.c.bf16 %v2648, %v2645
        %v3061 = vpack.c.bf16 %v2650, %v2650
        %v3063 = vsel %vm1627, %v3057, 0
        %v3066 = vsel %vm1627, %v3058, 0
        %v3069 = vsel %vm1627, %v3059, 0
        %3071 = vmatpush.bf16.xpose.msra.mxu0 0
        %3072 = vmatpush.bf16.xpose.msra.mxu0 0
        %3073 = vmatpush.bf16.xpose.msra.mxu0 0
        %3074 = vmatpush.bf16.xpose.msra.mxu0 0
        %3075 = vmatpush.bf16.xpose.msra.mxu0 0
        %3076 = vmatpush.bf16.xpose.msra.mxu0 0
        %3077 = vmatpush.bf16.xpose.msra.mxu0 %v3069
        %3078 = vmatpush.bf16.xpose.msra.mxu0 %v3066
        %3079 = vmatmul.bf16.gmra.mxu0 %v3063
        %v3080 = vpop.f32.mrf.mxu0
        %v3081 = vadd.f32 %v2653, %v3080
        %v3082 = vpop.f32.mrf.mxu0
        %v3083 = vadd.f32 %v2653, %v3082
        %3084 = vdwg.mxu0
        %v3085 = vsel %vm2682, %v3081, -inf
        %3086 = vmax.xlane.f32.xlu0 %v3085
        %v3087 = vpop.xlane.xlu0 %3086
        %v3088 = vsel %vm2682, %v3083, -inf
        %3089 = vmax.xlane.f32.xlu0 %v3088
        %v3090 = vpop.xlane.xlu0 %3089
        %v3091 = vsub.f32 %v3081, %v3087
        %v3092 = vsub.f32 %v3083, %v3090
        %v3093 = vmul.f32 %v3091, 1.442695
        %v3094 = vpow.pop %v3093
        %v3095 = vmul.f32 %v3092, 1.442695
        %v3096 = vpow.pop %v3095
        %v3097 = vsel %vm2682, %v3094, 0.0
        %3098 = vadd.xlane.f32.xlu0 %v3097
        %v3099 = vpop.xlane.xlu0 %3098
        %v3100 = vsel %vm2682, %v3096, 0.0
        %3101 = vadd.xlane.f32.xlu0 %v3100
        %v3102 = vpop.xlane.xlu0 %3101
        %v3103 = vrcp.pop %v3099
        %v3104 = vrcp.pop %v3102
        %v3105 = vmul.f32 %v3094, %v3103
        %v3106 = vmul.f32 %v3096, %v3104
        %v3107 = vpack.c.bf16 %v3106, %v3105
        %v3109 = vsel %vm2682, %v3107, 0
        %v3112 = vsel %vm1765, %v3061, 0
        %3114 = vmatpush.bf16.msra.mxu0 0
        %3115 = vmatpush.bf16.msra.mxu0 0
        %3116 = vmatpush.bf16.msra.mxu0 0
        %3117 = vmatpush.bf16.msra.mxu0 0
        %3118 = vmatpush.bf16.msra.mxu0 0
        %3119 = vmatpush.bf16.msra.mxu0 0
        %3120 = vmatpush.bf16.msra.mxu0 %v3112
        %3121 = vmatpush.bf16.msra.mxu0 %v3060
        %3122 = vmatmul.bf16.gmra.mxu0 %v3109
        %v3123 = vpop.f32.mrf.mxu0
        %v3124 = vadd.f32 0.0, %v3123
        %v3125 = vpop.f32.mrf.mxu0
        %v3126 = vadd.f32 0.0, %v3125
        %3127 = vdwg.mxu0
        %v3128 = vpack.c.bf16 %v3126, %v3124
        %3130 = vrot.lane.b32.xlu0 %v3057, 120
        %v3131 = vpop.permute.xlu0 %3130
        %3134 = vrot.lane.b32.xlu0 %v3058, 120
        %v3135 = vpop.permute.xlu0 %3134
        %3136 = vrot.lane.b32.xlu0 %v3059, 120
        %v3137 = vpop.permute.xlu0 %3136
        %v3139 = vsel %vm1627, %v3131, 0
        %v3142 = vsel %vm1627, %v3135, 0
        %v3145 = vsel %vm1627, %v3137, 0
        %3147 = vmatpush.bf16.xpose.msra.mxu0 0
        %3148 = vmatpush.bf16.xpose.msra.mxu0 0
        %3149 = vmatpush.bf16.xpose.msra.mxu0 0
        %3150 = vmatpush.bf16.xpose.msra.mxu0 0
        %3151 = vmatpush.bf16.xpose.msra.mxu0 0
        %3152 = vmatpush.bf16.xpose.msra.mxu0 0
        %3153 = vmatpush.bf16.xpose.msra.mxu0 %v3145
        %3154 = vmatpush.bf16.xpose.msra.mxu0 %v3142
        %3155 = vmatmul.bf16.gmra.mxu0 %v3139
        %v3156 = vpop.f32.mrf.mxu0
        %v3157 = vadd.f32 %v2653, %v3156
        %v3158 = vpop.f32.mrf.mxu0
        %v3159 = vadd.f32 %v2653, %v3158
        %3160 = vdwg.mxu0
        %v3161 = vsel %vm2682, %v3157, -inf
        %3162 = vmax.xlane.f32.xlu0 %v3161
        %v3163 = vpop.xlane.xlu0 %3162
        %v3164 = vsel %vm2682, %v3159, -inf
        %3165 = vmax.xlane.f32.xlu0 %v3164
        %v3166 = vpop.xlane.xlu0 %3165
        %v3167 = vsub.f32 %v3157, %v3163
        %v3168 = vsub.f32 %v3159, %v3166
        %v3169 = vmul.f32 %v3167, 1.442695
        %v3170 = vpow.pop %v3169
        %v3171 = vmul.f32 %v3168, 1.442695
        %v3172 = vpow.pop %v3171
        %v3173 = vsel %vm2682, %v3170, 0.0
        %3174 = vadd.xlane.f32.xlu0 %v3173
        %v3175 = vpop.xlane.xlu0 %3174
        %v3176 = vsel %vm2682, %v3172, 0.0
        %3177 = vadd.xlane.f32.xlu0 %v3176
        %v3178 = vpop.xlane.xlu0 %3177
        %v3179 = vrcp.pop %v3175
        %v3180 = vrcp.pop %v3178
        %v3181 = vmul.f32 %v3170, %v3179
        %v3182 = vmul.f32 %v3172, %v3180
        %v3183 = vpack.c.bf16 %v3182, %v3181
        %3186 = vrot.lane.b32.xlu0 %v3060, 120
        %v3187 = vpop.permute.xlu0 %3186
        %3188 = vrot.lane.b32.xlu0 %v3061, 120
        %v3189 = vpop.permute.xlu0 %3188
        %v3192 = vsel %vm2682, %v3183, 0
        %v3195 = vsel %vm1765, %v3189, 0
        %3197 = vmatpush.bf16.msra.mxu0 0
        %3198 = vmatpush.bf16.msra.mxu0 0
        %3199 = vmatpush.bf16.msra.mxu0 0
        %3200 = vmatpush.bf16.msra.mxu0 0
        %3201 = vmatpush.bf16.msra.mxu0 0
        %3202 = vmatpush.bf16.msra.mxu0 0
        %3203 = vmatpush.bf16.msra.mxu0 %v3195
        %3204 = vmatpush.bf16.msra.mxu0 %v3187
        %3205 = vmatmul.bf16.gmra.mxu0 %v3192
        %v3206 = vpop.f32.mrf.mxu0
        %v3207 = vadd.f32 0.0, %v3206
        %v3208 = vpop.f32.mrf.mxu0
        %v3209 = vadd.f32 0.0, %v3208
        %3210 = vdwg.mxu0
        %v3211 = vpack.c.bf16 %v3209, %v3207
        %v3213 = vsel %vm1627, %v3211, 0
        %3215 = vmatpush.bf16.msra.mxu0 0
        %3216 = vmatpush.bf16.msra.mxu0 0
        %3217 = vmatpush.bf16.msra.mxu0 0
        %3218 = vmatpush.bf16.msra.mxu0 0
        %3219 = vmatpush.bf16.msra.mxu0 0
        %3220 = vmatpush.bf16.msra.mxu0 0
        %3221 = vmatpush.bf16.msra.mxu0 0
        %3222 = vmatpush.bf16.msra.mxu0 %v2817
        %3223 = vmatmul.bf16.gmra.mxu0 %v3213
        %v3224 = vpop.f32.mrf.mxu0
        %v3225 = vadd.f32 0.0, %v3224
        %v3226 = vpop.f32.mrf.mxu0
        %v3227 = vadd.f32 0.0, %v3226
        %3228 = vdwg.mxu0
        %v3230 = vsel %vm1627, %v3128, 0
        %3232 = vmatpush.bf16.msra.mxu0 0
        %3233 = vmatpush.bf16.msra.mxu0 0
        %3234 = vmatpush.bf16.msra.mxu0 0
        %3235 = vmatpush.bf16.msra.mxu0 0
        %3236 = vmatpush.bf16.msra.mxu0 0
        %3237 = vmatpush.bf16.msra.mxu0 0
        %3238 = vmatpush.bf16.msra.mxu0 0
        %3239 = vmatpush.bf16.msra.mxu0 %v2837
        %3240 = vmatmul.bf16.gmra.mxu0 %v3230
        %v3241 = vpop.f32.mrf.mxu0
        %v3242 = vadd.f32 %v3225, %v3241
        %v3243 = vpop.f32.mrf.mxu0
        %v3244 = vadd.f32 %v3227, %v3243
        %3245 = vdwg.mxu0
        %3246 = vrot.lane.b32.xlu0 %v3057, 112
        %v3247 = vpop.permute.xlu0 %3246
        %3248 = vrot.lane.b32.xlu0 %v3058, 112
        %v3249 = vpop.permute.xlu0 %3248
        %3250 = vrot.lane.b32.xlu0 %v3059, 112
        %v3251 = vpop.permute.xlu0 %3250
        %v3253 = vsel %vm1627, %v3247, 0
        %v3256 = vsel %vm1627, %v3249, 0
        %v3259 = vsel %vm1627, %v3251, 0
        %3261 = vmatpush.bf16.xpose.msra.mxu0 0
        %3262 = vmatpush.bf16.xpose.msra.mxu0 0
        %3263 = vmatpush.bf16.xpose.msra.mxu0 0
        %3264 = vmatpush.bf16.xpose.msra.mxu0 0
        %3265 = vmatpush.bf16.xpose.msra.mxu0 0
        %3266 = vmatpush.bf16.xpose.msra.mxu0 0
        %3267 = vmatpush.bf16.xpose.msra.mxu0 %v3259
        %3268 = vmatpush.bf16.xpose.msra.mxu0 %v3256
        %3269 = vmatmul.bf16.gmra.mxu0 %v3253
        %v3270 = vpop.f32.mrf.mxu0
        %v3271 = vadd.f32 %v2653, %v3270
        %v3272 = vpop.f32.mrf.mxu0
        %v3273 = vadd.f32 %v2653, %v3272
        %3274 = vdwg.mxu0
        %v3275 = vsel %vm2682, %v3271, -inf
        %3276 = vmax.xlane.f32.xlu0 %v3275
        %v3277 = vpop.xlane.xlu0 %3276
        %v3278 = vsel %vm2682, %v3273, -inf
        %3279 = vmax.xlane.f32.xlu0 %v3278
        %v3280 = vpop.xlane.xlu0 %3279
        %v3281 = vsub.f32 %v3271, %v3277
        %v3282 = vsub.f32 %v3273, %v3280
        %v3283 = vmul.f32 %v3281, 1.442695
        %v3284 = vpow.pop %v3283
        %v3285 = vmul.f32 %v3282, 1.442695
        %v3286 = vpow.pop %v3285
        %v3287 = vsel %vm2682, %v3284, 0.0
        %3288 = vadd.xlane.f32.xlu0 %v3287
        %v3289 = vpop.xlane.xlu0 %3288
        %v3290 = vsel %vm2682, %v3286, 0.0
        %3291 = vadd.xlane.f32.xlu0 %v3290
        %v3292 = vpop.xlane.xlu0 %3291
        %v3293 = vrcp.pop %v3289
        %v3294 = vrcp.pop %v3292
        %v3295 = vmul.f32 %v3284, %v3293
        %v3296 = vmul.f32 %v3286, %v3294
        %v3297 = vpack.c.bf16 %v3296, %v3295
        %3298 = vrot.lane.b32.xlu0 %v3060, 112
        %v3299 = vpop.permute.xlu0 %3298
        %3300 = vrot.lane.b32.xlu0 %v3061, 112
        %v3301 = vpop.permute.xlu0 %3300
        %v3304 = vsel %vm2682, %v3297, 0
        %v3307 = vsel %vm1765, %v3301, 0
        %3309 = vmatpush.bf16.msra.mxu0 0
        %3310 = vmatpush.bf16.msra.mxu0 0
        %3311 = vmatpush.bf16.msra.mxu0 0
        %3312 = vmatpush.bf16.msra.mxu0 0
        %3313 = vmatpush.bf16.msra.mxu0 0
        %3314 = vmatpush.bf16.msra.mxu0 0
        %3315 = vmatpush.bf16.msra.mxu0 %v3307
        %3316 = vmatpush.bf16.msra.mxu0 %v3299
        %3317 = vmatmul.bf16.gmra.mxu0 %v3304
        %v3318 = vpop.f32.mrf.mxu0
        %v3319 = vadd.f32 0.0, %v3318
        %v3320 = vpop.f32.mrf.mxu0
        %v3321 = vadd.f32 0.0, %v3320
        %3322 = vdwg.mxu0
        %v3323 = vpack.c.bf16 %v3321, %v3319
        %v3325 = vsel %vm1627, %v3323, 0
        %3327 = vmatpush.bf16.msra.mxu0 0
        %3328 = vmatpush.bf16.msra.mxu0 0
        %3329 = vmatpush.bf16.msra.mxu0 0
        %3330 = vmatpush.bf16.msra.mxu0 0
        %3331 = vmatpush.bf16.msra.mxu0 0
        %3332 = vmatpush.bf16.msra.mxu0 0
        %3333 = vmatpush.bf16.msra.mxu0 0
        %3334 = vmatpush.bf16.msra.mxu0 %v2937
        %3335 = vmatmul.bf16.gmra.mxu0 %v3325
        %v3336 = vpop.f32.mrf.mxu0
        %v3337 = vadd.f32 0.0, %v3336
        %v3338 = vpop.f32.mrf.mxu0
        %v3339 = vadd.f32 0.0, %v3338
        %3340 = vdwg.mxu0
        %v3341 = vadd.f32 %v3242, %v3337
        %v3342 = vadd.f32 %v3244, %v3339
        %3343 = vrot.lane.b32.xlu0 %v3057, 104
        %v3344 = vpop.permute.xlu0 %3343
        %3345 = vrot.lane.b32.xlu0 %v3058, 104
        %v3346 = vpop.permute.xlu0 %3345
        %3347 = vrot.lane.b32.xlu0 %v3059, 104
        %v3348 = vpop.permute.xlu0 %3347
        %v3350 = vsel %vm1627, %v3344, 0
        %v3353 = vsel %vm1627, %v3346, 0
        %v3356 = vsel %vm1627, %v3348, 0
        %3358 = vmatpush.bf16.xpose.msra.mxu0 0
        %3359 = vmatpush.bf16.xpose.msra.mxu0 0
        %3360 = vmatpush.bf16.xpose.msra.mxu0 0
        %3361 = vmatpush.bf16.xpose.msra.mxu0 0
        %3362 = vmatpush.bf16.xpose.msra.mxu0 0
        %3363 = vmatpush.bf16.xpose.msra.mxu0 0
        %3364 = vmatpush.bf16.xpose.msra.mxu0 %v3356
        %3365 = vmatpush.bf16.xpose.msra.mxu0 %v3353
        %3366 = vmatmul.bf16.gmra.mxu0 %v3350
        %v3367 = vpop.f32.mrf.mxu0
        %v3368 = vadd.f32 %v2653, %v3367
        %v3369 = vpop.f32.mrf.mxu0
        %v3370 = vadd.f32 %v2653, %v3369
        %3371 = vdwg.mxu0
        %v3372 = vsel %vm2682, %v3368, -inf
        %3373 = vmax.xlane.f32.xlu0 %v3372
        %v3374 = vpop.xlane.xlu0 %3373
        %v3375 = vsel %vm2682, %v3370, -inf
        %3376 = vmax.xlane.f32.xlu0 %v3375
        %v3377 = vpop.xlane.xlu0 %3376
        %v3378 = vsub.f32 %v3368, %v3374
        %v3379 = vsub.f32 %v3370, %v3377
        %v3380 = vmul.f32 %v3378, 1.442695
        %v3381 = vpow.pop %v3380
        %v3382 = vmul.f32 %v3379, 1.442695
        %v3383 = vpow.pop %v3382
        %v3384 = vsel %vm2682, %v3381, 0.0
        %3385 = vadd.xlane.f32.xlu0 %v3384
        %v3386 = vpop.xlane.xlu0 %3385
        %v3387 = vsel %vm2682, %v3383, 0.0
        %3388 = vadd.xlane.f32.xlu0 %v3387
        %v3389 = vpop.xlane.xlu0 %3388
        %v3390 = vrcp.pop %v3386
        %v3391 = vrcp.pop %v3389
        %v3392 = vmul.f32 %v3381, %v3390
        %v3393 = vmul.f32 %v3383, %v3391
        %v3394 = vpack.c.bf16 %v3393, %v3392
        %3395 = vrot.lane.b32.xlu0 %v3060, 104
        %v3396 = vpop.permute.xlu0 %3395
        %3397 = vrot.lane.b32.xlu0 %v3061, 104
        %v3398 = vpop.permute.xlu0 %3397
        %v3401 = vsel %vm2682, %v3394, 0
        %v3404 = vsel %vm1765, %v3398, 0
        %3406 = vmatpush.bf16.msra.mxu0 0
        %3407 = vmatpush.bf16.msra.mxu0 0
        %3408 = vmatpush.bf16.msra.mxu0 0
        %3409 = vmatpush.bf16.msra.mxu0 0
        %3410 = vmatpush.bf16.msra.mxu0 0
        %3411 = vmatpush.bf16.msra.mxu0 0
        %3412 = vmatpush.bf16.msra.mxu0 %v3404
        %3413 = vmatpush.bf16.msra.mxu0 %v3396
        %3414 = vmatmul.bf16.gmra.mxu0 %v3401
        %v3415 = vpop.f32.mrf.mxu0
        %v3416 = vadd.f32 0.0, %v3415
        %v3417 = vpop.f32.mrf.mxu0
        %v3418 = vadd.f32 0.0, %v3417
        %3419 = vdwg.mxu0
        %v3420 = vpack.c.bf16 %v3418, %v3416
        %v3422 = vsel %vm1627, %v3420, 0
        %3424 = vmatpush.bf16.msra.mxu0 0
        %3425 = vmatpush.bf16.msra.mxu0 0
        %3426 = vmatpush.bf16.msra.mxu0 0
        %3427 = vmatpush.bf16.msra.mxu0 0
        %3428 = vmatpush.bf16.msra.mxu0 0
        %3429 = vmatpush.bf16.msra.mxu0 0
        %3430 = vmatpush.bf16.msra.mxu0 0
        %3431 = vmatpush.bf16.msra.mxu0 %v3039
        %3432 = vmatmul.bf16.gmra.mxu0 %v3422
        %v3433 = vpop.f32.mrf.mxu0
        %v3434 = vadd.f32 0.0, %v3433
        %v3435 = vpop.f32.mrf.mxu0
        %v3436 = vadd.f32 0.0, %v3435
        %3437 = vdwg.mxu0
        %v3438 = vadd.f32 %v3341, %v3434
        %v3439 = vadd.f32 %v3342, %v3436
        %v3440 = vld [vmem:[%s1476] sm:$0x1]
        %v3442 = vperm.slane %v3440, 0
        %v3444 = vadd.f32 %v3055, %v3442
        %v3445 = vadd.f32 %v3056, %v3442
        %v3446 = vadd.f32 %v3438, %v3442
        %v3447 = vadd.f32 %v3439, %v3442
        %v3448 = vadd.f32 %v2449, %v3444
        %v3449 = vadd.f32 %v2450, %v3445
        %v3450 = vadd.f32 %v2451, %v3446
        %v3451 = vadd.f32 %v2452, %v3447
        %v3452 = vld [vmem:[%s1493] sm:$0x1]
        %v3453 = vld [vmem:[%s1266] sm:$0x1]
        %v3454 = vsel %vm1545, %v3448, 0.0
        %3455 = vadd.xlane.f32.xlu0 %v3454
        %v3456 = vpop.xlane.xlu0 %3455
        %v3457 = vsel %vm1545, %v3449, 0.0
        %3458 = vadd.xlane.f32.xlu0 %v3457
        %v3459 = vpop.xlane.xlu0 %3458
        %v3460 = vsel %vm1545, %v3450, 0.0
        %3461 = vadd.xlane.f32.xlu0 %v3460
        %v3462 = vpop.xlane.xlu0 %3461
        %v3463 = vsel %vm1545, %v3451, 0.0
        %3464 = vadd.xlane.f32.xlu0 %v3463
        %v3465 = vpop.xlane.xlu0 %3464
        %v3466 = vmul.f32 %v3456, %v2362
        %v3467 = vmul.f32 %v3459, %v2362
        %v3468 = vmul.f32 %v3462, %v2362
        %v3469 = vmul.f32 %v3465, %v2362
        %v3470 = vsub.f32 %v3448, %v3466
        %v3471 = vsub.f32 %v3449, %v3467
        %v3472 = vsub.f32 %v3450, %v3468
        %v3473 = vsub.f32 %v3451, %v3469
        %v3474 = vmul.f32 %v3470, %v3470
        %v3475 = vmul.f32 %v3471, %v3471
        %v3476 = vmul.f32 %v3472, %v3472
        %v3477 = vmul.f32 %v3473, %v3473
        %v3478 = vsel %vm1545, %v3474, 0.0
        %3479 = vadd.xlane.f32.xlu0 %v3478
        %v3480 = vpop.xlane.xlu0 %3479
        %v3481 = vsel %vm1545, %v3475, 0.0
        %3482 = vadd.xlane.f32.xlu0 %v3481
        %v3483 = vpop.xlane.xlu0 %3482
        %v3484 = vsel %vm1545, %v3476, 0.0
        %3485 = vadd.xlane.f32.xlu0 %v3484
        %v3486 = vpop.xlane.xlu0 %3485
        %v3487 = vsel %vm1545, %v3477, 0.0
        %3488 = vadd.xlane.f32.xlu0 %v3487
        %v3489 = vpop.xlane.xlu0 %3488
        %v3490 = vmul.f32 %v3480, %v2362
        %v3491 = vmul.f32 %v3483, %v2362
        %v3492 = vmul.f32 %v3486, %v2362
        %v3493 = vmul.f32 %v3489, %v2362
        %v3494 = vadd.f32 %v3490, 1e-05
        %v3495 = vadd.f32 %v3491, 1e-05
        %v3496 = vadd.f32 %v3492, 1e-05
        %v3497 = vadd.f32 %v3493, 1e-05
        %v3498 = vrsqrt.pop %v3494
        %v3499 = vmul.f32 %v3498, %v3494
        %v3500 = vmul.f32 %v3499, %v3498
        %v3501 = vmul.f32 0.5, %v3500
        %v3502 = vsub.f32 1.5, %v3501
        %v3503 = vmul.f32 %v3498, %v3502
        %vm3504 = vweird.f32 %v3494
        %vm3505 = vweird.f32 %v3498
        %vm3506 = vmor %vm3504, %vm3505
        %v3507 = vsel %vm3506, %v3498, %v3503
        %v3508 = vrsqrt.pop %v3495
        %v3509 = vmul.f32 %v3508, %v3495
        %v3510 = vmul.f32 %v3509, %v3508
        %v3511 = vmul.f32 0.5, %v3510
        %v3512 = vsub.f32 1.5, %v3511
        %v3513 = vmul.f32 %v3508, %v3512
        %vm3514 = vweird.f32 %v3495
        %vm3515 = vweird.f32 %v3508
        %vm3516 = vmor %vm3514, %vm3515
        %v3517 = vsel %vm3516, %v3508, %v3513
        %v3518 = vrsqrt.pop %v3496
        %v3519 = vmul.f32 %v3518, %v3496
        %v3520 = vmul.f32 %v3519, %v3518
        %v3521 = vmul.f32 0.5, %v3520
        %v3522 = vsub.f32 1.5, %v3521
        %v3523 = vmul.f32 %v3518, %v3522
        %vm3524 = vweird.f32 %v3496
        %vm3525 = vweird.f32 %v3518
        %vm3526 = vmor %vm3524, %vm3525
        %v3527 = vsel %vm3526, %v3518, %v3523
        %v3528 = vrsqrt.pop %v3497
        %v3529 = vmul.f32 %v3528, %v3497
        %v3530 = vmul.f32 %v3529, %v3528
        %v3531 = vmul.f32 0.5, %v3530
        %v3532 = vsub.f32 1.5, %v3531
        %v3533 = vmul.f32 %v3528, %v3532
        %vm3534 = vweird.f32 %v3497
        %vm3535 = vweird.f32 %v3528
        %vm3536 = vmor %vm3534, %vm3535
        %v3537 = vsel %vm3536, %v3528, %v3533
        %v3538 = vmul.f32 %v3470, %v3507
        %v3539 = vmul.f32 %v3471, %v3517
        %v3540 = vmul.f32 %v3472, %v3527
        %v3541 = vmul.f32 %v3473, %v3537
        %v3543 = vperm.slane %v3452, 0
        %v3545 = vmul.f32 %v3538, %v3543
        %v3546 = vmul.f32 %v3539, %v3543
        %v3547 = vmul.f32 %v3540, %v3543
        %v3548 = vmul.f32 %v3541, %v3543
        %v3550 = vperm.slane %v3453, 0
        %v3552 = vadd.f32 %v3545, %v3550
        %v3553 = vadd.f32 %v3546, %v3550
        %v3554 = vadd.f32 %v3547, %v3550
        %v3555 = vadd.f32 %v3548, %v3550
        %v3556 = vpack.c.bf16 %v3553, %v3552
        %v3557 = vpack.c.bf16 %v3555, %v3554
        %v3558 = vld [vmem:[%s1248] sm:$0xf]
        %v3559 = vld [vmem:[%s1248 + $0x4] sm:$0xf]
        %v3560 = vld [vmem:[%s1248 + $0x8] sm:$0xf]
        %v3561 = vld [vmem:[%s1248 + $0xc] sm:$0xf]
        %v3562 = vld [vmem:[%s1479] sm:$0x1]
        %v3564 = vperm.slane %v3562, 0
        %v3570 = vunpack.c.l.b16 %v3558
        %v3571 = vunpack.c.l.b16 %v3559
        %v3572 = vunpack.c.l.b16 %v3560
        %v3573 = vunpack.c.l.b16 %v3561
        %v3574 = vpack.c.b16 %v3571, %v3570
        %v3575 = vpack.c.b16 %v3573, %v3572
        %v3579 = vsel %vm1545, %v3556, 0
        %v3582 = vsel %vm1545, %v3557, 0
        %3584 = vmatpush.bf16.msra.mxu0 0
        %3585 = vmatpush.bf16.msra.mxu0 0
        %3586 = vmatpush.bf16.msra.mxu0 0
        %3587 = vmatpush.bf16.msra.mxu0 0
        %3588 = vmatpush.bf16.msra.mxu0 0
        %3589 = vmatpush.bf16.msra.mxu0 0
        %3590 = vmatpush.bf16.msra.mxu0 %v3575
        %3591 = vmatpush.bf16.msra.mxu0 %v3574
        %3592 = vmatmul.bf16.gmra.mxu0 %v3579
        %v3593 = vpop.f32.mrf.mxu0
        %v3594 = vadd.f32 %v3564, %v3593
        %v3595 = vpop.f32.mrf.mxu0
        %v3596 = vadd.f32 %v3564, %v3595
        %3597 = vmatmul.bf16.gmra.mxu0 %v3582
        %v3598 = vpop.f32.mrf.mxu0
        %v3599 = vadd.f32 %v3564, %v3598
        %v3600 = vpop.f32.mrf.mxu0
        %v3601 = vadd.f32 %v3564, %v3600
        %3602 = vdwg.mxu0
        %v3603 = vmax.f32 %v3594, 0.0
        %v3604 = vmax.f32 %v3596, 0.0
        %v3605 = vmax.f32 %v3599, 0.0
        %v3606 = vmax.f32 %v3601, 0.0
        %v3607 = vpack.c.bf16 %v3604, %v3603
        %v3608 = vpack.c.bf16 %v3606, %v3605
        %v3609 = vld [vmem:[%s1484] sm:$0xf]
        %v3610 = vld [vmem:[%s1484 + $0x4] sm:$0xf]
        %v3611 = vld [vmem:[%s1484 + $0x8] sm:$0xf]
        %v3612 = vld [vmem:[%s1484 + $0xc] sm:$0xf]
        %v3613 = vld [vmem:[%s1484 + $0x10] sm:$0xf]
        %v3614 = vld [vmem:[%s1484 + $0x14] sm:$0xf]
        %v3615 = vld [vmem:[%s1484 + $0x18] sm:$0xf]
        %v3616 = vld [vmem:[%s1484 + $0x1c] sm:$0xf]
        %v3617 = vld [vmem:[%s1487] sm:$0x1]
        %v3619 = vperm.slane %v3617, 0
        %v3629 = vunpack.c.l.b16 %v3609
        %v3630 = vunpack.c.l.b16 %v3610
        %v3631 = vunpack.c.l.b16 %v3611
        %v3632 = vunpack.c.l.b16 %v3612
        %v3633 = vunpack.c.l.b16 %v3613
        %v3634 = vunpack.c.l.b16 %v3614
        %v3635 = vunpack.c.l.b16 %v3615
        %v3636 = vunpack.c.l.b16 %v3616
        %v3637 = vpack.c.b16 %v3630, %v3629
        %v3638 = vpack.c.b16 %v3632, %v3631
        %v3639 = vpack.c.b16 %v3634, %v3633
        %v3640 = vpack.c.b16 %v3636, %v3635
        %vm3645 = vcmask 523264
        %v3647 = vsel %vm3645, %v3607, 0
        %v3650 = vsel %vm3645, %v3608, 0
        %3652 = vmatpush.bf16.msra.mxu0 0
        %3653 = vmatpush.bf16.msra.mxu0 0
        %3654 = vmatpush.bf16.msra.mxu0 0
        %3655 = vmatpush.bf16.msra.mxu0 0
        %3656 = vmatpush.bf16.msra.mxu0 %v3640
        %3657 = vmatpush.bf16.msra.mxu0 %v3639
        %3658 = vmatpush.bf16.msra.mxu0 %v3638
        %3659 = vmatpush.bf16.msra.mxu0 %v3637
        %3660 = vmatmul.bf16.gmra.mxu0 %v3647
        %v3661 = vpop.f32.mrf.mxu0
        %v3662 = vadd.f32 %v3619, %v3661
        %v3663 = vpop.f32.mrf.mxu0
        %v3664 = vadd.f32 %v3619, %v3663
        %3665 = vmatmul.bf16.gmra.mxu0 %v3650
        %v3666 = vpop.f32.mrf.mxu0
        %v3667 = vadd.f32 %v3619, %v3666
        %v3668 = vpop.f32.mrf.mxu0
        %v3669 = vadd.f32 %v3619, %v3668
        %3670 = vdwg.mxu0
        %v3671 = vadd.f32 %v3552, %v3662
        %v3672 = vadd.f32 %v3553, %v3664
        %v3673 = vadd.f32 %v3554, %v3667
        %v3674 = vadd.f32 %v3555, %v3669
        %v3675 = vld [vmem:[%s1275] sm:$0x1]
        %v3676 = vld [vmem:[%s1496] sm:$0x1]
        %v3677 = vsel %vm1545, %v3671, 0.0
        %3678 = vadd.xlane.f32.xlu0 %v3677
        %v3679 = vpop.xlane.xlu0 %3678
        %v3680 = vsel %vm1545, %v3672, 0.0
        %3681 = vadd.xlane.f32.xlu0 %v3680
        %v3682 = vpop.xlane.xlu0 %3681
        %v3683 = vsel %vm1545, %v3673, 0.0
        %3684 = vadd.xlane.f32.xlu0 %v3683
        %v3685 = vpop.xlane.xlu0 %3684
        %v3686 = vsel %vm1545, %v3674, 0.0
        %3687 = vadd.xlane.f32.xlu0 %v3686
        %v3688 = vpop.xlane.xlu0 %3687
        %v3689 = vmul.f32 %v3679, %v2362
        %v3690 = vmul.f32 %v3682, %v2362
        %v3691 = vmul.f32 %v3685, %v2362
        %v3692 = vmul.f32 %v3688, %v2362
        %v3693 = vsub.f32 %v3671, %v3689
        %v3694 = vsub.f32 %v3672, %v3690
        %v3695 = vsub.f32 %v3673, %v3691
        %v3696 = vsub.f32 %v3674, %v3692
        %v3697 = vmul.f32 %v3693, %v3693
        %v3698 = vmul.f32 %v3694, %v3694
        %v3699 = vmul.f32 %v3695, %v3695
        %v3700 = vmul.f32 %v3696, %v3696
        %v3701 = vsel %vm1545, %v3697, 0.0
        %3702 = vadd.xlane.f32.xlu0 %v3701
        %v3703 = vpop.xlane.xlu0 %3702
        %v3704 = vsel %vm1545, %v3698, 0.0
        %3705 = vadd.xlane.f32.xlu0 %v3704
        %v3706 = vpop.xlane.xlu0 %3705
        %v3707 = vsel %vm1545, %v3699, 0.0
        %3708 = vadd.xlane.f32.xlu0 %v3707
        %v3709 = vpop.xlane.xlu0 %3708
        %v3710 = vsel %vm1545, %v3700, 0.0
        %3711 = vadd.xlane.f32.xlu0 %v3710
        %v3712 = vpop.xlane.xlu0 %3711
        %v3713 = vmul.f32 %v3703, %v2362
        %v3714 = vmul.f32 %v3706, %v2362
        %v3715 = vmul.f32 %v3709, %v2362
        %v3716 = vmul.f32 %v3712, %v2362
        %v3717 = vadd.f32 %v3713, 1e-05
        %v3718 = vadd.f32 %v3714, 1e-05
        %v3719 = vadd.f32 %v3715, 1e-05
        %v3720 = vadd.f32 %v3716, 1e-05
        %v3721 = vrsqrt.pop %v3717
        %v3722 = vmul.f32 %v3721, %v3717
        %v3723 = vmul.f32 %v3722, %v3721
        %v3724 = vmul.f32 0.5, %v3723
        %v3725 = vsub.f32 1.5, %v3724
        %v3726 = vmul.f32 %v3721, %v3725
        %vm3727 = vweird.f32 %v3717
        %vm3728 = vweird.f32 %v3721
        %vm3729 = vmor %vm3727, %vm3728
        %v3730 = vsel %vm3729, %v3721, %v3726
        %v3731 = vrsqrt.pop %v3718
        %v3732 = vmul.f32 %v3731, %v3718
        %v3733 = vmul.f32 %v3732, %v3731
        %v3734 = vmul.f32 0.5, %v3733
        %v3735 = vsub.f32 1.5, %v3734
        %v3736 = vmul.f32 %v3731, %v3735
        %vm3737 = vweird.f32 %v3718
        %vm3738 = vweird.f32 %v3731
        %vm3739 = vmor %vm3737, %vm3738
        %v3740 = vsel %vm3739, %v3731, %v3736
        %v3741 = vrsqrt.pop %v3719
        %v3742 = vmul.f32 %v3741, %v3719
        %v3743 = vmul.f32 %v3742, %v3741
        %v3744 = vmul.f32 0.5, %v3743
        %v3745 = vsub.f32 1.5, %v3744
        %v3746 = vmul.f32 %v3741, %v3745
        %vm3747 = vweird.f32 %v3719
        %vm3748 = vweird.f32 %v3741
        %vm3749 = vmor %vm3747, %vm3748
        %v3750 = vsel %vm3749, %v3741, %v3746
        %v3751 = vrsqrt.pop %v3720
        %v3752 = vmul.f32 %v3751, %v3720
        %v3753 = vmul.f32 %v3752, %v3751
        %v3754 = vmul.f32 0.5, %v3753
        %v3755 = vsub.f32 1.5, %v3754
        %v3756 = vmul.f32 %v3751, %v3755
        %vm3757 = vweird.f32 %v3720
        %vm3758 = vweird.f32 %v3751
        %vm3759 = vmor %vm3757, %vm3758
        %v3760 = vsel %vm3759, %v3751, %v3756
        %v3761 = vmul.f32 %v3693, %v3730
        %v3762 = vmul.f32 %v3694, %v3740
        %v3763 = vmul.f32 %v3695, %v3750
        %v3764 = vmul.f32 %v3696, %v3760
        %v3766 = vperm.slane %v3675, 0
        %v3768 = vmul.f32 %v3761, %v3766
        %v3769 = vmul.f32 %v3762, %v3766
        %v3770 = vmul.f32 %v3763, %v3766
        %v3771 = vmul.f32 %v3764, %v3766
        %v3773 = vperm.slane %v3676, 0
        %v3775 = vadd.f32 %v3768, %v3773
        %v3776 = vadd.f32 %v3769, %v3773
        %v3777 = vadd.f32 %v3770, %v3773
        %v3778 = vadd.f32 %v3771, %v3773
        %3779 = vst.msk [vmem:[#allocation2] sm:$0xff] %vm1545, %v3775
        %3780 = vst.msk [vmem:[#allocation2 + $0x8] sm:$0xff] %vm1545, %v3776
        %3781 = vst.msk [vmem:[#allocation2 + $0x10] sm:$0xff] %vm1545, %v3777
        %3782 = vst.msk [vmem:[#allocation2 + $0x18] sm:$0xff] %vm1545, %v3778
        %v3783 = vld [vmem:[%s57] sm:$0x1]
        %v3784 = vld [vmem:[#allocation18] sm:$0x1]
        %v3785 = vsel %vm1545, %v3775, 0.0
        %3786 = vadd.xlane.f32.xlu0 %v3785
        %v3787 = vpop.xlane.xlu0 %3786
        %v3788 = vsel %vm1545, %v3776, 0.0
        %3789 = vadd.xlane.f32.xlu0 %v3788
        %v3790 = vpop.xlane.xlu0 %3789
        %v3791 = vsel %vm1545, %v3777, 0.0
        %3792 = vadd.xlane.f32.xlu0 %v3791
        %v3793 = vpop.xlane.xlu0 %3792
        %v3794 = vsel %vm1545, %v3778, 0.0
        %3795 = vadd.xlane.f32.xlu0 %v3794
        %v3796 = vpop.xlane.xlu0 %3795
        %v3797 = vmul.f32 %v3787, %v2362
        %v3798 = vmul.f32 %v3790, %v2362
        %v3799 = vmul.f32 %v3793, %v2362
        %v3800 = vmul.f32 %v3796, %v2362
        %v3801 = vsub.f32 %v3775, %v3797
        %v3802 = vsub.f32 %v3776, %v3798
        %v3803 = vsub.f32 %v3777, %v3799
        %v3804 = vsub.f32 %v3778, %v3800
        %v3805 = vmul.f32 %v3801, %v3801
        %v3806 = vmul.f32 %v3802, %v3802
        %v3807 = vmul.f32 %v3803, %v3803
        %v3808 = vmul.f32 %v3804, %v3804
        %v3809 = vsel %vm1545, %v3805, 0.0
        %3810 = vadd.xlane.f32.xlu0 %v3809
        %v3811 = vpop.xlane.xlu0 %3810
        %v3812 = vsel %vm1545, %v3806, 0.0
        %3813 = vadd.xlane.f32.xlu0 %v3812
        %v3814 = vpop.xlane.xlu0 %3813
        %v3815 = vsel %vm1545, %v3807, 0.0
        %3816 = vadd.xlane.f32.xlu0 %v3815
        %v3817 = vpop.xlane.xlu0 %3816
        %v3818 = vsel %vm1545, %v3808, 0.0
        %3819 = vadd.xlane.f32.xlu0 %v3818
        %v3820 = vpop.xlane.xlu0 %3819
        %v3821 = vmul.f32 %v3811, %v2362
        %v3822 = vmul.f32 %v3814, %v2362
        %v3823 = vmul.f32 %v3817, %v2362
        %v3824 = vmul.f32 %v3820, %v2362
        %v3825 = vadd.f32 %v3821, 1e-05
        %v3826 = vadd.f32 %v3822, 1e-05
        %v3827 = vadd.f32 %v3823, 1e-05
        %v3828 = vadd.f32 %v3824, 1e-05
        %v3829 = vrsqrt.pop %v3825
        %v3830 = vmul.f32 %v3829, %v3825
        %v3831 = vmul.f32 %v3830, %v3829
        %v3832 = vmul.f32 0.5, %v3831
        %v3833 = vsub.f32 1.5, %v3832
        %v3834 = vmul.f32 %v3829, %v3833
        %vm3835 = vweird.f32 %v3825
        %vm3836 = vweird.f32 %v3829
        %vm3837 = vmor %vm3835, %vm3836
        %v3838 = vsel %vm3837, %v3829, %v3834
        %v3839 = vrsqrt.pop %v3826
        %v3840 = vmul.f32 %v3839, %v3826
        %v3841 = vmul.f32 %v3840, %v3839
        %v3842 = vmul.f32 0.5, %v3841
        %v3843 = vsub.f32 1.5, %v3842
        %v3844 = vmul.f32 %v3839, %v3843
        %vm3845 = vweird.f32 %v3826
        %vm3846 = vweird.f32 %v3839
        %vm3847 = vmor %vm3845, %vm3846
        %v3848 = vsel %vm3847, %v3839, %v3844
        %v3849 = vrsqrt.pop %v3827
        %v3850 = vmul.f32 %v3849, %v3827
        %v3851 = vmul.f32 %v3850, %v3849
        %v3852 = vmul.f32 0.5, %v3851
        %v3853 = vsub.f32 1.5, %v3852
        %v3854 = vmul.f32 %v3849, %v3853
        %vm3855 = vweird.f32 %v3827
        %vm3856 = vweird.f32 %v3849
        %vm3857 = vmor %vm3855, %vm3856
        %v3858 = vsel %vm3857, %v3849, %v3854
        %v3859 = vrsqrt.pop %v3828
        %v3860 = vmul.f32 %v3859, %v3828
        %v3861 = vmul.f32 %v3860, %v3859
        %v3862 = vmul.f32 0.5, %v3861
        %v3863 = vsub.f32 1.5, %v3862
        %v3864 = vmul.f32 %v3859, %v3863
        %vm3865 = vweird.f32 %v3828
        %vm3866 = vweird.f32 %v3859
        %vm3867 = vmor %vm3865, %vm3866
        %v3868 = vsel %vm3867, %v3859, %v3864
        %v3869 = vmul.f32 %v3801, %v3838
        %v3870 = vmul.f32 %v3802, %v3848
        %v3871 = vmul.f32 %v3803, %v3858
        %v3872 = vmul.f32 %v3804, %v3868
        %v3874 = vperm.slane %v3783, 0
        %v3876 = vmul.f32 %v3869, %v3874
        %v3877 = vmul.f32 %v3870, %v3874
        %v3878 = vmul.f32 %v3871, %v3874
        %v3879 = vmul.f32 %v3872, %v3874
        %v3881 = vperm.slane %v3784, 0
        %v3883 = vadd.f32 %v3876, %v3881
        %v3884 = vadd.f32 %v3877, %v3881
        %v3885 = vadd.f32 %v3878, %v3881
        %v3886 = vadd.f32 %v3879, %v3881
        %v3887 = vpack.c.bf16 %v3883, %v3883
        %v3888 = vpack.c.bf16 %v3884, %v3884
        %v3889 = vpack.c.bf16 %v3885, %v3885
        %v3890 = vpack.c.bf16 %v3886, %v3886
        %vm3891 = vcmask 257024
        %3892 = vst.msk [vmem:[%s1445] sm:$0xf] %vm3891, %v3887
        %3893 = vst.msk [vmem:[%s1445 + $0x4] sm:$0xf] %vm3891, %v3888
        %3894 = vst.msk [vmem:[%s1445 + $0x8] sm:$0xf] %vm3891, %v3889
        %3895 = vst.msk [vmem:[%s1445 + $0xc] sm:$0xf] %vm3891, %v3890
        %s3896 = sand.u32 %s849, 1
        %s3897 = scalar_lea.sflag [#allocation5], %s3896
        %s3898 = sand.u32 %s849, 1
        %s3899 = smul.addr %s3898, 16
        %s3900 = scalar_lea.vmem [#allocation20], %s3899
        // Predicated region
        $region185: #{tpu_custom_call.1} parent=139 // pred_check
          %p3901 = pneg %p859
        $region186: #{tpu_custom_call.1} parent=139 // pred_check_branch
          %3903 = sbr.rel (%p3901) target = $region188
        $region187: #{tpu_custom_call.1} parent=139 // pred_region
          %3905 = vsyncadd %s3897, 0
          %s3906 = smul.addr %s91, 4
          %s3907 = smul.addr %s3906, 4
          %s3908 = scalar_lea.hbm %s61, %s3907
          %s3909 = sshll.u32 %s3900, 4
          %s3910 = int_to_ptr.vmem [resolvable:$true] %s3909
          %s3911 = sshll.u32 %s3908, 4
          %s3912 = int_to_ptr.hbm [resolvable:$true] %s3911
          %3917 = dma.vmem_to_hbm [thread:$0]  %s3910, 256, %s3912, %s3897, 64, 64, 4
        $region188: #{tpu_custom_call.1} parent=139 // pred_fallthru
          _
      $region140: #{tpu_custom_call.1} parent=5 // pred_fallthru
        _
      %p3918 = scmp.le.s32.totalorder 2, %s86
      // Predicated region
      $region189: #{tpu_custom_call.1} parent=5 // pred_check
        %p3919 = pneg %p3918
      $region190: #{tpu_custom_call.1} parent=5 // pred_check_branch
        %3921 = sbr.rel (%p3919) target = $region192
      $region191: #{tpu_custom_call.1} parent=5 // pred_region
        %s3922 = ssub.s32 %s86, 2
        // Predicated region
        $region193: #{tpu_custom_call.1} parent=191 // pred_check
          %p3923 = pneg %p865
        $region194: #{tpu_custom_call.1} parent=191 // pred_check_branch
          %3925 = sbr.rel (%p3923) target = $region196
        $region195: #{tpu_custom_call.1} parent=191 // pred_region
          %s3926 = sand.u32 %s850, 1
          %s3927 = scalar_lea.sflag [#allocation5], %s3926
          %s3928 = sand.u32 %s850, 1
          %s3929 = smul.addr %s3928, 16
          %s3930 = scalar_lea.vmem [#allocation20], %s3929
          %3932 = dma.done %s3927, 256
        $region196: #{tpu_custom_call.1} parent=191 // pred_fallthru
          _
      $region192: #{tpu_custom_call.1} parent=5 // pred_fallthru
        _
    $region6: #{tpu_custom_call.1} parent=1 // loop_footer
      %s90 = sadd.s32 1, %s86
    $region7: #{tpu_custom_call.1} parent=1 // loop_footer_branch
      %85 = sbr.rel target = $region3
    $region8: #{tpu_custom_call.1} parent=1 // loop_exit
      _
    %3933 = vsyncpa [#allocation4], 1
    %s3934 = scalar_lea.sflag [#allocation4], 1
    %3935 = vsyncpa %s3934, 1
    %3936 = vsyncpa [#allocation7], 1
    %s3937 = scalar_lea.sflag [#allocation7], 1
    %3938 = vsyncpa %s3937, 1
    %3939 = vsyncpa [#allocation10], 1
    %s3940 = scalar_lea.sflag [#allocation10], 1
    %3941 = vsyncpa %s3940, 1
    %3942 = vsyncpa [#allocation13], 1
    %s3943 = scalar_lea.sflag [#allocation13], 1
    %3944 = vsyncpa %s3943, 1
    %3945 = vsyncpa [#allocation16], 1
    %s3946 = scalar_lea.sflag [#allocation16], 1
    %3947 = vsyncpa %s3946, 1
    %3948 = vsyncpa [#allocation19], 1
    %3949 = vsyncpa [#allocation5], 1
    %s3950 = scalar_lea.sflag [#allocation5], 1
    %3951 = vsyncpa %s3950, 1

</llo_original>
